<compile_context>
chip_gen: v6e
topology: v6e:2x2x1
jax: 0.10.0
libtpu: 0.0.40
codegen_flags: <defaults>
</compile_context>

<pallas_src>
import jax
import jax.numpy as jnp
from jax.experimental import pallas as pl
from jax.experimental.pallas import tpu as pltpu

CLASS_NUM = 200   # class_num in the PyTorch module
C_IN = 2048       # ResNet-50 feature channels
BTILE = 8         # batch elements per grid step (keeps grid shardable on v7x
                  # for real batch sizes; sublane-dense output rows)


def _gapnet_head_kernel(x_ref, w_avg_ref, w_max_ref, wfc_a_ref, wfc_m_ref,
                        bfc_ref, avg_ref, max_ref, pred_ref):
    # x_ref:    (Bt, HW, C) bf16   batch-tile of channels-last features
    # w_*_ref:  (C, Kp)     bf16   1x1 conv weights, transposed + lane-padded
    # wfc_*:    (Kp, Kp)    f32    split halves of cat_fc weight (transposed)
    # bfc_ref:  (1, Kp)     f32
    Bt, HW, C = x_ref.shape
    Kp = w_avg_ref.shape[1]

    x = x_ref[...]                                                # (Bt, HW, C)

    # ---- avg branch: pool-then-project (mean commutes with the 1x1 conv) ----
    x_mean = jnp.mean(x.astype(jnp.float32), axis=1)              # (Bt, C) f32
    avg1 = jnp.dot(x_mean.astype(jnp.bfloat16), w_avg_ref[...],
                   preferred_element_type=jnp.float32)            # (Bt, Kp)

    # ---- max branch: must project every spatial location, then max-pool ----
    x2d = x.reshape(Bt * HW, C)
    conv_max = jnp.dot(x2d, w_max_ref[...],
                       preferred_element_type=jnp.float32)        # (Bt*HW, Kp)
    max1 = jnp.max(conv_max.reshape(Bt, HW, Kp), axis=1)          # (Bt, Kp)

    # ---- cat([avg, max]) @ W_fc.T + b == avg @ Wa + max @ Wm + b ----
    pred = (jnp.dot(avg1, wfc_a_ref[...], preferred_element_type=jnp.float32)
            + jnp.dot(max1, wfc_m_ref[...], preferred_element_type=jnp.float32)
            + bfc_ref[...])                                       # (Bt, Kp)

    avg_ref[...] = avg1.astype(avg_ref.dtype)
    max_ref[...] = max1.astype(max_ref.dtype)
    pred_ref[...] = pred.astype(pred_ref.dtype)


def gapnet_head(x_feat_nchw, w_conv_avg, w_conv_max, w_fc, b_fc):
    """x_feat_nchw: [B, C, H, W] backbone features (PyTorch NCHW convention).
    w_conv_avg / w_conv_max: [K, C, 1, 1]  (nn.Conv2d(2048, K, 1, bias=False))
    w_fc: [K, 2K], b_fc: [K]               (nn.Linear(2K, K))
    Returns (avg1 [B,K], max1 [B,K], predict [B,K]) in float32."""
    B, C, H, W = x_feat_nchw.shape
    HW = H * W
    K = w_conv_avg.shape[0]
    Kp = ((K + 127) // 128) * 128            # 200 -> 256 lane-dense
    Bt = BTILE
    Bpad = ((B + Bt - 1) // Bt) * Bt         # pad batch to a whole tile

    # --- glue: NCHW -> [B, HW, C] channels-last, bf16, batch-padded ---
    # TODO(synk): this transpose is an extra HBM pass; fuse into the backbone
    # output layout if possible.
    x_feat = jnp.transpose(x_feat_nchw, (0, 2, 3, 1)).reshape(B, HW, C)
    x_feat = x_feat.astype(jnp.bfloat16)
    if Bpad > B:
        x_feat = jnp.pad(x_feat, ((0, Bpad - B), (0, 0), (0, 0)))

    # conv weights -> (C, Kp) bf16 (zero-padded lanes)
    w_avg_m = jnp.pad(jnp.transpose(w_conv_avg[:, :, 0, 0]),
                      ((0, 0), (0, Kp - K))).astype(jnp.bfloat16)
    w_max_m = jnp.pad(jnp.transpose(w_conv_max[:, :, 0, 0]),
                      ((0, 0), (0, Kp - K))).astype(jnp.bfloat16)
    # fc weight split into the avg / max halves, transposed, padded (f32)
    wfc_a = jnp.pad(jnp.transpose(w_fc[:, :K]), ((0, Kp - K), (0, Kp - K)))
    wfc_m = jnp.pad(jnp.transpose(w_fc[:, K:]), ((0, Kp - K), (0, Kp - K)))
    bfc = jnp.pad(b_fc, (0, Kp - K)).reshape(1, Kp)

    out_shapes = (
        jax.ShapeDtypeStruct((Bpad, Kp), jnp.float32),   # avg1 (padded)
        jax.ShapeDtypeStruct((Bpad, Kp), jnp.float32),   # max1 (padded)
        jax.ShapeDtypeStruct((Bpad, Kp), jnp.float32),   # predict (padded)
    )

    grid_spec = pltpu.PrefetchScalarGridSpec(
        num_scalar_prefetch=0,
        grid=(Bpad // Bt,),
        in_specs=[
            pl.BlockSpec((Bt, HW, C), lambda b: (b, 0, 0)),   # feature tile
            pl.BlockSpec((C, Kp), lambda b: (0, 0)),          # conv_avg weight
            pl.BlockSpec((C, Kp), lambda b: (0, 0)),          # conv_max weight
            pl.BlockSpec((Kp, Kp), lambda b: (0, 0)),         # fc weight (avg)
            pl.BlockSpec((Kp, Kp), lambda b: (0, 0)),         # fc weight (max)
            pl.BlockSpec((1, Kp), lambda b: (0, 0)),          # fc bias
        ],
        out_specs=[
            pl.BlockSpec((Bt, Kp), lambda b: (b, 0)),
            pl.BlockSpec((Bt, Kp), lambda b: (b, 0)),
            pl.BlockSpec((Bt, Kp), lambda b: (b, 0)),
        ],
    )

    avg1, max1, pred = pl.pallas_call(
        _gapnet_head_kernel,
        out_shape=out_shapes,
        grid_spec=grid_spec,
        compiler_params=pltpu.CompilerParams(
            dimension_semantics=("parallel",),
            vmem_limit_bytes=32 * 1024 * 1024),
    )(x_feat, w_avg_m, w_max_m, wfc_a, wfc_m, bfc)

    # strip batch / lane padding
    return avg1[:B, :K], max1[:B, :K], pred[:B, :K]


def _reference(x_feat_nchw, w_conv_avg, w_conv_max, w_fc, b_fc):
    """Plain-JAX f32 reference mirroring the PyTorch forward (NCHW)."""
    B, C, H, W = x_feat_nchw.shape
    K = w_conv_avg.shape[0]
    wa = w_conv_avg[:, :, 0, 0]   # (K, C)
    wm = w_conv_max[:, :, 0, 0]   # (K, C)
    conv_a = jnp.einsum('kc,bchw->bkhw', wa, x_feat_nchw)
    conv_m = jnp.einsum('kc,bchw->bkhw', wm, x_feat_nchw)
    avg1 = jnp.mean(conv_a, axis=(2, 3)).reshape(-1, K)
    max1 = jnp.max(conv_m, axis=(2, 3)).reshape(-1, K)
    c = jnp.concatenate([avg1, max1], axis=1)
    pred = c @ w_fc.T + b_fc
    return avg1, max1, pred


if __name__ == "__main__":
    B, H, W = 2, 4, 4          # small spatial extent for the synthetic feature map
    key = jax.random.PRNGKey(0)
    k1, k2, k3, k4, k5 = jax.random.split(key, 5)

    # Backbone feature map stand-in (what ResNet-50 would output).
    x_feat = jax.random.normal(k1, (B, C_IN, H, W), dtype=jnp.float32)

    # Deterministic synthetic parameters (shapes from the module's __init__).
    w_conv_avg = 0.02 * jax.random.normal(k2, (CLASS_NUM, C_IN, 1, 1), jnp.float32)
    w_conv_max = 0.02 * jax.random.normal(k3, (CLASS_NUM, C_IN, 1, 1), jnp.float32)
    w_fc = 0.05 * jax.random.normal(k4, (CLASS_NUM, 2 * CLASS_NUM), jnp.float32)
    b_fc = 0.01 * jax.random.normal(k5, (CLASS_NUM,), jnp.float32)

    avg1, max1, pred = jax.block_until_ready(
        gapnet_head(x_feat, w_conv_avg, w_conv_max, w_fc, b_fc))

    ravg, rmax, rpred = _reference(x_feat, w_conv_avg, w_conv_max, w_fc, b_fc)
    assert avg1.shape == (B, CLASS_NUM)
    assert max1.shape == (B, CLASS_NUM)
    assert pred.shape == (B, CLASS_NUM)
    # bf16 features/conv-weights (f32 accumulation) -> ~1e-2-scale deviations
    # from the pure-f32 reference are expected.
    assert jnp.allclose(avg1, ravg, atol=3e-2, rtol=3e-2)
    assert jnp.allclose(max1, rmax, atol=3e-2, rtol=3e-2)
    assert jnp.allclose(pred, rpred, atol=3e-2, rtol=3e-2)

    print("KERNEL_OK")
</pallas_src>

<mosaic_0001>
module attributes {stable_mosaic.version = 11 : i64} {
  func.func @_gapnet_head_kernel(%arg0: i32, %arg1: memref<8x16x2048xbf16, #tpu.memory_space<vmem>>, %arg2: memref<2048x256xbf16, #tpu.memory_space<vmem>>, %arg3: memref<2048x256xbf16, #tpu.memory_space<vmem>>, %arg4: memref<256x256xf32, #tpu.memory_space<vmem>>, %arg5: memref<256x256xf32, #tpu.memory_space<vmem>>, %arg6: memref<1x256xf32, #tpu.memory_space<vmem>>, %arg7: memref<8x256xf32, #tpu.memory_space<vmem>>, %arg8: memref<8x256xf32, #tpu.memory_space<vmem>>, %arg9: memref<8x256xf32, #tpu.memory_space<vmem>>) attributes {dimension_semantics = [#tpu.dimension_semantics<parallel>], iteration_bounds = array<i64: 1>, scalar_prefetch = 0 : i64, scratch_operands = 0 : i64, tpu.core_type = #tpu.core_type<tc>, window_params = [{transform_indices = @transform_0, window_bounds = array<i64: 8, 16, 2048>}, {pipeline_mode = #tpu.pipeline_mode<synchronous>, transform_indices = @transform_1, window_bounds = array<i64: 2048, 256>}, {pipeline_mode = #tpu.pipeline_mode<synchronous>, transform_indices = @transform_2, window_bounds = array<i64: 2048, 256>}, {pipeline_mode = #tpu.pipeline_mode<synchronous>, transform_indices = @transform_3, window_bounds = array<i64: 256, 256>}, {pipeline_mode = #tpu.pipeline_mode<synchronous>, transform_indices = @transform_4, window_bounds = array<i64: 256, 256>}, {pipeline_mode = #tpu.pipeline_mode<synchronous>, transform_indices = @transform_5, window_bounds = array<i64: 1, 256>}, {transform_indices = @transform_6, window_bounds = array<i64: 8, 256>}, {transform_indices = @transform_7, window_bounds = array<i64: 8, 256>}, {transform_indices = @transform_8, window_bounds = array<i64: 8, 256>}]} {
    %c0 = arith.constant 0 : index
    %c0_0 = arith.constant 0 : index
    %c0_1 = arith.constant 0 : index
    %0 = vector.load %arg1[%c0, %c0_0, %c0_1] : memref<8x16x2048xbf16, #tpu.memory_space<vmem>>, vector<8x16x2048xbf16>
    %1 = arith.extf %0 : vector<8x16x2048xbf16> to vector<8x16x2048xf32>
    %cst = arith.constant dense<0.000000e+00> : vector<8x2048xf32>
    %2 = vector.multi_reduction <add>, %1, %cst [1] : vector<8x16x2048xf32> to vector<8x2048xf32>
    %cst_2 = arith.constant 1.600000e+01 : f32
    %3 = vector.broadcast %cst_2 : f32 to vector<8x2048xf32>
    %4 = arith.divf %2, %3 : vector<8x2048xf32>
    %5 = arith.truncf %4 : vector<8x2048xf32> to vector<8x2048xbf16>
    %c0_3 = arith.constant 0 : index
    %c0_4 = arith.constant 0 : index
    %6 = vector.load %arg2[%c0_3, %c0_4] : memref<2048x256xbf16, #tpu.memory_space<vmem>>, vector<2048x256xbf16>
    %cst_5 = arith.constant dense<0.000000e+00> : vector<8x256xf32>
    %7 = tpu.matmul %5, %6, %cst_5 {dimension_numbers = #tpu.dot_dimension_numbers<[1], [0], [0], [1], [0, 0, 1, 1], [], []>} : vector<8x2048xbf16>, vector<2048x256xbf16>, vector<8x256xf32> -> vector<8x256xf32>
    %8 = vector.shape_cast %0 : vector<8x16x2048xbf16> to vector<128x2048xbf16>
    %c0_6 = arith.constant 0 : index
    %c0_7 = arith.constant 0 : index
    %9 = vector.load %arg3[%c0_6, %c0_7] : memref<2048x256xbf16, #tpu.memory_space<vmem>>, vector<2048x256xbf16>
    %cst_8 = arith.constant dense<0.000000e+00> : vector<128x256xf32>
    %10 = tpu.matmul %8, %9, %cst_8 {dimension_numbers = #tpu.dot_dimension_numbers<[1], [0], [0], [1], [0, 0, 1, 1], [], []>} : vector<128x2048xbf16>, vector<2048x256xbf16>, vector<128x256xf32> -> vector<128x256xf32>
    %11 = vector.shape_cast %10 : vector<128x256xf32> to vector<8x16x256xf32>
    %cst_9 = arith.constant dense<0xFF800000> : vector<8x256xf32>
    %12 = vector.multi_reduction <maximumf>, %11, %cst_9 [1] : vector<8x16x256xf32> to vector<8x256xf32>
    %c0_10 = arith.constant 0 : index
    %c0_11 = arith.constant 0 : index
    %13 = vector.load %arg4[%c0_10, %c0_11] : memref<256x256xf32, #tpu.memory_space<vmem>>, vector<256x256xf32>
    %cst_12 = arith.constant dense<0.000000e+00> : vector<8x256xf32>
    %14 = tpu.matmul %7, %13, %cst_12 {dimension_numbers = #tpu.dot_dimension_numbers<[1], [0], [0], [1], [0, 0, 1, 1], [], []>} : vector<8x256xf32>, vector<256x256xf32>, vector<8x256xf32> -> vector<8x256xf32>
    %c0_13 = arith.constant 0 : index
    %c0_14 = arith.constant 0 : index
    %15 = vector.load %arg5[%c0_13, %c0_14] : memref<256x256xf32, #tpu.memory_space<vmem>>, vector<256x256xf32>
    %cst_15 = arith.constant dense<0.000000e+00> : vector<8x256xf32>
    %16 = tpu.matmul %12, %15, %cst_15 {dimension_numbers = #tpu.dot_dimension_numbers<[1], [0], [0], [1], [0, 0, 1, 1], [], []>} : vector<8x256xf32>, vector<256x256xf32>, vector<8x256xf32> -> vector<8x256xf32>
    %17 = arith.addf %14, %16 : vector<8x256xf32>
    %c0_16 = arith.constant 0 : index
    %c0_17 = arith.constant 0 : index
    %18 = vector.load %arg6[%c0_16, %c0_17] : memref<1x256xf32, #tpu.memory_space<vmem>>, vector<1x256xf32>
    %19 = vector.broadcast %18 : vector<1x256xf32> to vector<8x256xf32>
    %20 = arith.addf %17, %19 : vector<8x256xf32>
    %c0_18 = arith.constant 0 : index
    %c0_19 = arith.constant 0 : index
    %21 = vector.load %arg7[%c0_18, %c0_19] : memref<8x256xf32, #tpu.memory_space<vmem>>, vector<8x256xf32>
    tpu.vector_store %arg7[%c0_18, %c0_19], %7 {strides = array<i32>} : memref<8x256xf32, #tpu.memory_space<vmem>>, vector<8x256xf32>,
    %c0_20 = arith.constant 0 : index
    %c0_21 = arith.constant 0 : index
    %22 = vector.load %arg8[%c0_20, %c0_21] : memref<8x256xf32, #tpu.memory_space<vmem>>, vector<8x256xf32>
    tpu.vector_store %arg8[%c0_20, %c0_21], %12 {strides = array<i32>} : memref<8x256xf32, #tpu.memory_space<vmem>>, vector<8x256xf32>,
    %c0_22 = arith.constant 0 : index
    %c0_23 = arith.constant 0 : index
    %23 = vector.load %arg9[%c0_22, %c0_23] : memref<8x256xf32, #tpu.memory_space<vmem>>, vector<8x256xf32>
    tpu.vector_store %arg9[%c0_22, %c0_23], %20 {strides = array<i32>} : memref<8x256xf32, #tpu.memory_space<vmem>>, vector<8x256xf32>,
    return
  }
  func.func @transform_0(%arg0: i32) -> (i32, i32, i32) {
    %c0_i32 = arith.constant 0 : i32
    %c0_i32_0 = arith.constant 0 : i32
    %c0_i32_1 = arith.constant 0 : i32
    return %arg0, %c0_i32, %c0_i32_0 : i32, i32, i32
  }
  func.func @transform_1(%arg0: i32) -> (i32, i32) {
    %c0_i32 = arith.constant 0 : i32
    %c0_i32_0 = arith.constant 0 : i32
    %c0_i32_1 = arith.constant 0 : i32
    return %c0_i32, %c0_i32_0 : i32, i32
  }
  func.func @transform_2(%arg0: i32) -> (i32, i32) {
    %c0_i32 = arith.constant 0 : i32
    %c0_i32_0 = arith.constant 0 : i32
    %c0_i32_1 = arith.constant 0 : i32
    return %c0_i32, %c0_i32_0 : i32, i32
  }
  func.func @transform_3(%arg0: i32) -> (i32, i32) {
    %c0_i32 = arith.constant 0 : i32
    %c0_i32_0 = arith.constant 0 : i32
    %c0_i32_1 = arith.constant 0 : i32
    return %c0_i32, %c0_i32_0 : i32, i32
  }
  func.func @transform_4(%arg0: i32) -> (i32, i32) {
    %c0_i32 = arith.constant 0 : i32
    %c0_i32_0 = arith.constant 0 : i32
    %c0_i32_1 = arith.constant 0 : i32
    return %c0_i32, %c0_i32_0 : i32, i32
  }
  func.func @transform_5(%arg0: i32) -> (i32, i32) {
    %c0_i32 = arith.constant 0 : i32
    %c0_i32_0 = arith.constant 0 : i32
    %c0_i32_1 = arith.constant 0 : i32
    return %c0_i32, %c0_i32_0 : i32, i32
  }
  func.func @transform_6(%arg0: i32) -> (i32, i32) {
    %c0_i32 = arith.constant 0 : i32
    %c0_i32_0 = arith.constant 0 : i32
    return %arg0, %c0_i32 : i32, i32
  }
  func.func @transform_7(%arg0: i32) -> (i32, i32) {
    %c0_i32 = arith.constant 0 : i32
    %c0_i32_0 = arith.constant 0 : i32
    return %arg0, %c0_i32 : i32, i32
  }
  func.func @transform_8(%arg0: i32) -> (i32, i32) {
    %c0_i32 = arith.constant 0 : i32
    %c0_i32_0 = arith.constant 0 : i32
    return %arg0, %c0_i32 : i32, i32
  }
}

</mosaic_0001>

<llo_original>
// kernel: tpu_custom_call.1
$region0: #{tpu_custom_call.1}
  #allocation0 [shape = 'u32[]', space=smem, size = 0x4, offset = 0x4, fixed_abs, tag = 'smem constant byte address 0x4 - core index']
  #allocation1 [shape = 'u32[144,128]{1,0:T(1,128)}', space=vmem, size = 0x12000, scoped, tag = 'internal scratch']
  %s0 = inlined_call_operand.hbm [shape: bf16[8,16,2048], index: 0, kind: input, shape index: {}]
  %s1 = inlined_call_operand.hbm [shape: bf16[2048,256], index: 1, kind: input, shape index: {}]
  %s2 = inlined_call_operand.hbm [shape: bf16[2048,256], index: 2, kind: input, shape index: {}]
  %s3 = inlined_call_operand.hbm [shape: f32[256,256], index: 3, kind: input, shape index: {}]
  %s4 = inlined_call_operand.hbm [shape: f32[256,256], index: 4, kind: input, shape index: {}]
  %s5 = inlined_call_operand.vmem [shape: f32[1,256], index: 5, kind: input, shape index: {}]
  %s6 = inlined_call_operand.hbm [shape: f32[8,256], index: 6, kind: output, shape index: {0}]
  %s7 = inlined_call_operand.hbm [shape: f32[8,256], index: 7, kind: output, shape index: {1}]
  %s8 = inlined_call_operand.hbm [shape: f32[8,256], index: 8, kind: output, shape index: {2}]
  %9 = xla_tuple %s6, %s7, %s8
  %s10 = sld [smem:[#allocation0]]
  $region70: #{tpu_custom_call.1} parent=0
    _
  %s12 = ssub.s32 1, %s10
  %s13 = scalar_select 0, %s12, %s10
  $region1: #{tpu_custom_call.1} parent=0
    #allocation2 [shape = 'u8[524288]{0}', space=vmem, size = 0x80000, scoped, tag = 'input window, operand 0, single buffered']
    #allocation3 [shape = 's32[1]{0}', space=sflag, size = 0x4, scoped, tag = 'scoped memory for tpu_custom_call.1']
    #allocation4 [shape = 's32[1]{0}', space=sflag, size = 0x4, scoped, tag = 'scoped memory for tpu_custom_call.1']
    #allocation5 [shape = 'u8[1048576]{0}', space=vmem, size = 0x100000, scoped, tag = 'input window, operand 1, single buffered']
    #allocation6 [shape = 's32[1]{0}', space=sflag, size = 0x4, scoped, tag = 'scoped memory for tpu_custom_call.1']
    #allocation7 [shape = 'u8[1048576]{0}', space=vmem, size = 0x100000, scoped, tag = 'input window, operand 2, single buffered']
    #allocation8 [shape = 'u8[262144]{0}', space=vmem, size = 0x40000, scoped, tag = 'input window, operand 3, single buffered']
    #allocation9 [shape = 's32[1]{0}', space=sflag, size = 0x4, scoped, tag = 'scoped memory for tpu_custom_call.1']
    #allocation10 [shape = 'u8[262144]{0}', space=vmem, size = 0x40000, scoped, tag = 'input window, operand 4, single buffered']
    #allocation11 [shape = 'u8[8192]{0}', space=vmem, size = 0x2000, scoped, tag = 'output window, operand 0, single buffered']
    #allocation12 [shape = 'u8[8192]{0}', space=vmem, size = 0x2000, scoped, tag = 'output window, operand 1, single buffered']
    #allocation13 [shape = 's32[1]{0}', space=sflag, size = 0x4, scoped, tag = 'scoped memory for tpu_custom_call.1']
    #allocation14 [shape = 'u8[8192]{0}', space=vmem, size = 0x2000, scoped, tag = 'output window, operand 2, single buffered']
    %14 = vsyncpa [#allocation3], 0
    %15 = vsyncpa [#allocation6], 0
    %16 = vsyncpa [#allocation9], 0
    %17 = vsyncpa [#allocation4], 0
    %18 = vsyncpa [#allocation13], 0
    // Predicated region
    $region2: #{tpu_custom_call.1} parent=1 // pred_check
      _
    $region3: #{tpu_custom_call.1} parent=1 // pred_check_branch
      %20 = sbr.rel (0) target = $region5
    $region4: #{tpu_custom_call.1} parent=1 // pred_region
      %s22 = ssub.s32 16384, 16384
      %23 = vsyncadd [#allocation3], %s22
      %s24 = sshll.u32 [#allocation2], 4
      %s25 = int_to_ptr.vmem [resolvable:$true] %s24
      %30 = dma.hbm_to_vmem [thread:$0]  %s0, 16384, %s25, [#allocation3], 1024, 1024, 64
    $region5: #{tpu_custom_call.1} parent=1 // pred_fallthru
      _
    // Predicated region
    $region6: #{tpu_custom_call.1} parent=1 // pred_check
      _
    $region7: #{tpu_custom_call.1} parent=1 // pred_check_branch
      %32 = sbr.rel (0) target = $region9
    $region8: #{tpu_custom_call.1} parent=1 // pred_region
      %s34 = ssub.s32 32768, 32768
      %35 = vsyncadd [#allocation6], %s34
      %s36 = sshll.u32 [#allocation5], 4
      %s37 = int_to_ptr.vmem [resolvable:$true] %s36
      %42 = dma.hbm_to_vmem [thread:$0]  %s1, 32768, %s37, [#allocation6], 128, 128, 8
    $region9: #{tpu_custom_call.1} parent=1 // pred_fallthru
      _
    // Predicated region
    $region10: #{tpu_custom_call.1} parent=1 // pred_check
      _
    $region11: #{tpu_custom_call.1} parent=1 // pred_check_branch
      %44 = sbr.rel (0) target = $region13
    $region12: #{tpu_custom_call.1} parent=1 // pred_region
      %s46 = ssub.s32 32768, 32768
      %47 = vsyncadd [#allocation6], %s46
      %s48 = sshll.u32 [#allocation7], 4
      %s49 = int_to_ptr.vmem [resolvable:$true] %s48
      %54 = dma.hbm_to_vmem [thread:$0]  %s2, 32768, %s49, [#allocation6], 128, 128, 8
    $region13: #{tpu_custom_call.1} parent=1 // pred_fallthru
      _
    // Predicated region
    $region14: #{tpu_custom_call.1} parent=1 // pred_check
      _
    $region15: #{tpu_custom_call.1} parent=1 // pred_check_branch
      %56 = sbr.rel (0) target = $region17
    $region16: #{tpu_custom_call.1} parent=1 // pred_region
      %s58 = ssub.s32 8192, 8192
      %59 = vsyncadd [#allocation9], %s58
      %s60 = sshll.u32 [#allocation8], 4
      %s61 = int_to_ptr.vmem [resolvable:$true] %s60
      %66 = dma.hbm_to_vmem [thread:$0]  %s3, 8192, %s61, [#allocation9], 256, 256, 16
    $region17: #{tpu_custom_call.1} parent=1 // pred_fallthru
      _
    // Predicated region
    $region18: #{tpu_custom_call.1} parent=1 // pred_check
      _
    $region19: #{tpu_custom_call.1} parent=1 // pred_check_branch
      %68 = sbr.rel (0) target = $region21
    $region20: #{tpu_custom_call.1} parent=1 // pred_region
      %s70 = ssub.s32 8192, 8192
      %71 = vsyncadd [#allocation9], %s70
      %s72 = sshll.u32 [#allocation10], 4
      %s73 = int_to_ptr.vmem [resolvable:$true] %s72
      %78 = dma.hbm_to_vmem [thread:$0]  %s4, 8192, %s73, [#allocation9], 256, 256, 16
    $region21: #{tpu_custom_call.1} parent=1 // pred_fallthru
      _
    // Predicated region
    $region22: #{tpu_custom_call.1} parent=1 // pred_check
      _
    $region23: #{tpu_custom_call.1} parent=1 // pred_check_branch
      %80 = sbr.rel (0) target = $region25
    $region24: #{tpu_custom_call.1} parent=1 // pred_region
      _
    $region25: #{tpu_custom_call.1} parent=1 // pred_fallthru
      _
    // Predicated region
    $region26: #{tpu_custom_call.1} parent=1 // pred_check
      _
    $region27: #{tpu_custom_call.1} parent=1 // pred_check_branch
      %82 = sbr.rel (0) target = $region29
    $region28: #{tpu_custom_call.1} parent=1 // pred_region
      %83 = dma.done [#allocation3], 16384
    $region29: #{tpu_custom_call.1} parent=1 // pred_fallthru
      _
    // Predicated region
    $region30: #{tpu_custom_call.1} parent=1 // pred_check
      _
    $region31: #{tpu_custom_call.1} parent=1 // pred_check_branch
      %85 = sbr.rel (0) target = $region33
    $region32: #{tpu_custom_call.1} parent=1 // pred_region
      %86 = dma.done [#allocation6], 32768
    $region33: #{tpu_custom_call.1} parent=1 // pred_fallthru
      _
    // Predicated region
    $region34: #{tpu_custom_call.1} parent=1 // pred_check
      _
    $region35: #{tpu_custom_call.1} parent=1 // pred_check_branch
      %88 = sbr.rel (0) target = $region37
    $region36: #{tpu_custom_call.1} parent=1 // pred_region
      %89 = dma.done [#allocation6], 32768
    $region37: #{tpu_custom_call.1} parent=1 // pred_fallthru
      _
    // Predicated region
    $region38: #{tpu_custom_call.1} parent=1 // pred_check
      _
    $region39: #{tpu_custom_call.1} parent=1 // pred_check_branch
      %91 = sbr.rel (0) target = $region41
    $region40: #{tpu_custom_call.1} parent=1 // pred_region
      %92 = dma.done [#allocation9], 8192
    $region41: #{tpu_custom_call.1} parent=1 // pred_fallthru
      _
    // Predicated region
    $region42: #{tpu_custom_call.1} parent=1 // pred_check
      _
    $region43: #{tpu_custom_call.1} parent=1 // pred_check_branch
      %94 = sbr.rel (0) target = $region45
    $region44: #{tpu_custom_call.1} parent=1 // pred_region
      %95 = dma.done [#allocation9], 8192
    $region45: #{tpu_custom_call.1} parent=1 // pred_fallthru
      _
    %v96 = vld [vmem:[#allocation2] sm:$0xff]
    %v97 = vld [vmem:[#allocation2 + $0x8] sm:$0xff]
    %v98 = vld [vmem:[#allocation2 + $0x10] sm:$0xff]
    %v99 = vld [vmem:[#allocation2 + $0x18] sm:$0xff]
    %v100 = vld [vmem:[#allocation2 + $0x20] sm:$0xff]
    %v101 = vld [vmem:[#allocation2 + $0x28] sm:$0xff]
    %v102 = vld [vmem:[#allocation2 + $0x30] sm:$0xff]
    %v103 = vld [vmem:[#allocation2 + $0x38] sm:$0xff]
    %v104 = vld [vmem:[#allocation2 + $0x40] sm:$0xff]
    %v105 = vld [vmem:[#allocation2 + $0x48] sm:$0xff]
    %v106 = vld [vmem:[#allocation2 + $0x50] sm:$0xff]
    %v107 = vld [vmem:[#allocation2 + $0x58] sm:$0xff]
    %v108 = vld [vmem:[#allocation2 + $0x60] sm:$0xff]
    %v109 = vld [vmem:[#allocation2 + $0x68] sm:$0xff]
    %v110 = vld [vmem:[#allocation2 + $0x70] sm:$0xff]
    %v111 = vld [vmem:[#allocation2 + $0x78] sm:$0xff]
    %v112 = vld [vmem:[#allocation2 + $0x80] sm:$0xff]
    %v113 = vld [vmem:[#allocation2 + $0x88] sm:$0xff]
    %v114 = vld [vmem:[#allocation2 + $0x90] sm:$0xff]
    %v115 = vld [vmem:[#allocation2 + $0x98] sm:$0xff]
    %v116 = vld [vmem:[#allocation2 + $0xa0] sm:$0xff]
    %v117 = vld [vmem:[#allocation2 + $0xa8] sm:$0xff]
    %v118 = vld [vmem:[#allocation2 + $0xb0] sm:$0xff]
    %v119 = vld [vmem:[#allocation2 + $0xb8] sm:$0xff]
    %v120 = vld [vmem:[#allocation2 + $0xc0] sm:$0xff]
    %v121 = vld [vmem:[#allocation2 + $0xc8] sm:$0xff]
    %v122 = vld [vmem:[#allocation2 + $0xd0] sm:$0xff]
    %v123 = vld [vmem:[#allocation2 + $0xd8] sm:$0xff]
    %v124 = vld [vmem:[#allocation2 + $0xe0] sm:$0xff]
    %v125 = vld [vmem:[#allocation2 + $0xe8] sm:$0xff]
    %v126 = vld [vmem:[#allocation2 + $0xf0] sm:$0xff]
    %v127 = vld [vmem:[#allocation2 + $0xf8] sm:$0xff]
    %v128 = vld [vmem:[#allocation2 + $0x100] sm:$0xff]
    %v129 = vld [vmem:[#allocation2 + $0x108] sm:$0xff]
    %v130 = vld [vmem:[#allocation2 + $0x110] sm:$0xff]
    %v131 = vld [vmem:[#allocation2 + $0x118] sm:$0xff]
    %v132 = vld [vmem:[#allocation2 + $0x120] sm:$0xff]
    %v133 = vld [vmem:[#allocation2 + $0x128] sm:$0xff]
    %v134 = vld [vmem:[#allocation2 + $0x130] sm:$0xff]
    %v135 = vld [vmem:[#allocation2 + $0x138] sm:$0xff]
    %v136 = vld [vmem:[#allocation2 + $0x140] sm:$0xff]
    %v137 = vld [vmem:[#allocation2 + $0x148] sm:$0xff]
    %v138 = vld [vmem:[#allocation2 + $0x150] sm:$0xff]
    %v139 = vld [vmem:[#allocation2 + $0x158] sm:$0xff]
    %v140 = vld [vmem:[#allocation2 + $0x160] sm:$0xff]
    %v141 = vld [vmem:[#allocation2 + $0x168] sm:$0xff]
    %v142 = vld [vmem:[#allocation2 + $0x170] sm:$0xff]
    %v143 = vld [vmem:[#allocation2 + $0x178] sm:$0xff]
    %v144 = vld [vmem:[#allocation2 + $0x180] sm:$0xff]
    %v145 = vld [vmem:[#allocation2 + $0x188] sm:$0xff]
    %v146 = vld [vmem:[#allocation2 + $0x190] sm:$0xff]
    %v147 = vld [vmem:[#allocation2 + $0x198] sm:$0xff]
    %v148 = vld [vmem:[#allocation2 + $0x1a0] sm:$0xff]
    %v149 = vld [vmem:[#allocation2 + $0x1a8] sm:$0xff]
    %v150 = vld [vmem:[#allocation2 + $0x1b0] sm:$0xff]
    %v151 = vld [vmem:[#allocation2 + $0x1b8] sm:$0xff]
    %v152 = vld [vmem:[#allocation2 + $0x1c0] sm:$0xff]
    %v153 = vld [vmem:[#allocation2 + $0x1c8] sm:$0xff]
    %v154 = vld [vmem:[#allocation2 + $0x1d0] sm:$0xff]
    %v155 = vld [vmem:[#allocation2 + $0x1d8] sm:$0xff]
    %v156 = vld [vmem:[#allocation2 + $0x1e0] sm:$0xff]
    %v157 = vld [vmem:[#allocation2 + $0x1e8] sm:$0xff]
    %v158 = vld [vmem:[#allocation2 + $0x1f0] sm:$0xff]
    %v159 = vld [vmem:[#allocation2 + $0x1f8] sm:$0xff]
    %v160 = vld [vmem:[#allocation2 + $0x200] sm:$0xff]
    %v161 = vld [vmem:[#allocation2 + $0x208] sm:$0xff]
    %v162 = vld [vmem:[#allocation2 + $0x210] sm:$0xff]
    %v163 = vld [vmem:[#allocation2 + $0x218] sm:$0xff]
    %v164 = vld [vmem:[#allocation2 + $0x220] sm:$0xff]
    %v165 = vld [vmem:[#allocation2 + $0x228] sm:$0xff]
    %v166 = vld [vmem:[#allocation2 + $0x230] sm:$0xff]
    %v167 = vld [vmem:[#allocation2 + $0x238] sm:$0xff]
    %v168 = vld [vmem:[#allocation2 + $0x240] sm:$0xff]
    %v169 = vld [vmem:[#allocation2 + $0x248] sm:$0xff]
    %v170 = vld [vmem:[#allocation2 + $0x250] sm:$0xff]
    %v171 = vld [vmem:[#allocation2 + $0x258] sm:$0xff]
    %v172 = vld [vmem:[#allocation2 + $0x260] sm:$0xff]
    %v173 = vld [vmem:[#allocation2 + $0x268] sm:$0xff]
    %v174 = vld [vmem:[#allocation2 + $0x270] sm:$0xff]
    %v175 = vld [vmem:[#allocation2 + $0x278] sm:$0xff]
    %v176 = vld [vmem:[#allocation2 + $0x280] sm:$0xff]
    %v177 = vld [vmem:[#allocation2 + $0x288] sm:$0xff]
    %v178 = vld [vmem:[#allocation2 + $0x290] sm:$0xff]
    %v179 = vld [vmem:[#allocation2 + $0x298] sm:$0xff]
    %v180 = vld [vmem:[#allocation2 + $0x2a0] sm:$0xff]
    %v181 = vld [vmem:[#allocation2 + $0x2a8] sm:$0xff]
    %v182 = vld [vmem:[#allocation2 + $0x2b0] sm:$0xff]
    %v183 = vld [vmem:[#allocation2 + $0x2b8] sm:$0xff]
    %v184 = vld [vmem:[#allocation2 + $0x2c0] sm:$0xff]
    %v185 = vld [vmem:[#allocation2 + $0x2c8] sm:$0xff]
    %v186 = vld [vmem:[#allocation2 + $0x2d0] sm:$0xff]
    %v187 = vld [vmem:[#allocation2 + $0x2d8] sm:$0xff]
    %v188 = vld [vmem:[#allocation2 + $0x2e0] sm:$0xff]
    %v189 = vld [vmem:[#allocation2 + $0x2e8] sm:$0xff]
    %v190 = vld [vmem:[#allocation2 + $0x2f0] sm:$0xff]
    %v191 = vld [vmem:[#allocation2 + $0x2f8] sm:$0xff]
    %v192 = vld [vmem:[#allocation2 + $0x300] sm:$0xff]
    %v193 = vld [vmem:[#allocation2 + $0x308] sm:$0xff]
    %v194 = vld [vmem:[#allocation2 + $0x310] sm:$0xff]
    %v195 = vld [vmem:[#allocation2 + $0x318] sm:$0xff]
    %v196 = vld [vmem:[#allocation2 + $0x320] sm:$0xff]
    %v197 = vld [vmem:[#allocation2 + $0x328] sm:$0xff]
    %v198 = vld [vmem:[#allocation2 + $0x330] sm:$0xff]
    %v199 = vld [vmem:[#allocation2 + $0x338] sm:$0xff]
    %v200 = vld [vmem:[#allocation2 + $0x340] sm:$0xff]
    %v201 = vld [vmem:[#allocation2 + $0x348] sm:$0xff]
    %v202 = vld [vmem:[#allocation2 + $0x350] sm:$0xff]
    %v203 = vld [vmem:[#allocation2 + $0x358] sm:$0xff]
    %v204 = vld [vmem:[#allocation2 + $0x360] sm:$0xff]
    %v205 = vld [vmem:[#allocation2 + $0x368] sm:$0xff]
    %v206 = vld [vmem:[#allocation2 + $0x370] sm:$0xff]
    %v207 = vld [vmem:[#allocation2 + $0x378] sm:$0xff]
    %v208 = vld [vmem:[#allocation2 + $0x380] sm:$0xff]
    %v209 = vld [vmem:[#allocation2 + $0x388] sm:$0xff]
    %v210 = vld [vmem:[#allocation2 + $0x390] sm:$0xff]
    %v211 = vld [vmem:[#allocation2 + $0x398] sm:$0xff]
    %v212 = vld [vmem:[#allocation2 + $0x3a0] sm:$0xff]
    %v213 = vld [vmem:[#allocation2 + $0x3a8] sm:$0xff]
    %v214 = vld [vmem:[#allocation2 + $0x3b0] sm:$0xff]
    %v215 = vld [vmem:[#allocation2 + $0x3b8] sm:$0xff]
    %v216 = vld [vmem:[#allocation2 + $0x3c0] sm:$0xff]
    %v217 = vld [vmem:[#allocation2 + $0x3c8] sm:$0xff]
    %v218 = vld [vmem:[#allocation2 + $0x3d0] sm:$0xff]
    %v219 = vld [vmem:[#allocation2 + $0x3d8] sm:$0xff]
    %v220 = vld [vmem:[#allocation2 + $0x3e0] sm:$0xff]
    %v221 = vld [vmem:[#allocation2 + $0x3e8] sm:$0xff]
    %v222 = vld [vmem:[#allocation2 + $0x3f0] sm:$0xff]
    %v223 = vld [vmem:[#allocation2 + $0x3f8] sm:$0xff]
    %v224 = vunpack.c.l.bf16 %v96
    %v225 = vunpack.c.h.bf16 %v96
    %v226 = vunpack.c.l.bf16 %v97
    %v227 = vunpack.c.h.bf16 %v97
    %v228 = vunpack.c.l.bf16 %v98
    %v229 = vunpack.c.h.bf16 %v98
    %v230 = vunpack.c.l.bf16 %v99
    %v231 = vunpack.c.h.bf16 %v99
    %v232 = vunpack.c.l.bf16 %v100
    %v233 = vunpack.c.h.bf16 %v100
    %v234 = vunpack.c.l.bf16 %v101
    %v235 = vunpack.c.h.bf16 %v101
    %v236 = vunpack.c.l.bf16 %v102
    %v237 = vunpack.c.h.bf16 %v102
    %v238 = vunpack.c.l.bf16 %v103
    %v239 = vunpack.c.h.bf16 %v103
    %v240 = vunpack.c.l.bf16 %v104
    %v241 = vunpack.c.h.bf16 %v104
    %v242 = vunpack.c.l.bf16 %v105
    %v243 = vunpack.c.h.bf16 %v105
    %v244 = vunpack.c.l.bf16 %v106
    %v245 = vunpack.c.h.bf16 %v106
    %v246 = vunpack.c.l.bf16 %v107
    %v247 = vunpack.c.h.bf16 %v107
    %v248 = vunpack.c.l.bf16 %v108
    %v249 = vunpack.c.h.bf16 %v108
    %v250 = vunpack.c.l.bf16 %v109
    %v251 = vunpack.c.h.bf16 %v109
    %v252 = vunpack.c.l.bf16 %v110
    %v253 = vunpack.c.h.bf16 %v110
    %v254 = vunpack.c.l.bf16 %v111
    %v255 = vunpack.c.h.bf16 %v111
    %v256 = vunpack.c.l.bf16 %v112
    %v257 = vunpack.c.h.bf16 %v112
    %v258 = vunpack.c.l.bf16 %v113
    %v259 = vunpack.c.h.bf16 %v113
    %v260 = vunpack.c.l.bf16 %v114
    %v261 = vunpack.c.h.bf16 %v114
    %v262 = vunpack.c.l.bf16 %v115
    %v263 = vunpack.c.h.bf16 %v115
    %v264 = vunpack.c.l.bf16 %v116
    %v265 = vunpack.c.h.bf16 %v116
    %v266 = vunpack.c.l.bf16 %v117
    %v267 = vunpack.c.h.bf16 %v117
    %v268 = vunpack.c.l.bf16 %v118
    %v269 = vunpack.c.h.bf16 %v118
    %v270 = vunpack.c.l.bf16 %v119
    %v271 = vunpack.c.h.bf16 %v119
    %v272 = vunpack.c.l.bf16 %v120
    %v273 = vunpack.c.h.bf16 %v120
    %v274 = vunpack.c.l.bf16 %v121
    %v275 = vunpack.c.h.bf16 %v121
    %v276 = vunpack.c.l.bf16 %v122
    %v277 = vunpack.c.h.bf16 %v122
    %v278 = vunpack.c.l.bf16 %v123
    %v279 = vunpack.c.h.bf16 %v123
    %v280 = vunpack.c.l.bf16 %v124
    %v281 = vunpack.c.h.bf16 %v124
    %v282 = vunpack.c.l.bf16 %v125
    %v283 = vunpack.c.h.bf16 %v125
    %v284 = vunpack.c.l.bf16 %v126
    %v285 = vunpack.c.h.bf16 %v126
    %v286 = vunpack.c.l.bf16 %v127
    %v287 = vunpack.c.h.bf16 %v127
    %v288 = vunpack.c.l.bf16 %v128
    %v289 = vunpack.c.h.bf16 %v128
    %v290 = vunpack.c.l.bf16 %v129
    %v291 = vunpack.c.h.bf16 %v129
    %v292 = vunpack.c.l.bf16 %v130
    %v293 = vunpack.c.h.bf16 %v130
    %v294 = vunpack.c.l.bf16 %v131
    %v295 = vunpack.c.h.bf16 %v131
    %v296 = vunpack.c.l.bf16 %v132
    %v297 = vunpack.c.h.bf16 %v132
    %v298 = vunpack.c.l.bf16 %v133
    %v299 = vunpack.c.h.bf16 %v133
    %v300 = vunpack.c.l.bf16 %v134
    %v301 = vunpack.c.h.bf16 %v134
    %v302 = vunpack.c.l.bf16 %v135
    %v303 = vunpack.c.h.bf16 %v135
    %v304 = vunpack.c.l.bf16 %v136
    %v305 = vunpack.c.h.bf16 %v136
    %v306 = vunpack.c.l.bf16 %v137
    %v307 = vunpack.c.h.bf16 %v137
    %v308 = vunpack.c.l.bf16 %v138
    %v309 = vunpack.c.h.bf16 %v138
    %v310 = vunpack.c.l.bf16 %v139
    %v311 = vunpack.c.h.bf16 %v139
    %v312 = vunpack.c.l.bf16 %v140
    %v313 = vunpack.c.h.bf16 %v140
    %v314 = vunpack.c.l.bf16 %v141
    %v315 = vunpack.c.h.bf16 %v141
    %v316 = vunpack.c.l.bf16 %v142
    %v317 = vunpack.c.h.bf16 %v142
    %v318 = vunpack.c.l.bf16 %v143
    %v319 = vunpack.c.h.bf16 %v143
    %v320 = vunpack.c.l.bf16 %v144
    %v321 = vunpack.c.h.bf16 %v144
    %v322 = vunpack.c.l.bf16 %v145
    %v323 = vunpack.c.h.bf16 %v145
    %v324 = vunpack.c.l.bf16 %v146
    %v325 = vunpack.c.h.bf16 %v146
    %v326 = vunpack.c.l.bf16 %v147
    %v327 = vunpack.c.h.bf16 %v147
    %v328 = vunpack.c.l.bf16 %v148
    %v329 = vunpack.c.h.bf16 %v148
    %v330 = vunpack.c.l.bf16 %v149
    %v331 = vunpack.c.h.bf16 %v149
    %v332 = vunpack.c.l.bf16 %v150
    %v333 = vunpack.c.h.bf16 %v150
    %v334 = vunpack.c.l.bf16 %v151
    %v335 = vunpack.c.h.bf16 %v151
    %v336 = vunpack.c.l.bf16 %v152
    %v337 = vunpack.c.h.bf16 %v152
    %v338 = vunpack.c.l.bf16 %v153
    %v339 = vunpack.c.h.bf16 %v153
    %v340 = vunpack.c.l.bf16 %v154
    %v341 = vunpack.c.h.bf16 %v154
    %v342 = vunpack.c.l.bf16 %v155
    %v343 = vunpack.c.h.bf16 %v155
    %v344 = vunpack.c.l.bf16 %v156
    %v345 = vunpack.c.h.bf16 %v156
    %v346 = vunpack.c.l.bf16 %v157
    %v347 = vunpack.c.h.bf16 %v157
    %v348 = vunpack.c.l.bf16 %v158
    %v349 = vunpack.c.h.bf16 %v158
    %v350 = vunpack.c.l.bf16 %v159
    %v351 = vunpack.c.h.bf16 %v159
    %v352 = vunpack.c.l.bf16 %v160
    %v353 = vunpack.c.h.bf16 %v160
    %v354 = vunpack.c.l.bf16 %v161
    %v355 = vunpack.c.h.bf16 %v161
    %v356 = vunpack.c.l.bf16 %v162
    %v357 = vunpack.c.h.bf16 %v162
    %v358 = vunpack.c.l.bf16 %v163
    %v359 = vunpack.c.h.bf16 %v163
    %v360 = vunpack.c.l.bf16 %v164
    %v361 = vunpack.c.h.bf16 %v164
    %v362 = vunpack.c.l.bf16 %v165
    %v363 = vunpack.c.h.bf16 %v165
    %v364 = vunpack.c.l.bf16 %v166
    %v365 = vunpack.c.h.bf16 %v166
    %v366 = vunpack.c.l.bf16 %v167
    %v367 = vunpack.c.h.bf16 %v167
    %v368 = vunpack.c.l.bf16 %v168
    %v369 = vunpack.c.h.bf16 %v168
    %v370 = vunpack.c.l.bf16 %v169
    %v371 = vunpack.c.h.bf16 %v169
    %v372 = vunpack.c.l.bf16 %v170
    %v373 = vunpack.c.h.bf16 %v170
    %v374 = vunpack.c.l.bf16 %v171
    %v375 = vunpack.c.h.bf16 %v171
    %v376 = vunpack.c.l.bf16 %v172
    %v377 = vunpack.c.h.bf16 %v172
    %v378 = vunpack.c.l.bf16 %v173
    %v379 = vunpack.c.h.bf16 %v173
    %v380 = vunpack.c.l.bf16 %v174
    %v381 = vunpack.c.h.bf16 %v174
    %v382 = vunpack.c.l.bf16 %v175
    %v383 = vunpack.c.h.bf16 %v175
    %v384 = vunpack.c.l.bf16 %v176
    %v385 = vunpack.c.h.bf16 %v176
    %v386 = vunpack.c.l.bf16 %v177
    %v387 = vunpack.c.h.bf16 %v177
    %v388 = vunpack.c.l.bf16 %v178
    %v389 = vunpack.c.h.bf16 %v178
    %v390 = vunpack.c.l.bf16 %v179
    %v391 = vunpack.c.h.bf16 %v179
    %v392 = vunpack.c.l.bf16 %v180
    %v393 = vunpack.c.h.bf16 %v180
    %v394 = vunpack.c.l.bf16 %v181
    %v395 = vunpack.c.h.bf16 %v181
    %v396 = vunpack.c.l.bf16 %v182
    %v397 = vunpack.c.h.bf16 %v182
    %v398 = vunpack.c.l.bf16 %v183
    %v399 = vunpack.c.h.bf16 %v183
    %v400 = vunpack.c.l.bf16 %v184
    %v401 = vunpack.c.h.bf16 %v184
    %v402 = vunpack.c.l.bf16 %v185
    %v403 = vunpack.c.h.bf16 %v185
    %v404 = vunpack.c.l.bf16 %v186
    %v405 = vunpack.c.h.bf16 %v186
    %v406 = vunpack.c.l.bf16 %v187
    %v407 = vunpack.c.h.bf16 %v187
    %v408 = vunpack.c.l.bf16 %v188
    %v409 = vunpack.c.h.bf16 %v188
    %v410 = vunpack.c.l.bf16 %v189
    %v411 = vunpack.c.h.bf16 %v189
    %v412 = vunpack.c.l.bf16 %v190
    %v413 = vunpack.c.h.bf16 %v190
    %v414 = vunpack.c.l.bf16 %v191
    %v415 = vunpack.c.h.bf16 %v191
    %v416 = vunpack.c.l.bf16 %v192
    %v417 = vunpack.c.h.bf16 %v192
    %v418 = vunpack.c.l.bf16 %v193
    %v419 = vunpack.c.h.bf16 %v193
    %v420 = vunpack.c.l.bf16 %v194
    %v421 = vunpack.c.h.bf16 %v194
    %v422 = vunpack.c.l.bf16 %v195
    %v423 = vunpack.c.h.bf16 %v195
    %v424 = vunpack.c.l.bf16 %v196
    %v425 = vunpack.c.h.bf16 %v196
    %v426 = vunpack.c.l.bf16 %v197
    %v427 = vunpack.c.h.bf16 %v197
    %v428 = vunpack.c.l.bf16 %v198
    %v429 = vunpack.c.h.bf16 %v198
    %v430 = vunpack.c.l.bf16 %v199
    %v431 = vunpack.c.h.bf16 %v199
    %v432 = vunpack.c.l.bf16 %v200
    %v433 = vunpack.c.h.bf16 %v200
    %v434 = vunpack.c.l.bf16 %v201
    %v435 = vunpack.c.h.bf16 %v201
    %v436 = vunpack.c.l.bf16 %v202
    %v437 = vunpack.c.h.bf16 %v202
    %v438 = vunpack.c.l.bf16 %v203
    %v439 = vunpack.c.h.bf16 %v203
    %v440 = vunpack.c.l.bf16 %v204
    %v441 = vunpack.c.h.bf16 %v204
    %v442 = vunpack.c.l.bf16 %v205
    %v443 = vunpack.c.h.bf16 %v205
    %v444 = vunpack.c.l.bf16 %v206
    %v445 = vunpack.c.h.bf16 %v206
    %v446 = vunpack.c.l.bf16 %v207
    %v447 = vunpack.c.h.bf16 %v207
    %v448 = vunpack.c.l.bf16 %v208
    %v449 = vunpack.c.h.bf16 %v208
    %v450 = vunpack.c.l.bf16 %v209
    %v451 = vunpack.c.h.bf16 %v209
    %v452 = vunpack.c.l.bf16 %v210
    %v453 = vunpack.c.h.bf16 %v210
    %v454 = vunpack.c.l.bf16 %v211
    %v455 = vunpack.c.h.bf16 %v211
    %v456 = vunpack.c.l.bf16 %v212
    %v457 = vunpack.c.h.bf16 %v212
    %v458 = vunpack.c.l.bf16 %v213
    %v459 = vunpack.c.h.bf16 %v213
    %v460 = vunpack.c.l.bf16 %v214
    %v461 = vunpack.c.h.bf16 %v214
    %v462 = vunpack.c.l.bf16 %v215
    %v463 = vunpack.c.h.bf16 %v215
    %v464 = vunpack.c.l.bf16 %v216
    %v465 = vunpack.c.h.bf16 %v216
    %v466 = vunpack.c.l.bf16 %v217
    %v467 = vunpack.c.h.bf16 %v217
    %v468 = vunpack.c.l.bf16 %v218
    %v469 = vunpack.c.h.bf16 %v218
    %v470 = vunpack.c.l.bf16 %v219
    %v471 = vunpack.c.h.bf16 %v219
    %v472 = vunpack.c.l.bf16 %v220
    %v473 = vunpack.c.h.bf16 %v220
    %v474 = vunpack.c.l.bf16 %v221
    %v475 = vunpack.c.h.bf16 %v221
    %v476 = vunpack.c.l.bf16 %v222
    %v477 = vunpack.c.h.bf16 %v222
    %v478 = vunpack.c.l.bf16 %v223
    %v479 = vunpack.c.h.bf16 %v223
    %v480 = vadd.f32 %v224, %v240
    %v481 = vrot.slane %v480, 4
    %v482 = vadd.f32 %v480, %v481
    %v483 = vrot.slane %v482, 2
    %v484 = vadd.f32 %v482, %v483
    %v485 = vrot.slane %v484, 1
    %v486 = vadd.f32 %v484, %v485
    %v487 = vadd.f32 %v225, %v241
    %v488 = vrot.slane %v487, 4
    %v489 = vadd.f32 %v487, %v488
    %v490 = vrot.slane %v489, 2
    %v491 = vadd.f32 %v489, %v490
    %v492 = vrot.slane %v491, 1
    %v493 = vadd.f32 %v491, %v492
    %v494 = vadd.f32 %v226, %v242
    %v495 = vrot.slane %v494, 4
    %v496 = vadd.f32 %v494, %v495
    %v497 = vrot.slane %v496, 2
    %v498 = vadd.f32 %v496, %v497
    %v499 = vrot.slane %v498, 1
    %v500 = vadd.f32 %v498, %v499
    %v501 = vadd.f32 %v227, %v243
    %v502 = vrot.slane %v501, 4
    %v503 = vadd.f32 %v501, %v502
    %v504 = vrot.slane %v503, 2
    %v505 = vadd.f32 %v503, %v504
    %v506 = vrot.slane %v505, 1
    %v507 = vadd.f32 %v505, %v506
    %v508 = vadd.f32 %v228, %v244
    %v509 = vrot.slane %v508, 4
    %v510 = vadd.f32 %v508, %v509
    %v511 = vrot.slane %v510, 2
    %v512 = vadd.f32 %v510, %v511
    %v513 = vrot.slane %v512, 1
    %v514 = vadd.f32 %v512, %v513
    %v515 = vadd.f32 %v229, %v245
    %v516 = vrot.slane %v515, 4
    %v517 = vadd.f32 %v515, %v516
    %v518 = vrot.slane %v517, 2
    %v519 = vadd.f32 %v517, %v518
    %v520 = vrot.slane %v519, 1
    %v521 = vadd.f32 %v519, %v520
    %v522 = vadd.f32 %v230, %v246
    %v523 = vrot.slane %v522, 4
    %v524 = vadd.f32 %v522, %v523
    %v525 = vrot.slane %v524, 2
    %v526 = vadd.f32 %v524, %v525
    %v527 = vrot.slane %v526, 1
    %v528 = vadd.f32 %v526, %v527
    %v529 = vadd.f32 %v231, %v247
    %v530 = vrot.slane %v529, 4
    %v531 = vadd.f32 %v529, %v530
    %v532 = vrot.slane %v531, 2
    %v533 = vadd.f32 %v531, %v532
    %v534 = vrot.slane %v533, 1
    %v535 = vadd.f32 %v533, %v534
    %v536 = vadd.f32 %v232, %v248
    %v537 = vrot.slane %v536, 4
    %v538 = vadd.f32 %v536, %v537
    %v539 = vrot.slane %v538, 2
    %v540 = vadd.f32 %v538, %v539
    %v541 = vrot.slane %v540, 1
    %v542 = vadd.f32 %v540, %v541
    %v543 = vadd.f32 %v233, %v249
    %v544 = vrot.slane %v543, 4
    %v545 = vadd.f32 %v543, %v544
    %v546 = vrot.slane %v545, 2
    %v547 = vadd.f32 %v545, %v546
    %v548 = vrot.slane %v547, 1
    %v549 = vadd.f32 %v547, %v548
    %v550 = vadd.f32 %v234, %v250
    %v551 = vrot.slane %v550, 4
    %v552 = vadd.f32 %v550, %v551
    %v553 = vrot.slane %v552, 2
    %v554 = vadd.f32 %v552, %v553
    %v555 = vrot.slane %v554, 1
    %v556 = vadd.f32 %v554, %v555
    %v557 = vadd.f32 %v235, %v251
    %v558 = vrot.slane %v557, 4
    %v559 = vadd.f32 %v557, %v558
    %v560 = vrot.slane %v559, 2
    %v561 = vadd.f32 %v559, %v560
    %v562 = vrot.slane %v561, 1
    %v563 = vadd.f32 %v561, %v562
    %v564 = vadd.f32 %v236, %v252
    %v565 = vrot.slane %v564, 4
    %v566 = vadd.f32 %v564, %v565
    %v567 = vrot.slane %v566, 2
    %v568 = vadd.f32 %v566, %v567
    %v569 = vrot.slane %v568, 1
    %v570 = vadd.f32 %v568, %v569
    %v571 = vadd.f32 %v237, %v253
    %v572 = vrot.slane %v571, 4
    %v573 = vadd.f32 %v571, %v572
    %v574 = vrot.slane %v573, 2
    %v575 = vadd.f32 %v573, %v574
    %v576 = vrot.slane %v575, 1
    %v577 = vadd.f32 %v575, %v576
    %v578 = vadd.f32 %v238, %v254
    %v579 = vrot.slane %v578, 4
    %v580 = vadd.f32 %v578, %v579
    %v581 = vrot.slane %v580, 2
    %v582 = vadd.f32 %v580, %v581
    %v583 = vrot.slane %v582, 1
    %v584 = vadd.f32 %v582, %v583
    %v585 = vadd.f32 %v239, %v255
    %v586 = vrot.slane %v585, 4
    %v587 = vadd.f32 %v585, %v586
    %v588 = vrot.slane %v587, 2
    %v589 = vadd.f32 %v587, %v588
    %v590 = vrot.slane %v589, 1
    %v591 = vadd.f32 %v589, %v590
    %v592 = vadd.f32 %v256, %v272
    %v593 = vrot.slane %v592, 4
    %v594 = vadd.f32 %v592, %v593
    %v595 = vrot.slane %v594, 2
    %v596 = vadd.f32 %v594, %v595
    %v597 = vrot.slane %v596, 1
    %v598 = vadd.f32 %v596, %v597
    %v599 = vadd.f32 %v257, %v273
    %v600 = vrot.slane %v599, 4
    %v601 = vadd.f32 %v599, %v600
    %v602 = vrot.slane %v601, 2
    %v603 = vadd.f32 %v601, %v602
    %v604 = vrot.slane %v603, 1
    %v605 = vadd.f32 %v603, %v604
    %v606 = vadd.f32 %v258, %v274
    %v607 = vrot.slane %v606, 4
    %v608 = vadd.f32 %v606, %v607
    %v609 = vrot.slane %v608, 2
    %v610 = vadd.f32 %v608, %v609
    %v611 = vrot.slane %v610, 1
    %v612 = vadd.f32 %v610, %v611
    %v613 = vadd.f32 %v259, %v275
    %v614 = vrot.slane %v613, 4
    %v615 = vadd.f32 %v613, %v614
    %v616 = vrot.slane %v615, 2
    %v617 = vadd.f32 %v615, %v616
    %v618 = vrot.slane %v617, 1
    %v619 = vadd.f32 %v617, %v618
    %v620 = vadd.f32 %v260, %v276
    %v621 = vrot.slane %v620, 4
    %v622 = vadd.f32 %v620, %v621
    %v623 = vrot.slane %v622, 2
    %v624 = vadd.f32 %v622, %v623
    %v625 = vrot.slane %v624, 1
    %v626 = vadd.f32 %v624, %v625
    %v627 = vadd.f32 %v261, %v277
    %v628 = vrot.slane %v627, 4
    %v629 = vadd.f32 %v627, %v628
    %v630 = vrot.slane %v629, 2
    %v631 = vadd.f32 %v629, %v630
    %v632 = vrot.slane %v631, 1
    %v633 = vadd.f32 %v631, %v632
    %v634 = vadd.f32 %v262, %v278
    %v635 = vrot.slane %v634, 4
    %v636 = vadd.f32 %v634, %v635
    %v637 = vrot.slane %v636, 2
    %v638 = vadd.f32 %v636, %v637
    %v639 = vrot.slane %v638, 1
    %v640 = vadd.f32 %v638, %v639
    %v641 = vadd.f32 %v263, %v279
    %v642 = vrot.slane %v641, 4
    %v643 = vadd.f32 %v641, %v642
    %v644 = vrot.slane %v643, 2
    %v645 = vadd.f32 %v643, %v644
    %v646 = vrot.slane %v645, 1
    %v647 = vadd.f32 %v645, %v646
    %v648 = vadd.f32 %v264, %v280
    %v649 = vrot.slane %v648, 4
    %v650 = vadd.f32 %v648, %v649
    %v651 = vrot.slane %v650, 2
    %v652 = vadd.f32 %v650, %v651
    %v653 = vrot.slane %v652, 1
    %v654 = vadd.f32 %v652, %v653
    %v655 = vadd.f32 %v265, %v281
    %v656 = vrot.slane %v655, 4
    %v657 = vadd.f32 %v655, %v656
    %v658 = vrot.slane %v657, 2
    %v659 = vadd.f32 %v657, %v658
    %v660 = vrot.slane %v659, 1
    %v661 = vadd.f32 %v659, %v660
    %v662 = vadd.f32 %v266, %v282
    %v663 = vrot.slane %v662, 4
    %v664 = vadd.f32 %v662, %v663
    %v665 = vrot.slane %v664, 2
    %v666 = vadd.f32 %v664, %v665
    %v667 = vrot.slane %v666, 1
    %v668 = vadd.f32 %v666, %v667
    %v669 = vadd.f32 %v267, %v283
    %v670 = vrot.slane %v669, 4
    %v671 = vadd.f32 %v669, %v670
    %v672 = vrot.slane %v671, 2
    %v673 = vadd.f32 %v671, %v672
    %v674 = vrot.slane %v673, 1
    %v675 = vadd.f32 %v673, %v674
    %v676 = vadd.f32 %v268, %v284
    %v677 = vrot.slane %v676, 4
    %v678 = vadd.f32 %v676, %v677
    %v679 = vrot.slane %v678, 2
    %v680 = vadd.f32 %v678, %v679
    %v681 = vrot.slane %v680, 1
    %v682 = vadd.f32 %v680, %v681
    %v683 = vadd.f32 %v269, %v285
    %v684 = vrot.slane %v683, 4
    %v685 = vadd.f32 %v683, %v684
    %v686 = vrot.slane %v685, 2
    %v687 = vadd.f32 %v685, %v686
    %v688 = vrot.slane %v687, 1
    %v689 = vadd.f32 %v687, %v688
    %v690 = vadd.f32 %v270, %v286
    %v691 = vrot.slane %v690, 4
    %v692 = vadd.f32 %v690, %v691
    %v693 = vrot.slane %v692, 2
    %v694 = vadd.f32 %v692, %v693
    %v695 = vrot.slane %v694, 1
    %v696 = vadd.f32 %v694, %v695
    %v697 = vadd.f32 %v271, %v287
    %v698 = vrot.slane %v697, 4
    %v699 = vadd.f32 %v697, %v698
    %v700 = vrot.slane %v699, 2
    %v701 = vadd.f32 %v699, %v700
    %v702 = vrot.slane %v701, 1
    %v703 = vadd.f32 %v701, %v702
    %v704 = vadd.f32 %v288, %v304
    %v705 = vrot.slane %v704, 4
    %v706 = vadd.f32 %v704, %v705
    %v707 = vrot.slane %v706, 2
    %v708 = vadd.f32 %v706, %v707
    %v709 = vrot.slane %v708, 1
    %v710 = vadd.f32 %v708, %v709
    %v711 = vadd.f32 %v289, %v305
    %v712 = vrot.slane %v711, 4
    %v713 = vadd.f32 %v711, %v712
    %v714 = vrot.slane %v713, 2
    %v715 = vadd.f32 %v713, %v714
    %v716 = vrot.slane %v715, 1
    %v717 = vadd.f32 %v715, %v716
    %v718 = vadd.f32 %v290, %v306
    %v719 = vrot.slane %v718, 4
    %v720 = vadd.f32 %v718, %v719
    %v721 = vrot.slane %v720, 2
    %v722 = vadd.f32 %v720, %v721
    %v723 = vrot.slane %v722, 1
    %v724 = vadd.f32 %v722, %v723
    %v725 = vadd.f32 %v291, %v307
    %v726 = vrot.slane %v725, 4
    %v727 = vadd.f32 %v725, %v726
    %v728 = vrot.slane %v727, 2
    %v729 = vadd.f32 %v727, %v728
    %v730 = vrot.slane %v729, 1
    %v731 = vadd.f32 %v729, %v730
    %v732 = vadd.f32 %v292, %v308
    %v733 = vrot.slane %v732, 4
    %v734 = vadd.f32 %v732, %v733
    %v735 = vrot.slane %v734, 2
    %v736 = vadd.f32 %v734, %v735
    %v737 = vrot.slane %v736, 1
    %v738 = vadd.f32 %v736, %v737
    %v739 = vadd.f32 %v293, %v309
    %v740 = vrot.slane %v739, 4
    %v741 = vadd.f32 %v739, %v740
    %v742 = vrot.slane %v741, 2
    %v743 = vadd.f32 %v741, %v742
    %v744 = vrot.slane %v743, 1
    %v745 = vadd.f32 %v743, %v744
    %v746 = vadd.f32 %v294, %v310
    %v747 = vrot.slane %v746, 4
    %v748 = vadd.f32 %v746, %v747
    %v749 = vrot.slane %v748, 2
    %v750 = vadd.f32 %v748, %v749
    %v751 = vrot.slane %v750, 1
    %v752 = vadd.f32 %v750, %v751
    %v753 = vadd.f32 %v295, %v311
    %v754 = vrot.slane %v753, 4
    %v755 = vadd.f32 %v753, %v754
    %v756 = vrot.slane %v755, 2
    %v757 = vadd.f32 %v755, %v756
    %v758 = vrot.slane %v757, 1
    %v759 = vadd.f32 %v757, %v758
    %v760 = vadd.f32 %v296, %v312
    %v761 = vrot.slane %v760, 4
    %v762 = vadd.f32 %v760, %v761
    %v763 = vrot.slane %v762, 2
    %v764 = vadd.f32 %v762, %v763
    %v765 = vrot.slane %v764, 1
    %v766 = vadd.f32 %v764, %v765
    %v767 = vadd.f32 %v297, %v313
    %v768 = vrot.slane %v767, 4
    %v769 = vadd.f32 %v767, %v768
    %v770 = vrot.slane %v769, 2
    %v771 = vadd.f32 %v769, %v770
    %v772 = vrot.slane %v771, 1
    %v773 = vadd.f32 %v771, %v772
    %v774 = vadd.f32 %v298, %v314
    %v775 = vrot.slane %v774, 4
    %v776 = vadd.f32 %v774, %v775
    %v777 = vrot.slane %v776, 2
    %v778 = vadd.f32 %v776, %v777
    %v779 = vrot.slane %v778, 1
    %v780 = vadd.f32 %v778, %v779
    %v781 = vadd.f32 %v299, %v315
    %v782 = vrot.slane %v781, 4
    %v783 = vadd.f32 %v781, %v782
    %v784 = vrot.slane %v783, 2
    %v785 = vadd.f32 %v783, %v784
    %v786 = vrot.slane %v785, 1
    %v787 = vadd.f32 %v785, %v786
    %v788 = vadd.f32 %v300, %v316
    %v789 = vrot.slane %v788, 4
    %v790 = vadd.f32 %v788, %v789
    %v791 = vrot.slane %v790, 2
    %v792 = vadd.f32 %v790, %v791
    %v793 = vrot.slane %v792, 1
    %v794 = vadd.f32 %v792, %v793
    %v795 = vadd.f32 %v301, %v317
    %v796 = vrot.slane %v795, 4
    %v797 = vadd.f32 %v795, %v796
    %v798 = vrot.slane %v797, 2
    %v799 = vadd.f32 %v797, %v798
    %v800 = vrot.slane %v799, 1
    %v801 = vadd.f32 %v799, %v800
    %v802 = vadd.f32 %v302, %v318
    %v803 = vrot.slane %v802, 4
    %v804 = vadd.f32 %v802, %v803
    %v805 = vrot.slane %v804, 2
    %v806 = vadd.f32 %v804, %v805
    %v807 = vrot.slane %v806, 1
    %v808 = vadd.f32 %v806, %v807
    %v809 = vadd.f32 %v303, %v319
    %v810 = vrot.slane %v809, 4
    %v811 = vadd.f32 %v809, %v810
    %v812 = vrot.slane %v811, 2
    %v813 = vadd.f32 %v811, %v812
    %v814 = vrot.slane %v813, 1
    %v815 = vadd.f32 %v813, %v814
    %v816 = vadd.f32 %v320, %v336
    %v817 = vrot.slane %v816, 4
    %v818 = vadd.f32 %v816, %v817
    %v819 = vrot.slane %v818, 2
    %v820 = vadd.f32 %v818, %v819
    %v821 = vrot.slane %v820, 1
    %v822 = vadd.f32 %v820, %v821
    %v823 = vadd.f32 %v321, %v337
    %v824 = vrot.slane %v823, 4
    %v825 = vadd.f32 %v823, %v824
    %v826 = vrot.slane %v825, 2
    %v827 = vadd.f32 %v825, %v826
    %v828 = vrot.slane %v827, 1
    %v829 = vadd.f32 %v827, %v828
    %v830 = vadd.f32 %v322, %v338
    %v831 = vrot.slane %v830, 4
    %v832 = vadd.f32 %v830, %v831
    %v833 = vrot.slane %v832, 2
    %v834 = vadd.f32 %v832, %v833
    %v835 = vrot.slane %v834, 1
    %v836 = vadd.f32 %v834, %v835
    %v837 = vadd.f32 %v323, %v339
    %v838 = vrot.slane %v837, 4
    %v839 = vadd.f32 %v837, %v838
    %v840 = vrot.slane %v839, 2
    %v841 = vadd.f32 %v839, %v840
    %v842 = vrot.slane %v841, 1
    %v843 = vadd.f32 %v841, %v842
    %v844 = vadd.f32 %v324, %v340
    %v845 = vrot.slane %v844, 4
    %v846 = vadd.f32 %v844, %v845
    %v847 = vrot.slane %v846, 2
    %v848 = vadd.f32 %v846, %v847
    %v849 = vrot.slane %v848, 1
    %v850 = vadd.f32 %v848, %v849
    %v851 = vadd.f32 %v325, %v341
    %v852 = vrot.slane %v851, 4
    %v853 = vadd.f32 %v851, %v852
    %v854 = vrot.slane %v853, 2
    %v855 = vadd.f32 %v853, %v854
    %v856 = vrot.slane %v855, 1
    %v857 = vadd.f32 %v855, %v856
    %v858 = vadd.f32 %v326, %v342
    %v859 = vrot.slane %v858, 4
    %v860 = vadd.f32 %v858, %v859
    %v861 = vrot.slane %v860, 2
    %v862 = vadd.f32 %v860, %v861
    %v863 = vrot.slane %v862, 1
    %v864 = vadd.f32 %v862, %v863
    %v865 = vadd.f32 %v327, %v343
    %v866 = vrot.slane %v865, 4
    %v867 = vadd.f32 %v865, %v866
    %v868 = vrot.slane %v867, 2
    %v869 = vadd.f32 %v867, %v868
    %v870 = vrot.slane %v869, 1
    %v871 = vadd.f32 %v869, %v870
    %v872 = vadd.f32 %v328, %v344
    %v873 = vrot.slane %v872, 4
    %v874 = vadd.f32 %v872, %v873
    %v875 = vrot.slane %v874, 2
    %v876 = vadd.f32 %v874, %v875
    %v877 = vrot.slane %v876, 1
    %v878 = vadd.f32 %v876, %v877
    %v879 = vadd.f32 %v329, %v345
    %v880 = vrot.slane %v879, 4
    %v881 = vadd.f32 %v879, %v880
    %v882 = vrot.slane %v881, 2
    %v883 = vadd.f32 %v881, %v882
    %v884 = vrot.slane %v883, 1
    %v885 = vadd.f32 %v883, %v884
    %v886 = vadd.f32 %v330, %v346
    %v887 = vrot.slane %v886, 4
    %v888 = vadd.f32 %v886, %v887
    %v889 = vrot.slane %v888, 2
    %v890 = vadd.f32 %v888, %v889
    %v891 = vrot.slane %v890, 1
    %v892 = vadd.f32 %v890, %v891
    %v893 = vadd.f32 %v331, %v347
    %v894 = vrot.slane %v893, 4
    %v895 = vadd.f32 %v893, %v894
    %v896 = vrot.slane %v895, 2
    %v897 = vadd.f32 %v895, %v896
    %v898 = vrot.slane %v897, 1
    %v899 = vadd.f32 %v897, %v898
    %v900 = vadd.f32 %v332, %v348
    %v901 = vrot.slane %v900, 4
    %v902 = vadd.f32 %v900, %v901
    %v903 = vrot.slane %v902, 2
    %v904 = vadd.f32 %v902, %v903
    %v905 = vrot.slane %v904, 1
    %v906 = vadd.f32 %v904, %v905
    %v907 = vadd.f32 %v333, %v349
    %v908 = vrot.slane %v907, 4
    %v909 = vadd.f32 %v907, %v908
    %v910 = vrot.slane %v909, 2
    %v911 = vadd.f32 %v909, %v910
    %v912 = vrot.slane %v911, 1
    %v913 = vadd.f32 %v911, %v912
    %v914 = vadd.f32 %v334, %v350
    %v915 = vrot.slane %v914, 4
    %v916 = vadd.f32 %v914, %v915
    %v917 = vrot.slane %v916, 2
    %v918 = vadd.f32 %v916, %v917
    %v919 = vrot.slane %v918, 1
    %v920 = vadd.f32 %v918, %v919
    %v921 = vadd.f32 %v335, %v351
    %v922 = vrot.slane %v921, 4
    %v923 = vadd.f32 %v921, %v922
    %v924 = vrot.slane %v923, 2
    %v925 = vadd.f32 %v923, %v924
    %v926 = vrot.slane %v925, 1
    %v927 = vadd.f32 %v925, %v926
    %v928 = vadd.f32 %v352, %v368
    %v929 = vrot.slane %v928, 4
    %v930 = vadd.f32 %v928, %v929
    %v931 = vrot.slane %v930, 2
    %v932 = vadd.f32 %v930, %v931
    %v933 = vrot.slane %v932, 1
    %v934 = vadd.f32 %v932, %v933
    %v935 = vadd.f32 %v353, %v369
    %v936 = vrot.slane %v935, 4
    %v937 = vadd.f32 %v935, %v936
    %v938 = vrot.slane %v937, 2
    %v939 = vadd.f32 %v937, %v938
    %v940 = vrot.slane %v939, 1
    %v941 = vadd.f32 %v939, %v940
    %v942 = vadd.f32 %v354, %v370
    %v943 = vrot.slane %v942, 4
    %v944 = vadd.f32 %v942, %v943
    %v945 = vrot.slane %v944, 2
    %v946 = vadd.f32 %v944, %v945
    %v947 = vrot.slane %v946, 1
    %v948 = vadd.f32 %v946, %v947
    %v949 = vadd.f32 %v355, %v371
    %v950 = vrot.slane %v949, 4
    %v951 = vadd.f32 %v949, %v950
    %v952 = vrot.slane %v951, 2
    %v953 = vadd.f32 %v951, %v952
    %v954 = vrot.slane %v953, 1
    %v955 = vadd.f32 %v953, %v954
    %v956 = vadd.f32 %v356, %v372
    %v957 = vrot.slane %v956, 4
    %v958 = vadd.f32 %v956, %v957
    %v959 = vrot.slane %v958, 2
    %v960 = vadd.f32 %v958, %v959
    %v961 = vrot.slane %v960, 1
    %v962 = vadd.f32 %v960, %v961
    %v963 = vadd.f32 %v357, %v373
    %v964 = vrot.slane %v963, 4
    %v965 = vadd.f32 %v963, %v964
    %v966 = vrot.slane %v965, 2
    %v967 = vadd.f32 %v965, %v966
    %v968 = vrot.slane %v967, 1
    %v969 = vadd.f32 %v967, %v968
    %v970 = vadd.f32 %v358, %v374
    %v971 = vrot.slane %v970, 4
    %v972 = vadd.f32 %v970, %v971
    %v973 = vrot.slane %v972, 2
    %v974 = vadd.f32 %v972, %v973
    %v975 = vrot.slane %v974, 1
    %v976 = vadd.f32 %v974, %v975
    %v977 = vadd.f32 %v359, %v375
    %v978 = vrot.slane %v977, 4
    %v979 = vadd.f32 %v977, %v978
    %v980 = vrot.slane %v979, 2
    %v981 = vadd.f32 %v979, %v980
    %v982 = vrot.slane %v981, 1
    %v983 = vadd.f32 %v981, %v982
    %v984 = vadd.f32 %v360, %v376
    %v985 = vrot.slane %v984, 4
    %v986 = vadd.f32 %v984, %v985
    %v987 = vrot.slane %v986, 2
    %v988 = vadd.f32 %v986, %v987
    %v989 = vrot.slane %v988, 1
    %v990 = vadd.f32 %v988, %v989
    %v991 = vadd.f32 %v361, %v377
    %v992 = vrot.slane %v991, 4
    %v993 = vadd.f32 %v991, %v992
    %v994 = vrot.slane %v993, 2
    %v995 = vadd.f32 %v993, %v994
    %v996 = vrot.slane %v995, 1
    %v997 = vadd.f32 %v995, %v996
    %v998 = vadd.f32 %v362, %v378
    %v999 = vrot.slane %v998, 4
    %v1000 = vadd.f32 %v998, %v999
    %v1001 = vrot.slane %v1000, 2
    %v1002 = vadd.f32 %v1000, %v1001
    %v1003 = vrot.slane %v1002, 1
    %v1004 = vadd.f32 %v1002, %v1003
    %v1005 = vadd.f32 %v363, %v379
    %v1006 = vrot.slane %v1005, 4
    %v1007 = vadd.f32 %v1005, %v1006
    %v1008 = vrot.slane %v1007, 2
    %v1009 = vadd.f32 %v1007, %v1008
    %v1010 = vrot.slane %v1009, 1
    %v1011 = vadd.f32 %v1009, %v1010
    %v1012 = vadd.f32 %v364, %v380
    %v1013 = vrot.slane %v1012, 4
    %v1014 = vadd.f32 %v1012, %v1013
    %v1015 = vrot.slane %v1014, 2
    %v1016 = vadd.f32 %v1014, %v1015
    %v1017 = vrot.slane %v1016, 1
    %v1018 = vadd.f32 %v1016, %v1017
    %v1019 = vadd.f32 %v365, %v381
    %v1020 = vrot.slane %v1019, 4
    %v1021 = vadd.f32 %v1019, %v1020
    %v1022 = vrot.slane %v1021, 2
    %v1023 = vadd.f32 %v1021, %v1022
    %v1024 = vrot.slane %v1023, 1
    %v1025 = vadd.f32 %v1023, %v1024
    %v1026 = vadd.f32 %v366, %v382
    %v1027 = vrot.slane %v1026, 4
    %v1028 = vadd.f32 %v1026, %v1027
    %v1029 = vrot.slane %v1028, 2
    %v1030 = vadd.f32 %v1028, %v1029
    %v1031 = vrot.slane %v1030, 1
    %v1032 = vadd.f32 %v1030, %v1031
    %v1033 = vadd.f32 %v367, %v383
    %v1034 = vrot.slane %v1033, 4
    %v1035 = vadd.f32 %v1033, %v1034
    %v1036 = vrot.slane %v1035, 2
    %v1037 = vadd.f32 %v1035, %v1036
    %v1038 = vrot.slane %v1037, 1
    %v1039 = vadd.f32 %v1037, %v1038
    %v1040 = vadd.f32 %v384, %v400
    %v1041 = vrot.slane %v1040, 4
    %v1042 = vadd.f32 %v1040, %v1041
    %v1043 = vrot.slane %v1042, 2
    %v1044 = vadd.f32 %v1042, %v1043
    %v1045 = vrot.slane %v1044, 1
    %v1046 = vadd.f32 %v1044, %v1045
    %v1047 = vadd.f32 %v385, %v401
    %v1048 = vrot.slane %v1047, 4
    %v1049 = vadd.f32 %v1047, %v1048
    %v1050 = vrot.slane %v1049, 2
    %v1051 = vadd.f32 %v1049, %v1050
    %v1052 = vrot.slane %v1051, 1
    %v1053 = vadd.f32 %v1051, %v1052
    %v1054 = vadd.f32 %v386, %v402
    %v1055 = vrot.slane %v1054, 4
    %v1056 = vadd.f32 %v1054, %v1055
    %v1057 = vrot.slane %v1056, 2
    %v1058 = vadd.f32 %v1056, %v1057
    %v1059 = vrot.slane %v1058, 1
    %v1060 = vadd.f32 %v1058, %v1059
    %v1061 = vadd.f32 %v387, %v403
    %v1062 = vrot.slane %v1061, 4
    %v1063 = vadd.f32 %v1061, %v1062
    %v1064 = vrot.slane %v1063, 2
    %v1065 = vadd.f32 %v1063, %v1064
    %v1066 = vrot.slane %v1065, 1
    %v1067 = vadd.f32 %v1065, %v1066
    %v1068 = vadd.f32 %v388, %v404
    %v1069 = vrot.slane %v1068, 4
    %v1070 = vadd.f32 %v1068, %v1069
    %v1071 = vrot.slane %v1070, 2
    %v1072 = vadd.f32 %v1070, %v1071
    %v1073 = vrot.slane %v1072, 1
    %v1074 = vadd.f32 %v1072, %v1073
    %v1075 = vadd.f32 %v389, %v405
    %v1076 = vrot.slane %v1075, 4
    %v1077 = vadd.f32 %v1075, %v1076
    %v1078 = vrot.slane %v1077, 2
    %v1079 = vadd.f32 %v1077, %v1078
    %v1080 = vrot.slane %v1079, 1
    %v1081 = vadd.f32 %v1079, %v1080
    %v1082 = vadd.f32 %v390, %v406
    %v1083 = vrot.slane %v1082, 4
    %v1084 = vadd.f32 %v1082, %v1083
    %v1085 = vrot.slane %v1084, 2
    %v1086 = vadd.f32 %v1084, %v1085
    %v1087 = vrot.slane %v1086, 1
    %v1088 = vadd.f32 %v1086, %v1087
    %v1089 = vadd.f32 %v391, %v407
    %v1090 = vrot.slane %v1089, 4
    %v1091 = vadd.f32 %v1089, %v1090
    %v1092 = vrot.slane %v1091, 2
    %v1093 = vadd.f32 %v1091, %v1092
    %v1094 = vrot.slane %v1093, 1
    %v1095 = vadd.f32 %v1093, %v1094
    %v1096 = vadd.f32 %v392, %v408
    %v1097 = vrot.slane %v1096, 4
    %v1098 = vadd.f32 %v1096, %v1097
    %v1099 = vrot.slane %v1098, 2
    %v1100 = vadd.f32 %v1098, %v1099
    %v1101 = vrot.slane %v1100, 1
    %v1102 = vadd.f32 %v1100, %v1101
    %v1103 = vadd.f32 %v393, %v409
    %v1104 = vrot.slane %v1103, 4
    %v1105 = vadd.f32 %v1103, %v1104
    %v1106 = vrot.slane %v1105, 2
    %v1107 = vadd.f32 %v1105, %v1106
    %v1108 = vrot.slane %v1107, 1
    %v1109 = vadd.f32 %v1107, %v1108
    %v1110 = vadd.f32 %v394, %v410
    %v1111 = vrot.slane %v1110, 4
    %v1112 = vadd.f32 %v1110, %v1111
    %v1113 = vrot.slane %v1112, 2
    %v1114 = vadd.f32 %v1112, %v1113
    %v1115 = vrot.slane %v1114, 1
    %v1116 = vadd.f32 %v1114, %v1115
    %v1117 = vadd.f32 %v395, %v411
    %v1118 = vrot.slane %v1117, 4
    %v1119 = vadd.f32 %v1117, %v1118
    %v1120 = vrot.slane %v1119, 2
    %v1121 = vadd.f32 %v1119, %v1120
    %v1122 = vrot.slane %v1121, 1
    %v1123 = vadd.f32 %v1121, %v1122
    %v1124 = vadd.f32 %v396, %v412
    %v1125 = vrot.slane %v1124, 4
    %v1126 = vadd.f32 %v1124, %v1125
    %v1127 = vrot.slane %v1126, 2
    %v1128 = vadd.f32 %v1126, %v1127
    %v1129 = vrot.slane %v1128, 1
    %v1130 = vadd.f32 %v1128, %v1129
    %v1131 = vadd.f32 %v397, %v413
    %v1132 = vrot.slane %v1131, 4
    %v1133 = vadd.f32 %v1131, %v1132
    %v1134 = vrot.slane %v1133, 2
    %v1135 = vadd.f32 %v1133, %v1134
    %v1136 = vrot.slane %v1135, 1
    %v1137 = vadd.f32 %v1135, %v1136
    %v1138 = vadd.f32 %v398, %v414
    %v1139 = vrot.slane %v1138, 4
    %v1140 = vadd.f32 %v1138, %v1139
    %v1141 = vrot.slane %v1140, 2
    %v1142 = vadd.f32 %v1140, %v1141
    %v1143 = vrot.slane %v1142, 1
    %v1144 = vadd.f32 %v1142, %v1143
    %v1145 = vadd.f32 %v399, %v415
    %v1146 = vrot.slane %v1145, 4
    %v1147 = vadd.f32 %v1145, %v1146
    %v1148 = vrot.slane %v1147, 2
    %v1149 = vadd.f32 %v1147, %v1148
    %v1150 = vrot.slane %v1149, 1
    %v1151 = vadd.f32 %v1149, %v1150
    %v1152 = vadd.f32 %v416, %v432
    %v1153 = vrot.slane %v1152, 4
    %v1154 = vadd.f32 %v1152, %v1153
    %v1155 = vrot.slane %v1154, 2
    %v1156 = vadd.f32 %v1154, %v1155
    %v1157 = vrot.slane %v1156, 1
    %v1158 = vadd.f32 %v1156, %v1157
    %v1159 = vadd.f32 %v417, %v433
    %v1160 = vrot.slane %v1159, 4
    %v1161 = vadd.f32 %v1159, %v1160
    %v1162 = vrot.slane %v1161, 2
    %v1163 = vadd.f32 %v1161, %v1162
    %v1164 = vrot.slane %v1163, 1
    %v1165 = vadd.f32 %v1163, %v1164
    %v1166 = vadd.f32 %v418, %v434
    %v1167 = vrot.slane %v1166, 4
    %v1168 = vadd.f32 %v1166, %v1167
    %v1169 = vrot.slane %v1168, 2
    %v1170 = vadd.f32 %v1168, %v1169
    %v1171 = vrot.slane %v1170, 1
    %v1172 = vadd.f32 %v1170, %v1171
    %v1173 = vadd.f32 %v419, %v435
    %v1174 = vrot.slane %v1173, 4
    %v1175 = vadd.f32 %v1173, %v1174
    %v1176 = vrot.slane %v1175, 2
    %v1177 = vadd.f32 %v1175, %v1176
    %v1178 = vrot.slane %v1177, 1
    %v1179 = vadd.f32 %v1177, %v1178
    %v1180 = vadd.f32 %v420, %v436
    %v1181 = vrot.slane %v1180, 4
    %v1182 = vadd.f32 %v1180, %v1181
    %v1183 = vrot.slane %v1182, 2
    %v1184 = vadd.f32 %v1182, %v1183
    %v1185 = vrot.slane %v1184, 1
    %v1186 = vadd.f32 %v1184, %v1185
    %v1187 = vadd.f32 %v421, %v437
    %v1188 = vrot.slane %v1187, 4
    %v1189 = vadd.f32 %v1187, %v1188
    %v1190 = vrot.slane %v1189, 2
    %v1191 = vadd.f32 %v1189, %v1190
    %v1192 = vrot.slane %v1191, 1
    %v1193 = vadd.f32 %v1191, %v1192
    %v1194 = vadd.f32 %v422, %v438
    %v1195 = vrot.slane %v1194, 4
    %v1196 = vadd.f32 %v1194, %v1195
    %v1197 = vrot.slane %v1196, 2
    %v1198 = vadd.f32 %v1196, %v1197
    %v1199 = vrot.slane %v1198, 1
    %v1200 = vadd.f32 %v1198, %v1199
    %v1201 = vadd.f32 %v423, %v439
    %v1202 = vrot.slane %v1201, 4
    %v1203 = vadd.f32 %v1201, %v1202
    %v1204 = vrot.slane %v1203, 2
    %v1205 = vadd.f32 %v1203, %v1204
    %v1206 = vrot.slane %v1205, 1
    %v1207 = vadd.f32 %v1205, %v1206
    %v1208 = vadd.f32 %v424, %v440
    %v1209 = vrot.slane %v1208, 4
    %v1210 = vadd.f32 %v1208, %v1209
    %v1211 = vrot.slane %v1210, 2
    %v1212 = vadd.f32 %v1210, %v1211
    %v1213 = vrot.slane %v1212, 1
    %v1214 = vadd.f32 %v1212, %v1213
    %v1215 = vadd.f32 %v425, %v441
    %v1216 = vrot.slane %v1215, 4
    %v1217 = vadd.f32 %v1215, %v1216
    %v1218 = vrot.slane %v1217, 2
    %v1219 = vadd.f32 %v1217, %v1218
    %v1220 = vrot.slane %v1219, 1
    %v1221 = vadd.f32 %v1219, %v1220
    %v1222 = vadd.f32 %v426, %v442
    %v1223 = vrot.slane %v1222, 4
    %v1224 = vadd.f32 %v1222, %v1223
    %v1225 = vrot.slane %v1224, 2
    %v1226 = vadd.f32 %v1224, %v1225
    %v1227 = vrot.slane %v1226, 1
    %v1228 = vadd.f32 %v1226, %v1227
    %v1229 = vadd.f32 %v427, %v443
    %v1230 = vrot.slane %v1229, 4
    %v1231 = vadd.f32 %v1229, %v1230
    %v1232 = vrot.slane %v1231, 2
    %v1233 = vadd.f32 %v1231, %v1232
    %v1234 = vrot.slane %v1233, 1
    %v1235 = vadd.f32 %v1233, %v1234
    %v1236 = vadd.f32 %v428, %v444
    %v1237 = vrot.slane %v1236, 4
    %v1238 = vadd.f32 %v1236, %v1237
    %v1239 = vrot.slane %v1238, 2
    %v1240 = vadd.f32 %v1238, %v1239
    %v1241 = vrot.slane %v1240, 1
    %v1242 = vadd.f32 %v1240, %v1241
    %v1243 = vadd.f32 %v429, %v445
    %v1244 = vrot.slane %v1243, 4
    %v1245 = vadd.f32 %v1243, %v1244
    %v1246 = vrot.slane %v1245, 2
    %v1247 = vadd.f32 %v1245, %v1246
    %v1248 = vrot.slane %v1247, 1
    %v1249 = vadd.f32 %v1247, %v1248
    %v1250 = vadd.f32 %v430, %v446
    %v1251 = vrot.slane %v1250, 4
    %v1252 = vadd.f32 %v1250, %v1251
    %v1253 = vrot.slane %v1252, 2
    %v1254 = vadd.f32 %v1252, %v1253
    %v1255 = vrot.slane %v1254, 1
    %v1256 = vadd.f32 %v1254, %v1255
    %v1257 = vadd.f32 %v431, %v447
    %v1258 = vrot.slane %v1257, 4
    %v1259 = vadd.f32 %v1257, %v1258
    %v1260 = vrot.slane %v1259, 2
    %v1261 = vadd.f32 %v1259, %v1260
    %v1262 = vrot.slane %v1261, 1
    %v1263 = vadd.f32 %v1261, %v1262
    %v1264 = vadd.f32 %v448, %v464
    %v1265 = vrot.slane %v1264, 4
    %v1266 = vadd.f32 %v1264, %v1265
    %v1267 = vrot.slane %v1266, 2
    %v1268 = vadd.f32 %v1266, %v1267
    %v1269 = vrot.slane %v1268, 1
    %v1270 = vadd.f32 %v1268, %v1269
    %v1271 = vadd.f32 %v449, %v465
    %v1272 = vrot.slane %v1271, 4
    %v1273 = vadd.f32 %v1271, %v1272
    %v1274 = vrot.slane %v1273, 2
    %v1275 = vadd.f32 %v1273, %v1274
    %v1276 = vrot.slane %v1275, 1
    %v1277 = vadd.f32 %v1275, %v1276
    %v1278 = vadd.f32 %v450, %v466
    %v1279 = vrot.slane %v1278, 4
    %v1280 = vadd.f32 %v1278, %v1279
    %v1281 = vrot.slane %v1280, 2
    %v1282 = vadd.f32 %v1280, %v1281
    %v1283 = vrot.slane %v1282, 1
    %v1284 = vadd.f32 %v1282, %v1283
    %v1285 = vadd.f32 %v451, %v467
    %v1286 = vrot.slane %v1285, 4
    %v1287 = vadd.f32 %v1285, %v1286
    %v1288 = vrot.slane %v1287, 2
    %v1289 = vadd.f32 %v1287, %v1288
    %v1290 = vrot.slane %v1289, 1
    %v1291 = vadd.f32 %v1289, %v1290
    %v1292 = vadd.f32 %v452, %v468
    %v1293 = vrot.slane %v1292, 4
    %v1294 = vadd.f32 %v1292, %v1293
    %v1295 = vrot.slane %v1294, 2
    %v1296 = vadd.f32 %v1294, %v1295
    %v1297 = vrot.slane %v1296, 1
    %v1298 = vadd.f32 %v1296, %v1297
    %v1299 = vadd.f32 %v453, %v469
    %v1300 = vrot.slane %v1299, 4
    %v1301 = vadd.f32 %v1299, %v1300
    %v1302 = vrot.slane %v1301, 2
    %v1303 = vadd.f32 %v1301, %v1302
    %v1304 = vrot.slane %v1303, 1
    %v1305 = vadd.f32 %v1303, %v1304
    %v1306 = vadd.f32 %v454, %v470
    %v1307 = vrot.slane %v1306, 4
    %v1308 = vadd.f32 %v1306, %v1307
    %v1309 = vrot.slane %v1308, 2
    %v1310 = vadd.f32 %v1308, %v1309
    %v1311 = vrot.slane %v1310, 1
    %v1312 = vadd.f32 %v1310, %v1311
    %v1313 = vadd.f32 %v455, %v471
    %v1314 = vrot.slane %v1313, 4
    %v1315 = vadd.f32 %v1313, %v1314
    %v1316 = vrot.slane %v1315, 2
    %v1317 = vadd.f32 %v1315, %v1316
    %v1318 = vrot.slane %v1317, 1
    %v1319 = vadd.f32 %v1317, %v1318
    %v1320 = vadd.f32 %v456, %v472
    %v1321 = vrot.slane %v1320, 4
    %v1322 = vadd.f32 %v1320, %v1321
    %v1323 = vrot.slane %v1322, 2
    %v1324 = vadd.f32 %v1322, %v1323
    %v1325 = vrot.slane %v1324, 1
    %v1326 = vadd.f32 %v1324, %v1325
    %v1327 = vadd.f32 %v457, %v473
    %v1328 = vrot.slane %v1327, 4
    %v1329 = vadd.f32 %v1327, %v1328
    %v1330 = vrot.slane %v1329, 2
    %v1331 = vadd.f32 %v1329, %v1330
    %v1332 = vrot.slane %v1331, 1
    %v1333 = vadd.f32 %v1331, %v1332
    %v1334 = vadd.f32 %v458, %v474
    %v1335 = vrot.slane %v1334, 4
    %v1336 = vadd.f32 %v1334, %v1335
    %v1337 = vrot.slane %v1336, 2
    %v1338 = vadd.f32 %v1336, %v1337
    %v1339 = vrot.slane %v1338, 1
    %v1340 = vadd.f32 %v1338, %v1339
    %v1341 = vadd.f32 %v459, %v475
    %v1342 = vrot.slane %v1341, 4
    %v1343 = vadd.f32 %v1341, %v1342
    %v1344 = vrot.slane %v1343, 2
    %v1345 = vadd.f32 %v1343, %v1344
    %v1346 = vrot.slane %v1345, 1
    %v1347 = vadd.f32 %v1345, %v1346
    %v1348 = vadd.f32 %v460, %v476
    %v1349 = vrot.slane %v1348, 4
    %v1350 = vadd.f32 %v1348, %v1349
    %v1351 = vrot.slane %v1350, 2
    %v1352 = vadd.f32 %v1350, %v1351
    %v1353 = vrot.slane %v1352, 1
    %v1354 = vadd.f32 %v1352, %v1353
    %v1355 = vadd.f32 %v461, %v477
    %v1356 = vrot.slane %v1355, 4
    %v1357 = vadd.f32 %v1355, %v1356
    %v1358 = vrot.slane %v1357, 2
    %v1359 = vadd.f32 %v1357, %v1358
    %v1360 = vrot.slane %v1359, 1
    %v1361 = vadd.f32 %v1359, %v1360
    %v1362 = vadd.f32 %v462, %v478
    %v1363 = vrot.slane %v1362, 4
    %v1364 = vadd.f32 %v1362, %v1363
    %v1365 = vrot.slane %v1364, 2
    %v1366 = vadd.f32 %v1364, %v1365
    %v1367 = vrot.slane %v1366, 1
    %v1368 = vadd.f32 %v1366, %v1367
    %v1369 = vadd.f32 %v463, %v479
    %v1370 = vrot.slane %v1369, 4
    %v1371 = vadd.f32 %v1369, %v1370
    %v1372 = vrot.slane %v1371, 2
    %v1373 = vadd.f32 %v1371, %v1372
    %v1374 = vrot.slane %v1373, 1
    %v1375 = vadd.f32 %v1373, %v1374
    %v1376 = vrcp.pop 16.0
    %v1377 = vmul.f32 %v486, %v1376
    %v1378 = vmul.f32 %v493, %v1376
    %v1379 = vmul.f32 %v500, %v1376
    %v1380 = vmul.f32 %v507, %v1376
    %v1381 = vmul.f32 %v514, %v1376
    %v1382 = vmul.f32 %v521, %v1376
    %v1383 = vmul.f32 %v528, %v1376
    %v1384 = vmul.f32 %v535, %v1376
    %v1385 = vmul.f32 %v542, %v1376
    %v1386 = vmul.f32 %v549, %v1376
    %v1387 = vmul.f32 %v556, %v1376
    %v1388 = vmul.f32 %v563, %v1376
    %v1389 = vmul.f32 %v570, %v1376
    %v1390 = vmul.f32 %v577, %v1376
    %v1391 = vmul.f32 %v584, %v1376
    %v1392 = vmul.f32 %v591, %v1376
    %v1393 = vmul.f32 %v598, %v1376
    %v1394 = vmul.f32 %v605, %v1376
    %v1395 = vmul.f32 %v612, %v1376
    %v1396 = vmul.f32 %v619, %v1376
    %v1397 = vmul.f32 %v626, %v1376
    %v1398 = vmul.f32 %v633, %v1376
    %v1399 = vmul.f32 %v640, %v1376
    %v1400 = vmul.f32 %v647, %v1376
    %v1401 = vmul.f32 %v654, %v1376
    %v1402 = vmul.f32 %v661, %v1376
    %v1403 = vmul.f32 %v668, %v1376
    %v1404 = vmul.f32 %v675, %v1376
    %v1405 = vmul.f32 %v682, %v1376
    %v1406 = vmul.f32 %v689, %v1376
    %v1407 = vmul.f32 %v696, %v1376
    %v1408 = vmul.f32 %v703, %v1376
    %v1409 = vmul.f32 %v710, %v1376
    %v1410 = vmul.f32 %v717, %v1376
    %v1411 = vmul.f32 %v724, %v1376
    %v1412 = vmul.f32 %v731, %v1376
    %v1413 = vmul.f32 %v738, %v1376
    %v1414 = vmul.f32 %v745, %v1376
    %v1415 = vmul.f32 %v752, %v1376
    %v1416 = vmul.f32 %v759, %v1376
    %v1417 = vmul.f32 %v766, %v1376
    %v1418 = vmul.f32 %v773, %v1376
    %v1419 = vmul.f32 %v780, %v1376
    %v1420 = vmul.f32 %v787, %v1376
    %v1421 = vmul.f32 %v794, %v1376
    %v1422 = vmul.f32 %v801, %v1376
    %v1423 = vmul.f32 %v808, %v1376
    %v1424 = vmul.f32 %v815, %v1376
    %v1425 = vmul.f32 %v822, %v1376
    %v1426 = vmul.f32 %v829, %v1376
    %v1427 = vmul.f32 %v836, %v1376
    %v1428 = vmul.f32 %v843, %v1376
    %v1429 = vmul.f32 %v850, %v1376
    %v1430 = vmul.f32 %v857, %v1376
    %v1431 = vmul.f32 %v864, %v1376
    %v1432 = vmul.f32 %v871, %v1376
    %v1433 = vmul.f32 %v878, %v1376
    %v1434 = vmul.f32 %v885, %v1376
    %v1435 = vmul.f32 %v892, %v1376
    %v1436 = vmul.f32 %v899, %v1376
    %v1437 = vmul.f32 %v906, %v1376
    %v1438 = vmul.f32 %v913, %v1376
    %v1439 = vmul.f32 %v920, %v1376
    %v1440 = vmul.f32 %v927, %v1376
    %v1441 = vmul.f32 %v934, %v1376
    %v1442 = vmul.f32 %v941, %v1376
    %v1443 = vmul.f32 %v948, %v1376
    %v1444 = vmul.f32 %v955, %v1376
    %v1445 = vmul.f32 %v962, %v1376
    %v1446 = vmul.f32 %v969, %v1376
    %v1447 = vmul.f32 %v976, %v1376
    %v1448 = vmul.f32 %v983, %v1376
    %v1449 = vmul.f32 %v990, %v1376
    %v1450 = vmul.f32 %v997, %v1376
    %v1451 = vmul.f32 %v1004, %v1376
    %v1452 = vmul.f32 %v1011, %v1376
    %v1453 = vmul.f32 %v1018, %v1376
    %v1454 = vmul.f32 %v1025, %v1376
    %v1455 = vmul.f32 %v1032, %v1376
    %v1456 = vmul.f32 %v1039, %v1376
    %v1457 = vmul.f32 %v1046, %v1376
    %v1458 = vmul.f32 %v1053, %v1376
    %v1459 = vmul.f32 %v1060, %v1376
    %v1460 = vmul.f32 %v1067, %v1376
    %v1461 = vmul.f32 %v1074, %v1376
    %v1462 = vmul.f32 %v1081, %v1376
    %v1463 = vmul.f32 %v1088, %v1376
    %v1464 = vmul.f32 %v1095, %v1376
    %v1465 = vmul.f32 %v1102, %v1376
    %v1466 = vmul.f32 %v1109, %v1376
    %v1467 = vmul.f32 %v1116, %v1376
    %v1468 = vmul.f32 %v1123, %v1376
    %v1469 = vmul.f32 %v1130, %v1376
    %v1470 = vmul.f32 %v1137, %v1376
    %v1471 = vmul.f32 %v1144, %v1376
    %v1472 = vmul.f32 %v1151, %v1376
    %v1473 = vmul.f32 %v1158, %v1376
    %v1474 = vmul.f32 %v1165, %v1376
    %v1475 = vmul.f32 %v1172, %v1376
    %v1476 = vmul.f32 %v1179, %v1376
    %v1477 = vmul.f32 %v1186, %v1376
    %v1478 = vmul.f32 %v1193, %v1376
    %v1479 = vmul.f32 %v1200, %v1376
    %v1480 = vmul.f32 %v1207, %v1376
    %v1481 = vmul.f32 %v1214, %v1376
    %v1482 = vmul.f32 %v1221, %v1376
    %v1483 = vmul.f32 %v1228, %v1376
    %v1484 = vmul.f32 %v1235, %v1376
    %v1485 = vmul.f32 %v1242, %v1376
    %v1486 = vmul.f32 %v1249, %v1376
    %v1487 = vmul.f32 %v1256, %v1376
    %v1488 = vmul.f32 %v1263, %v1376
    %v1489 = vmul.f32 %v1270, %v1376
    %v1490 = vmul.f32 %v1277, %v1376
    %v1491 = vmul.f32 %v1284, %v1376
    %v1492 = vmul.f32 %v1291, %v1376
    %v1493 = vmul.f32 %v1298, %v1376
    %v1494 = vmul.f32 %v1305, %v1376
    %v1495 = vmul.f32 %v1312, %v1376
    %v1496 = vmul.f32 %v1319, %v1376
    %v1497 = vmul.f32 %v1326, %v1376
    %v1498 = vmul.f32 %v1333, %v1376
    %v1499 = vmul.f32 %v1340, %v1376
    %v1500 = vmul.f32 %v1347, %v1376
    %v1501 = vmul.f32 %v1354, %v1376
    %v1502 = vmul.f32 %v1361, %v1376
    %v1503 = vmul.f32 %v1368, %v1376
    %v1504 = vmul.f32 %v1375, %v1376
    %v1505 = vpack.c.bf16 %v1377, %v1377
    %v1506 = vpack.c.bf16 %v1378, %v1378
    %v1507 = vpack.c.bf16 %v1379, %v1379
    %v1508 = vpack.c.bf16 %v1380, %v1380
    %v1509 = vpack.c.bf16 %v1381, %v1381
    %v1510 = vpack.c.bf16 %v1382, %v1382
    %v1511 = vpack.c.bf16 %v1383, %v1383
    %v1512 = vpack.c.bf16 %v1384, %v1384
    %v1513 = vpack.c.bf16 %v1385, %v1385
    %v1514 = vpack.c.bf16 %v1386, %v1386
    %v1515 = vpack.c.bf16 %v1387, %v1387
    %v1516 = vpack.c.bf16 %v1388, %v1388
    %v1517 = vpack.c.bf16 %v1389, %v1389
    %v1518 = vpack.c.bf16 %v1390, %v1390
    %v1519 = vpack.c.bf16 %v1391, %v1391
    %v1520 = vpack.c.bf16 %v1392, %v1392
    %v1521 = vpack.c.bf16 %v1393, %v1393
    %v1522 = vpack.c.bf16 %v1394, %v1394
    %v1523 = vpack.c.bf16 %v1395, %v1395
    %v1524 = vpack.c.bf16 %v1396, %v1396
    %v1525 = vpack.c.bf16 %v1397, %v1397
    %v1526 = vpack.c.bf16 %v1398, %v1398
    %v1527 = vpack.c.bf16 %v1399, %v1399
    %v1528 = vpack.c.bf16 %v1400, %v1400
    %v1529 = vpack.c.bf16 %v1401, %v1401
    %v1530 = vpack.c.bf16 %v1402, %v1402
    %v1531 = vpack.c.bf16 %v1403, %v1403
    %v1532 = vpack.c.bf16 %v1404, %v1404
    %v1533 = vpack.c.bf16 %v1405, %v1405
    %v1534 = vpack.c.bf16 %v1406, %v1406
    %v1535 = vpack.c.bf16 %v1407, %v1407
    %v1536 = vpack.c.bf16 %v1408, %v1408
    %v1537 = vpack.c.bf16 %v1409, %v1409
    %v1538 = vpack.c.bf16 %v1410, %v1410
    %v1539 = vpack.c.bf16 %v1411, %v1411
    %v1540 = vpack.c.bf16 %v1412, %v1412
    %v1541 = vpack.c.bf16 %v1413, %v1413
    %v1542 = vpack.c.bf16 %v1414, %v1414
    %v1543 = vpack.c.bf16 %v1415, %v1415
    %v1544 = vpack.c.bf16 %v1416, %v1416
    %v1545 = vpack.c.bf16 %v1417, %v1417
    %v1546 = vpack.c.bf16 %v1418, %v1418
    %v1547 = vpack.c.bf16 %v1419, %v1419
    %v1548 = vpack.c.bf16 %v1420, %v1420
    %v1549 = vpack.c.bf16 %v1421, %v1421
    %v1550 = vpack.c.bf16 %v1422, %v1422
    %v1551 = vpack.c.bf16 %v1423, %v1423
    %v1552 = vpack.c.bf16 %v1424, %v1424
    %v1553 = vpack.c.bf16 %v1425, %v1425
    %v1554 = vpack.c.bf16 %v1426, %v1426
    %v1555 = vpack.c.bf16 %v1427, %v1427
    %v1556 = vpack.c.bf16 %v1428, %v1428
    %v1557 = vpack.c.bf16 %v1429, %v1429
    %v1558 = vpack.c.bf16 %v1430, %v1430
    %v1559 = vpack.c.bf16 %v1431, %v1431
    %v1560 = vpack.c.bf16 %v1432, %v1432
    %v1561 = vpack.c.bf16 %v1433, %v1433
    %v1562 = vpack.c.bf16 %v1434, %v1434
    %v1563 = vpack.c.bf16 %v1435, %v1435
    %v1564 = vpack.c.bf16 %v1436, %v1436
    %v1565 = vpack.c.bf16 %v1437, %v1437
    %v1566 = vpack.c.bf16 %v1438, %v1438
    %v1567 = vpack.c.bf16 %v1439, %v1439
    %v1568 = vpack.c.bf16 %v1440, %v1440
    %v1569 = vpack.c.bf16 %v1441, %v1441
    %v1570 = vpack.c.bf16 %v1442, %v1442
    %v1571 = vpack.c.bf16 %v1443, %v1443
    %v1572 = vpack.c.bf16 %v1444, %v1444
    %v1573 = vpack.c.bf16 %v1445, %v1445
    %v1574 = vpack.c.bf16 %v1446, %v1446
    %v1575 = vpack.c.bf16 %v1447, %v1447
    %v1576 = vpack.c.bf16 %v1448, %v1448
    %v1577 = vpack.c.bf16 %v1449, %v1449
    %v1578 = vpack.c.bf16 %v1450, %v1450
    %v1579 = vpack.c.bf16 %v1451, %v1451
    %v1580 = vpack.c.bf16 %v1452, %v1452
    %v1581 = vpack.c.bf16 %v1453, %v1453
    %v1582 = vpack.c.bf16 %v1454, %v1454
    %v1583 = vpack.c.bf16 %v1455, %v1455
    %v1584 = vpack.c.bf16 %v1456, %v1456
    %v1585 = vpack.c.bf16 %v1457, %v1457
    %v1586 = vpack.c.bf16 %v1458, %v1458
    %v1587 = vpack.c.bf16 %v1459, %v1459
    %v1588 = vpack.c.bf16 %v1460, %v1460
    %v1589 = vpack.c.bf16 %v1461, %v1461
    %v1590 = vpack.c.bf16 %v1462, %v1462
    %v1591 = vpack.c.bf16 %v1463, %v1463
    %v1592 = vpack.c.bf16 %v1464, %v1464
    %v1593 = vpack.c.bf16 %v1465, %v1465
    %v1594 = vpack.c.bf16 %v1466, %v1466
    %v1595 = vpack.c.bf16 %v1467, %v1467
    %v1596 = vpack.c.bf16 %v1468, %v1468
    %v1597 = vpack.c.bf16 %v1469, %v1469
    %v1598 = vpack.c.bf16 %v1470, %v1470
    %v1599 = vpack.c.bf16 %v1471, %v1471
    %v1600 = vpack.c.bf16 %v1472, %v1472
    %v1601 = vpack.c.bf16 %v1473, %v1473
    %v1602 = vpack.c.bf16 %v1474, %v1474
    %v1603 = vpack.c.bf16 %v1475, %v1475
    %v1604 = vpack.c.bf16 %v1476, %v1476
    %v1605 = vpack.c.bf16 %v1477, %v1477
    %v1606 = vpack.c.bf16 %v1478, %v1478
    %v1607 = vpack.c.bf16 %v1479, %v1479
    %v1608 = vpack.c.bf16 %v1480, %v1480
    %v1609 = vpack.c.bf16 %v1481, %v1481
    %v1610 = vpack.c.bf16 %v1482, %v1482
    %v1611 = vpack.c.bf16 %v1483, %v1483
    %v1612 = vpack.c.bf16 %v1484, %v1484
    %v1613 = vpack.c.bf16 %v1485, %v1485
    %v1614 = vpack.c.bf16 %v1486, %v1486
    %v1615 = vpack.c.bf16 %v1487, %v1487
    %v1616 = vpack.c.bf16 %v1488, %v1488
    %v1617 = vpack.c.bf16 %v1489, %v1489
    %v1618 = vpack.c.bf16 %v1490, %v1490
    %v1619 = vpack.c.bf16 %v1491, %v1491
    %v1620 = vpack.c.bf16 %v1492, %v1492
    %v1621 = vpack.c.bf16 %v1493, %v1493
    %v1622 = vpack.c.bf16 %v1494, %v1494
    %v1623 = vpack.c.bf16 %v1495, %v1495
    %v1624 = vpack.c.bf16 %v1496, %v1496
    %v1625 = vpack.c.bf16 %v1497, %v1497
    %v1626 = vpack.c.bf16 %v1498, %v1498
    %v1627 = vpack.c.bf16 %v1499, %v1499
    %v1628 = vpack.c.bf16 %v1500, %v1500
    %v1629 = vpack.c.bf16 %v1501, %v1501
    %v1630 = vpack.c.bf16 %v1502, %v1502
    %v1631 = vpack.c.bf16 %v1503, %v1503
    %v1632 = vpack.c.bf16 %v1504, %v1504
    %v1633 = vld [vmem:[#allocation5] sm:$0xff]
    %v1634 = vld [vmem:[#allocation5 + $0x8] sm:$0xff]
    %v1635 = vld [vmem:[#allocation5 + $0x10] sm:$0xff]
    %v1636 = vld [vmem:[#allocation5 + $0x18] sm:$0xff]
    %v1637 = vld [vmem:[#allocation5 + $0x20] sm:$0xff]
    %v1638 = vld [vmem:[#allocation5 + $0x28] sm:$0xff]
    %v1639 = vld [vmem:[#allocation5 + $0x30] sm:$0xff]
    %v1640 = vld [vmem:[#allocation5 + $0x38] sm:$0xff]
    %v1641 = vld [vmem:[#allocation5 + $0x40] sm:$0xff]
    %v1642 = vld [vmem:[#allocation5 + $0x48] sm:$0xff]
    %v1643 = vld [vmem:[#allocation5 + $0x50] sm:$0xff]
    %v1644 = vld [vmem:[#allocation5 + $0x58] sm:$0xff]
    %v1645 = vld [vmem:[#allocation5 + $0x60] sm:$0xff]
    %v1646 = vld [vmem:[#allocation5 + $0x68] sm:$0xff]
    %v1647 = vld [vmem:[#allocation5 + $0x70] sm:$0xff]
    %v1648 = vld [vmem:[#allocation5 + $0x78] sm:$0xff]
    %v1649 = vld [vmem:[#allocation5 + $0x80] sm:$0xff]
    %v1650 = vld [vmem:[#allocation5 + $0x88] sm:$0xff]
    %v1651 = vld [vmem:[#allocation5 + $0x90] sm:$0xff]
    %v1652 = vld [vmem:[#allocation5 + $0x98] sm:$0xff]
    %v1653 = vld [vmem:[#allocation5 + $0xa0] sm:$0xff]
    %v1654 = vld [vmem:[#allocation5 + $0xa8] sm:$0xff]
    %v1655 = vld [vmem:[#allocation5 + $0xb0] sm:$0xff]
    %v1656 = vld [vmem:[#allocation5 + $0xb8] sm:$0xff]
    %v1657 = vld [vmem:[#allocation5 + $0xc0] sm:$0xff]
    %v1658 = vld [vmem:[#allocation5 + $0xc8] sm:$0xff]
    %v1659 = vld [vmem:[#allocation5 + $0xd0] sm:$0xff]
    %v1660 = vld [vmem:[#allocation5 + $0xd8] sm:$0xff]
    %v1661 = vld [vmem:[#allocation5 + $0xe0] sm:$0xff]
    %v1662 = vld [vmem:[#allocation5 + $0xe8] sm:$0xff]
    %v1663 = vld [vmem:[#allocation5 + $0xf0] sm:$0xff]
    %v1664 = vld [vmem:[#allocation5 + $0xf8] sm:$0xff]
    %v1665 = vld [vmem:[#allocation5 + $0x100] sm:$0xff]
    %v1666 = vld [vmem:[#allocation5 + $0x108] sm:$0xff]
    %v1667 = vld [vmem:[#allocation5 + $0x110] sm:$0xff]
    %v1668 = vld [vmem:[#allocation5 + $0x118] sm:$0xff]
    %v1669 = vld [vmem:[#allocation5 + $0x120] sm:$0xff]
    %v1670 = vld [vmem:[#allocation5 + $0x128] sm:$0xff]
    %v1671 = vld [vmem:[#allocation5 + $0x130] sm:$0xff]
    %v1672 = vld [vmem:[#allocation5 + $0x138] sm:$0xff]
    %v1673 = vld [vmem:[#allocation5 + $0x140] sm:$0xff]
    %v1674 = vld [vmem:[#allocation5 + $0x148] sm:$0xff]
    %v1675 = vld [vmem:[#allocation5 + $0x150] sm:$0xff]
    %v1676 = vld [vmem:[#allocation5 + $0x158] sm:$0xff]
    %v1677 = vld [vmem:[#allocation5 + $0x160] sm:$0xff]
    %v1678 = vld [vmem:[#allocation5 + $0x168] sm:$0xff]
    %v1679 = vld [vmem:[#allocation5 + $0x170] sm:$0xff]
    %v1680 = vld [vmem:[#allocation5 + $0x178] sm:$0xff]
    %v1681 = vld [vmem:[#allocation5 + $0x180] sm:$0xff]
    %v1682 = vld [vmem:[#allocation5 + $0x188] sm:$0xff]
    %v1683 = vld [vmem:[#allocation5 + $0x190] sm:$0xff]
    %v1684 = vld [vmem:[#allocation5 + $0x198] sm:$0xff]
    %v1685 = vld [vmem:[#allocation5 + $0x1a0] sm:$0xff]
    %v1686 = vld [vmem:[#allocation5 + $0x1a8] sm:$0xff]
    %v1687 = vld [vmem:[#allocation5 + $0x1b0] sm:$0xff]
    %v1688 = vld [vmem:[#allocation5 + $0x1b8] sm:$0xff]
    %v1689 = vld [vmem:[#allocation5 + $0x1c0] sm:$0xff]
    %v1690 = vld [vmem:[#allocation5 + $0x1c8] sm:$0xff]
    %v1691 = vld [vmem:[#allocation5 + $0x1d0] sm:$0xff]
    %v1692 = vld [vmem:[#allocation5 + $0x1d8] sm:$0xff]
    %v1693 = vld [vmem:[#allocation5 + $0x1e0] sm:$0xff]
    %v1694 = vld [vmem:[#allocation5 + $0x1e8] sm:$0xff]
    %v1695 = vld [vmem:[#allocation5 + $0x1f0] sm:$0xff]
    %v1696 = vld [vmem:[#allocation5 + $0x1f8] sm:$0xff]
    %v1697 = vld [vmem:[#allocation5 + $0x200] sm:$0xff]
    %v1698 = vld [vmem:[#allocation5 + $0x208] sm:$0xff]
    %v1699 = vld [vmem:[#allocation5 + $0x210] sm:$0xff]
    %v1700 = vld [vmem:[#allocation5 + $0x218] sm:$0xff]
    %v1701 = vld [vmem:[#allocation5 + $0x220] sm:$0xff]
    %v1702 = vld [vmem:[#allocation5 + $0x228] sm:$0xff]
    %v1703 = vld [vmem:[#allocation5 + $0x230] sm:$0xff]
    %v1704 = vld [vmem:[#allocation5 + $0x238] sm:$0xff]
    %v1705 = vld [vmem:[#allocation5 + $0x240] sm:$0xff]
    %v1706 = vld [vmem:[#allocation5 + $0x248] sm:$0xff]
    %v1707 = vld [vmem:[#allocation5 + $0x250] sm:$0xff]
    %v1708 = vld [vmem:[#allocation5 + $0x258] sm:$0xff]
    %v1709 = vld [vmem:[#allocation5 + $0x260] sm:$0xff]
    %v1710 = vld [vmem:[#allocation5 + $0x268] sm:$0xff]
    %v1711 = vld [vmem:[#allocation5 + $0x270] sm:$0xff]
    %v1712 = vld [vmem:[#allocation5 + $0x278] sm:$0xff]
    %v1713 = vld [vmem:[#allocation5 + $0x280] sm:$0xff]
    %v1714 = vld [vmem:[#allocation5 + $0x288] sm:$0xff]
    %v1715 = vld [vmem:[#allocation5 + $0x290] sm:$0xff]
    %v1716 = vld [vmem:[#allocation5 + $0x298] sm:$0xff]
    %v1717 = vld [vmem:[#allocation5 + $0x2a0] sm:$0xff]
    %v1718 = vld [vmem:[#allocation5 + $0x2a8] sm:$0xff]
    %v1719 = vld [vmem:[#allocation5 + $0x2b0] sm:$0xff]
    %v1720 = vld [vmem:[#allocation5 + $0x2b8] sm:$0xff]
    %v1721 = vld [vmem:[#allocation5 + $0x2c0] sm:$0xff]
    %v1722 = vld [vmem:[#allocation5 + $0x2c8] sm:$0xff]
    %v1723 = vld [vmem:[#allocation5 + $0x2d0] sm:$0xff]
    %v1724 = vld [vmem:[#allocation5 + $0x2d8] sm:$0xff]
    %v1725 = vld [vmem:[#allocation5 + $0x2e0] sm:$0xff]
    %v1726 = vld [vmem:[#allocation5 + $0x2e8] sm:$0xff]
    %v1727 = vld [vmem:[#allocation5 + $0x2f0] sm:$0xff]
    %v1728 = vld [vmem:[#allocation5 + $0x2f8] sm:$0xff]
    %v1729 = vld [vmem:[#allocation5 + $0x300] sm:$0xff]
    %v1730 = vld [vmem:[#allocation5 + $0x308] sm:$0xff]
    %v1731 = vld [vmem:[#allocation5 + $0x310] sm:$0xff]
    %v1732 = vld [vmem:[#allocation5 + $0x318] sm:$0xff]
    %v1733 = vld [vmem:[#allocation5 + $0x320] sm:$0xff]
    %v1734 = vld [vmem:[#allocation5 + $0x328] sm:$0xff]
    %v1735 = vld [vmem:[#allocation5 + $0x330] sm:$0xff]
    %v1736 = vld [vmem:[#allocation5 + $0x338] sm:$0xff]
    %v1737 = vld [vmem:[#allocation5 + $0x340] sm:$0xff]
    %v1738 = vld [vmem:[#allocation5 + $0x348] sm:$0xff]
    %v1739 = vld [vmem:[#allocation5 + $0x350] sm:$0xff]
    %v1740 = vld [vmem:[#allocation5 + $0x358] sm:$0xff]
    %v1741 = vld [vmem:[#allocation5 + $0x360] sm:$0xff]
    %v1742 = vld [vmem:[#allocation5 + $0x368] sm:$0xff]
    %v1743 = vld [vmem:[#allocation5 + $0x370] sm:$0xff]
    %v1744 = vld [vmem:[#allocation5 + $0x378] sm:$0xff]
    %v1745 = vld [vmem:[#allocation5 + $0x380] sm:$0xff]
    %v1746 = vld [vmem:[#allocation5 + $0x388] sm:$0xff]
    %v1747 = vld [vmem:[#allocation5 + $0x390] sm:$0xff]
    %v1748 = vld [vmem:[#allocation5 + $0x398] sm:$0xff]
    %v1749 = vld [vmem:[#allocation5 + $0x3a0] sm:$0xff]
    %v1750 = vld [vmem:[#allocation5 + $0x3a8] sm:$0xff]
    %v1751 = vld [vmem:[#allocation5 + $0x3b0] sm:$0xff]
    %v1752 = vld [vmem:[#allocation5 + $0x3b8] sm:$0xff]
    %v1753 = vld [vmem:[#allocation5 + $0x3c0] sm:$0xff]
    %v1754 = vld [vmem:[#allocation5 + $0x3c8] sm:$0xff]
    %v1755 = vld [vmem:[#allocation5 + $0x3d0] sm:$0xff]
    %v1756 = vld [vmem:[#allocation5 + $0x3d8] sm:$0xff]
    %v1757 = vld [vmem:[#allocation5 + $0x3e0] sm:$0xff]
    %v1758 = vld [vmem:[#allocation5 + $0x3e8] sm:$0xff]
    %v1759 = vld [vmem:[#allocation5 + $0x3f0] sm:$0xff]
    %v1760 = vld [vmem:[#allocation5 + $0x3f8] sm:$0xff]
    %v1761 = vld [vmem:[#allocation5 + $0x400] sm:$0xff]
    %v1762 = vld [vmem:[#allocation5 + $0x408] sm:$0xff]
    %v1763 = vld [vmem:[#allocation5 + $0x410] sm:$0xff]
    %v1764 = vld [vmem:[#allocation5 + $0x418] sm:$0xff]
    %v1765 = vld [vmem:[#allocation5 + $0x420] sm:$0xff]
    %v1766 = vld [vmem:[#allocation5 + $0x428] sm:$0xff]
    %v1767 = vld [vmem:[#allocation5 + $0x430] sm:$0xff]
    %v1768 = vld [vmem:[#allocation5 + $0x438] sm:$0xff]
    %v1769 = vld [vmem:[#allocation5 + $0x440] sm:$0xff]
    %v1770 = vld [vmem:[#allocation5 + $0x448] sm:$0xff]
    %v1771 = vld [vmem:[#allocation5 + $0x450] sm:$0xff]
    %v1772 = vld [vmem:[#allocation5 + $0x458] sm:$0xff]
    %v1773 = vld [vmem:[#allocation5 + $0x460] sm:$0xff]
    %v1774 = vld [vmem:[#allocation5 + $0x468] sm:$0xff]
    %v1775 = vld [vmem:[#allocation5 + $0x470] sm:$0xff]
    %v1776 = vld [vmem:[#allocation5 + $0x478] sm:$0xff]
    %v1777 = vld [vmem:[#allocation5 + $0x480] sm:$0xff]
    %v1778 = vld [vmem:[#allocation5 + $0x488] sm:$0xff]
    %v1779 = vld [vmem:[#allocation5 + $0x490] sm:$0xff]
    %v1780 = vld [vmem:[#allocation5 + $0x498] sm:$0xff]
    %v1781 = vld [vmem:[#allocation5 + $0x4a0] sm:$0xff]
    %v1782 = vld [vmem:[#allocation5 + $0x4a8] sm:$0xff]
    %v1783 = vld [vmem:[#allocation5 + $0x4b0] sm:$0xff]
    %v1784 = vld [vmem:[#allocation5 + $0x4b8] sm:$0xff]
    %v1785 = vld [vmem:[#allocation5 + $0x4c0] sm:$0xff]
    %v1786 = vld [vmem:[#allocation5 + $0x4c8] sm:$0xff]
    %v1787 = vld [vmem:[#allocation5 + $0x4d0] sm:$0xff]
    %v1788 = vld [vmem:[#allocation5 + $0x4d8] sm:$0xff]
    %v1789 = vld [vmem:[#allocation5 + $0x4e0] sm:$0xff]
    %v1790 = vld [vmem:[#allocation5 + $0x4e8] sm:$0xff]
    %v1791 = vld [vmem:[#allocation5 + $0x4f0] sm:$0xff]
    %v1792 = vld [vmem:[#allocation5 + $0x4f8] sm:$0xff]
    %v1793 = vld [vmem:[#allocation5 + $0x500] sm:$0xff]
    %v1794 = vld [vmem:[#allocation5 + $0x508] sm:$0xff]
    %v1795 = vld [vmem:[#allocation5 + $0x510] sm:$0xff]
    %v1796 = vld [vmem:[#allocation5 + $0x518] sm:$0xff]
    %v1797 = vld [vmem:[#allocation5 + $0x520] sm:$0xff]
    %v1798 = vld [vmem:[#allocation5 + $0x528] sm:$0xff]
    %v1799 = vld [vmem:[#allocation5 + $0x530] sm:$0xff]
    %v1800 = vld [vmem:[#allocation5 + $0x538] sm:$0xff]
    %v1801 = vld [vmem:[#allocation5 + $0x540] sm:$0xff]
    %v1802 = vld [vmem:[#allocation5 + $0x548] sm:$0xff]
    %v1803 = vld [vmem:[#allocation5 + $0x550] sm:$0xff]
    %v1804 = vld [vmem:[#allocation5 + $0x558] sm:$0xff]
    %v1805 = vld [vmem:[#allocation5 + $0x560] sm:$0xff]
    %v1806 = vld [vmem:[#allocation5 + $0x568] sm:$0xff]
    %v1807 = vld [vmem:[#allocation5 + $0x570] sm:$0xff]
    %v1808 = vld [vmem:[#allocation5 + $0x578] sm:$0xff]
    %v1809 = vld [vmem:[#allocation5 + $0x580] sm:$0xff]
    %v1810 = vld [vmem:[#allocation5 + $0x588] sm:$0xff]
    %v1811 = vld [vmem:[#allocation5 + $0x590] sm:$0xff]
    %v1812 = vld [vmem:[#allocation5 + $0x598] sm:$0xff]
    %v1813 = vld [vmem:[#allocation5 + $0x5a0] sm:$0xff]
    %v1814 = vld [vmem:[#allocation5 + $0x5a8] sm:$0xff]
    %v1815 = vld [vmem:[#allocation5 + $0x5b0] sm:$0xff]
    %v1816 = vld [vmem:[#allocation5 + $0x5b8] sm:$0xff]
    %v1817 = vld [vmem:[#allocation5 + $0x5c0] sm:$0xff]
    %v1818 = vld [vmem:[#allocation5 + $0x5c8] sm:$0xff]
    %v1819 = vld [vmem:[#allocation5 + $0x5d0] sm:$0xff]
    %v1820 = vld [vmem:[#allocation5 + $0x5d8] sm:$0xff]
    %v1821 = vld [vmem:[#allocation5 + $0x5e0] sm:$0xff]
    %v1822 = vld [vmem:[#allocation5 + $0x5e8] sm:$0xff]
    %v1823 = vld [vmem:[#allocation5 + $0x5f0] sm:$0xff]
    %v1824 = vld [vmem:[#allocation5 + $0x5f8] sm:$0xff]
    %v1825 = vld [vmem:[#allocation5 + $0x600] sm:$0xff]
    %v1826 = vld [vmem:[#allocation5 + $0x608] sm:$0xff]
    %v1827 = vld [vmem:[#allocation5 + $0x610] sm:$0xff]
    %v1828 = vld [vmem:[#allocation5 + $0x618] sm:$0xff]
    %v1829 = vld [vmem:[#allocation5 + $0x620] sm:$0xff]
    %v1830 = vld [vmem:[#allocation5 + $0x628] sm:$0xff]
    %v1831 = vld [vmem:[#allocation5 + $0x630] sm:$0xff]
    %v1832 = vld [vmem:[#allocation5 + $0x638] sm:$0xff]
    %v1833 = vld [vmem:[#allocation5 + $0x640] sm:$0xff]
    %v1834 = vld [vmem:[#allocation5 + $0x648] sm:$0xff]
    %v1835 = vld [vmem:[#allocation5 + $0x650] sm:$0xff]
    %v1836 = vld [vmem:[#allocation5 + $0x658] sm:$0xff]
    %v1837 = vld [vmem:[#allocation5 + $0x660] sm:$0xff]
    %v1838 = vld [vmem:[#allocation5 + $0x668] sm:$0xff]
    %v1839 = vld [vmem:[#allocation5 + $0x670] sm:$0xff]
    %v1840 = vld [vmem:[#allocation5 + $0x678] sm:$0xff]
    %v1841 = vld [vmem:[#allocation5 + $0x680] sm:$0xff]
    %v1842 = vld [vmem:[#allocation5 + $0x688] sm:$0xff]
    %v1843 = vld [vmem:[#allocation5 + $0x690] sm:$0xff]
    %v1844 = vld [vmem:[#allocation5 + $0x698] sm:$0xff]
    %v1845 = vld [vmem:[#allocation5 + $0x6a0] sm:$0xff]
    %v1846 = vld [vmem:[#allocation5 + $0x6a8] sm:$0xff]
    %v1847 = vld [vmem:[#allocation5 + $0x6b0] sm:$0xff]
    %v1848 = vld [vmem:[#allocation5 + $0x6b8] sm:$0xff]
    %v1849 = vld [vmem:[#allocation5 + $0x6c0] sm:$0xff]
    %v1850 = vld [vmem:[#allocation5 + $0x6c8] sm:$0xff]
    %v1851 = vld [vmem:[#allocation5 + $0x6d0] sm:$0xff]
    %v1852 = vld [vmem:[#allocation5 + $0x6d8] sm:$0xff]
    %v1853 = vld [vmem:[#allocation5 + $0x6e0] sm:$0xff]
    %v1854 = vld [vmem:[#allocation5 + $0x6e8] sm:$0xff]
    %v1855 = vld [vmem:[#allocation5 + $0x6f0] sm:$0xff]
    %v1856 = vld [vmem:[#allocation5 + $0x6f8] sm:$0xff]
    %v1857 = vld [vmem:[#allocation5 + $0x700] sm:$0xff]
    %v1858 = vld [vmem:[#allocation5 + $0x708] sm:$0xff]
    %v1859 = vld [vmem:[#allocation5 + $0x710] sm:$0xff]
    %v1860 = vld [vmem:[#allocation5 + $0x718] sm:$0xff]
    %v1861 = vld [vmem:[#allocation5 + $0x720] sm:$0xff]
    %v1862 = vld [vmem:[#allocation5 + $0x728] sm:$0xff]
    %v1863 = vld [vmem:[#allocation5 + $0x730] sm:$0xff]
    %v1864 = vld [vmem:[#allocation5 + $0x738] sm:$0xff]
    %v1865 = vld [vmem:[#allocation5 + $0x740] sm:$0xff]
    %v1866 = vld [vmem:[#allocation5 + $0x748] sm:$0xff]
    %v1867 = vld [vmem:[#allocation5 + $0x750] sm:$0xff]
    %v1868 = vld [vmem:[#allocation5 + $0x758] sm:$0xff]
    %v1869 = vld [vmem:[#allocation5 + $0x760] sm:$0xff]
    %v1870 = vld [vmem:[#allocation5 + $0x768] sm:$0xff]
    %v1871 = vld [vmem:[#allocation5 + $0x770] sm:$0xff]
    %v1872 = vld [vmem:[#allocation5 + $0x778] sm:$0xff]
    %v1873 = vld [vmem:[#allocation5 + $0x780] sm:$0xff]
    %v1874 = vld [vmem:[#allocation5 + $0x788] sm:$0xff]
    %v1875 = vld [vmem:[#allocation5 + $0x790] sm:$0xff]
    %v1876 = vld [vmem:[#allocation5 + $0x798] sm:$0xff]
    %v1877 = vld [vmem:[#allocation5 + $0x7a0] sm:$0xff]
    %v1878 = vld [vmem:[#allocation5 + $0x7a8] sm:$0xff]
    %v1879 = vld [vmem:[#allocation5 + $0x7b0] sm:$0xff]
    %v1880 = vld [vmem:[#allocation5 + $0x7b8] sm:$0xff]
    %v1881 = vld [vmem:[#allocation5 + $0x7c0] sm:$0xff]
    %v1882 = vld [vmem:[#allocation5 + $0x7c8] sm:$0xff]
    %v1883 = vld [vmem:[#allocation5 + $0x7d0] sm:$0xff]
    %v1884 = vld [vmem:[#allocation5 + $0x7d8] sm:$0xff]
    %v1885 = vld [vmem:[#allocation5 + $0x7e0] sm:$0xff]
    %v1886 = vld [vmem:[#allocation5 + $0x7e8] sm:$0xff]
    %v1887 = vld [vmem:[#allocation5 + $0x7f0] sm:$0xff]
    %v1888 = vld [vmem:[#allocation5 + $0x7f8] sm:$0xff]
    %v2017 = vunpack.c.l.b16 %v1505
    %v2018 = vunpack.c.l.b16 %v1506
    %v2019 = vunpack.c.l.b16 %v1507
    %v2020 = vunpack.c.l.b16 %v1508
    %v2021 = vunpack.c.l.b16 %v1509
    %v2022 = vunpack.c.l.b16 %v1510
    %v2023 = vunpack.c.l.b16 %v1511
    %v2024 = vunpack.c.l.b16 %v1512
    %v2025 = vunpack.c.l.b16 %v1513
    %v2026 = vunpack.c.l.b16 %v1514
    %v2027 = vunpack.c.l.b16 %v1515
    %v2028 = vunpack.c.l.b16 %v1516
    %v2029 = vunpack.c.l.b16 %v1517
    %v2030 = vunpack.c.l.b16 %v1518
    %v2031 = vunpack.c.l.b16 %v1519
    %v2032 = vunpack.c.l.b16 %v1520
    %v2033 = vunpack.c.l.b16 %v1521
    %v2034 = vunpack.c.l.b16 %v1522
    %v2035 = vunpack.c.l.b16 %v1523
    %v2036 = vunpack.c.l.b16 %v1524
    %v2037 = vunpack.c.l.b16 %v1525
    %v2038 = vunpack.c.l.b16 %v1526
    %v2039 = vunpack.c.l.b16 %v1527
    %v2040 = vunpack.c.l.b16 %v1528
    %v2041 = vunpack.c.l.b16 %v1529
    %v2042 = vunpack.c.l.b16 %v1530
    %v2043 = vunpack.c.l.b16 %v1531
    %v2044 = vunpack.c.l.b16 %v1532
    %v2045 = vunpack.c.l.b16 %v1533
    %v2046 = vunpack.c.l.b16 %v1534
    %v2047 = vunpack.c.l.b16 %v1535
    %v2048 = vunpack.c.l.b16 %v1536
    %v2049 = vunpack.c.l.b16 %v1537
    %v2050 = vunpack.c.l.b16 %v1538
    %v2051 = vunpack.c.l.b16 %v1539
    %v2052 = vunpack.c.l.b16 %v1540
    %v2053 = vunpack.c.l.b16 %v1541
    %v2054 = vunpack.c.l.b16 %v1542
    %v2055 = vunpack.c.l.b16 %v1543
    %v2056 = vunpack.c.l.b16 %v1544
    %v2057 = vunpack.c.l.b16 %v1545
    %v2058 = vunpack.c.l.b16 %v1546
    %v2059 = vunpack.c.l.b16 %v1547
    %v2060 = vunpack.c.l.b16 %v1548
    %v2061 = vunpack.c.l.b16 %v1549
    %v2062 = vunpack.c.l.b16 %v1550
    %v2063 = vunpack.c.l.b16 %v1551
    %v2064 = vunpack.c.l.b16 %v1552
    %v2065 = vunpack.c.l.b16 %v1553
    %v2066 = vunpack.c.l.b16 %v1554
    %v2067 = vunpack.c.l.b16 %v1555
    %v2068 = vunpack.c.l.b16 %v1556
    %v2069 = vunpack.c.l.b16 %v1557
    %v2070 = vunpack.c.l.b16 %v1558
    %v2071 = vunpack.c.l.b16 %v1559
    %v2072 = vunpack.c.l.b16 %v1560
    %v2073 = vunpack.c.l.b16 %v1561
    %v2074 = vunpack.c.l.b16 %v1562
    %v2075 = vunpack.c.l.b16 %v1563
    %v2076 = vunpack.c.l.b16 %v1564
    %v2077 = vunpack.c.l.b16 %v1565
    %v2078 = vunpack.c.l.b16 %v1566
    %v2079 = vunpack.c.l.b16 %v1567
    %v2080 = vunpack.c.l.b16 %v1568
    %v2081 = vunpack.c.l.b16 %v1569
    %v2082 = vunpack.c.l.b16 %v1570
    %v2083 = vunpack.c.l.b16 %v1571
    %v2084 = vunpack.c.l.b16 %v1572
    %v2085 = vunpack.c.l.b16 %v1573
    %v2086 = vunpack.c.l.b16 %v1574
    %v2087 = vunpack.c.l.b16 %v1575
    %v2088 = vunpack.c.l.b16 %v1576
    %v2089 = vunpack.c.l.b16 %v1577
    %v2090 = vunpack.c.l.b16 %v1578
    %v2091 = vunpack.c.l.b16 %v1579
    %v2092 = vunpack.c.l.b16 %v1580
    %v2093 = vunpack.c.l.b16 %v1581
    %v2094 = vunpack.c.l.b16 %v1582
    %v2095 = vunpack.c.l.b16 %v1583
    %v2096 = vunpack.c.l.b16 %v1584
    %v2097 = vunpack.c.l.b16 %v1585
    %v2098 = vunpack.c.l.b16 %v1586
    %v2099 = vunpack.c.l.b16 %v1587
    %v2100 = vunpack.c.l.b16 %v1588
    %v2101 = vunpack.c.l.b16 %v1589
    %v2102 = vunpack.c.l.b16 %v1590
    %v2103 = vunpack.c.l.b16 %v1591
    %v2104 = vunpack.c.l.b16 %v1592
    %v2105 = vunpack.c.l.b16 %v1593
    %v2106 = vunpack.c.l.b16 %v1594
    %v2107 = vunpack.c.l.b16 %v1595
    %v2108 = vunpack.c.l.b16 %v1596
    %v2109 = vunpack.c.l.b16 %v1597
    %v2110 = vunpack.c.l.b16 %v1598
    %v2111 = vunpack.c.l.b16 %v1599
    %v2112 = vunpack.c.l.b16 %v1600
    %v2113 = vunpack.c.l.b16 %v1601
    %v2114 = vunpack.c.l.b16 %v1602
    %v2115 = vunpack.c.l.b16 %v1603
    %v2116 = vunpack.c.l.b16 %v1604
    %v2117 = vunpack.c.l.b16 %v1605
    %v2118 = vunpack.c.l.b16 %v1606
    %v2119 = vunpack.c.l.b16 %v1607
    %v2120 = vunpack.c.l.b16 %v1608
    %v2121 = vunpack.c.l.b16 %v1609
    %v2122 = vunpack.c.l.b16 %v1610
    %v2123 = vunpack.c.l.b16 %v1611
    %v2124 = vunpack.c.l.b16 %v1612
    %v2125 = vunpack.c.l.b16 %v1613
    %v2126 = vunpack.c.l.b16 %v1614
    %v2127 = vunpack.c.l.b16 %v1615
    %v2128 = vunpack.c.l.b16 %v1616
    %v2129 = vunpack.c.l.b16 %v1617
    %v2130 = vunpack.c.l.b16 %v1618
    %v2131 = vunpack.c.l.b16 %v1619
    %v2132 = vunpack.c.l.b16 %v1620
    %v2133 = vunpack.c.l.b16 %v1621
    %v2134 = vunpack.c.l.b16 %v1622
    %v2135 = vunpack.c.l.b16 %v1623
    %v2136 = vunpack.c.l.b16 %v1624
    %v2137 = vunpack.c.l.b16 %v1625
    %v2138 = vunpack.c.l.b16 %v1626
    %v2139 = vunpack.c.l.b16 %v1627
    %v2140 = vunpack.c.l.b16 %v1628
    %v2141 = vunpack.c.l.b16 %v1629
    %v2142 = vunpack.c.l.b16 %v1630
    %v2143 = vunpack.c.l.b16 %v1631
    %v2144 = vunpack.c.l.b16 %v1632
    %vm2145 = vcmask 1041409
    %v2146 = vsel %vm2145, %v2033, %v2017
    %vm2147 = vcmask 1042434
    %v2148 = vsel %vm2147, %v2049, %v2146
    %vm2149 = vcmask 1043459
    %v2150 = vsel %vm2149, %v2065, %v2148
    %vm2151 = vcmask 1044484
    %v2152 = vsel %vm2151, %v2081, %v2150
    %vm2153 = vcmask 1045509
    %v2154 = vsel %vm2153, %v2097, %v2152
    %vm2155 = vcmask 1046534
    %v2156 = vsel %vm2155, %v2113, %v2154
    %vm2157 = vcmask 1047559
    %v2158 = vsel %vm2157, %v2129, %v2156
    %v2159 = vsel %vm2145, %v2034, %v2018
    %v2160 = vsel %vm2147, %v2050, %v2159
    %v2161 = vsel %vm2149, %v2066, %v2160
    %v2162 = vsel %vm2151, %v2082, %v2161
    %v2163 = vsel %vm2153, %v2098, %v2162
    %v2164 = vsel %vm2155, %v2114, %v2163
    %v2165 = vsel %vm2157, %v2130, %v2164
    %v2166 = vsel %vm2145, %v2035, %v2019
    %v2167 = vsel %vm2147, %v2051, %v2166
    %v2168 = vsel %vm2149, %v2067, %v2167
    %v2169 = vsel %vm2151, %v2083, %v2168
    %v2170 = vsel %vm2153, %v2099, %v2169
    %v2171 = vsel %vm2155, %v2115, %v2170
    %v2172 = vsel %vm2157, %v2131, %v2171
    %v2173 = vsel %vm2145, %v2036, %v2020
    %v2174 = vsel %vm2147, %v2052, %v2173
    %v2175 = vsel %vm2149, %v2068, %v2174
    %v2176 = vsel %vm2151, %v2084, %v2175
    %v2177 = vsel %vm2153, %v2100, %v2176
    %v2178 = vsel %vm2155, %v2116, %v2177
    %v2179 = vsel %vm2157, %v2132, %v2178
    %v2180 = vsel %vm2145, %v2037, %v2021
    %v2181 = vsel %vm2147, %v2053, %v2180
    %v2182 = vsel %vm2149, %v2069, %v2181
    %v2183 = vsel %vm2151, %v2085, %v2182
    %v2184 = vsel %vm2153, %v2101, %v2183
    %v2185 = vsel %vm2155, %v2117, %v2184
    %v2186 = vsel %vm2157, %v2133, %v2185
    %v2187 = vsel %vm2145, %v2038, %v2022
    %v2188 = vsel %vm2147, %v2054, %v2187
    %v2189 = vsel %vm2149, %v2070, %v2188
    %v2190 = vsel %vm2151, %v2086, %v2189
    %v2191 = vsel %vm2153, %v2102, %v2190
    %v2192 = vsel %vm2155, %v2118, %v2191
    %v2193 = vsel %vm2157, %v2134, %v2192
    %v2194 = vsel %vm2145, %v2039, %v2023
    %v2195 = vsel %vm2147, %v2055, %v2194
    %v2196 = vsel %vm2149, %v2071, %v2195
    %v2197 = vsel %vm2151, %v2087, %v2196
    %v2198 = vsel %vm2153, %v2103, %v2197
    %v2199 = vsel %vm2155, %v2119, %v2198
    %v2200 = vsel %vm2157, %v2135, %v2199
    %v2201 = vsel %vm2145, %v2040, %v2024
    %v2202 = vsel %vm2147, %v2056, %v2201
    %v2203 = vsel %vm2149, %v2072, %v2202
    %v2204 = vsel %vm2151, %v2088, %v2203
    %v2205 = vsel %vm2153, %v2104, %v2204
    %v2206 = vsel %vm2155, %v2120, %v2205
    %v2207 = vsel %vm2157, %v2136, %v2206
    %v2208 = vsel %vm2145, %v2041, %v2025
    %v2209 = vsel %vm2147, %v2057, %v2208
    %v2210 = vsel %vm2149, %v2073, %v2209
    %v2211 = vsel %vm2151, %v2089, %v2210
    %v2212 = vsel %vm2153, %v2105, %v2211
    %v2213 = vsel %vm2155, %v2121, %v2212
    %v2214 = vsel %vm2157, %v2137, %v2213
    %v2215 = vsel %vm2145, %v2042, %v2026
    %v2216 = vsel %vm2147, %v2058, %v2215
    %v2217 = vsel %vm2149, %v2074, %v2216
    %v2218 = vsel %vm2151, %v2090, %v2217
    %v2219 = vsel %vm2153, %v2106, %v2218
    %v2220 = vsel %vm2155, %v2122, %v2219
    %v2221 = vsel %vm2157, %v2138, %v2220
    %v2222 = vsel %vm2145, %v2043, %v2027
    %v2223 = vsel %vm2147, %v2059, %v2222
    %v2224 = vsel %vm2149, %v2075, %v2223
    %v2225 = vsel %vm2151, %v2091, %v2224
    %v2226 = vsel %vm2153, %v2107, %v2225
    %v2227 = vsel %vm2155, %v2123, %v2226
    %v2228 = vsel %vm2157, %v2139, %v2227
    %v2229 = vsel %vm2145, %v2044, %v2028
    %v2230 = vsel %vm2147, %v2060, %v2229
    %v2231 = vsel %vm2149, %v2076, %v2230
    %v2232 = vsel %vm2151, %v2092, %v2231
    %v2233 = vsel %vm2153, %v2108, %v2232
    %v2234 = vsel %vm2155, %v2124, %v2233
    %v2235 = vsel %vm2157, %v2140, %v2234
    %v2236 = vsel %vm2145, %v2045, %v2029
    %v2237 = vsel %vm2147, %v2061, %v2236
    %v2238 = vsel %vm2149, %v2077, %v2237
    %v2239 = vsel %vm2151, %v2093, %v2238
    %v2240 = vsel %vm2153, %v2109, %v2239
    %v2241 = vsel %vm2155, %v2125, %v2240
    %v2242 = vsel %vm2157, %v2141, %v2241
    %v2243 = vsel %vm2145, %v2046, %v2030
    %v2244 = vsel %vm2147, %v2062, %v2243
    %v2245 = vsel %vm2149, %v2078, %v2244
    %v2246 = vsel %vm2151, %v2094, %v2245
    %v2247 = vsel %vm2153, %v2110, %v2246
    %v2248 = vsel %vm2155, %v2126, %v2247
    %v2249 = vsel %vm2157, %v2142, %v2248
    %v2250 = vsel %vm2145, %v2047, %v2031
    %v2251 = vsel %vm2147, %v2063, %v2250
    %v2252 = vsel %vm2149, %v2079, %v2251
    %v2253 = vsel %vm2151, %v2095, %v2252
    %v2254 = vsel %vm2153, %v2111, %v2253
    %v2255 = vsel %vm2155, %v2127, %v2254
    %v2256 = vsel %vm2157, %v2143, %v2255
    %v2257 = vsel %vm2145, %v2048, %v2032
    %v2258 = vsel %vm2147, %v2064, %v2257
    %v2259 = vsel %vm2149, %v2080, %v2258
    %v2260 = vsel %vm2151, %v2096, %v2259
    %v2261 = vsel %vm2153, %v2112, %v2260
    %v2262 = vsel %vm2155, %v2128, %v2261
    %v2263 = vsel %vm2157, %v2144, %v2262
    %v2264 = vpack.c.b16 %v2158, %v2158
    %v2265 = vpack.c.b16 %v2165, %v2165
    %v2266 = vpack.c.b16 %v2172, %v2172
    %v2267 = vpack.c.b16 %v2179, %v2179
    %v2268 = vpack.c.b16 %v2186, %v2186
    %v2269 = vpack.c.b16 %v2193, %v2193
    %v2270 = vpack.c.b16 %v2200, %v2200
    %v2271 = vpack.c.b16 %v2207, %v2207
    %v2272 = vpack.c.b16 %v2214, %v2214
    %v2273 = vpack.c.b16 %v2221, %v2221
    %v2274 = vpack.c.b16 %v2228, %v2228
    %v2275 = vpack.c.b16 %v2235, %v2235
    %v2276 = vpack.c.b16 %v2242, %v2242
    %v2277 = vpack.c.b16 %v2249, %v2249
    %v2278 = vpack.c.b16 %v2256, %v2256
    %v2279 = vpack.c.b16 %v2263, %v2263
    %v2552 = vunpack.c.l.b16 %v1633
    %v2553 = vunpack.c.h.b16 %v1633
    %v2554 = vunpack.c.l.b16 %v1634
    %v2555 = vunpack.c.h.b16 %v1634
    %v2556 = vunpack.c.l.b16 %v1635
    %v2557 = vunpack.c.h.b16 %v1635
    %v2558 = vunpack.c.l.b16 %v1636
    %v2559 = vunpack.c.h.b16 %v1636
    %v2560 = vunpack.c.l.b16 %v1637
    %v2561 = vunpack.c.h.b16 %v1637
    %v2562 = vunpack.c.l.b16 %v1638
    %v2563 = vunpack.c.h.b16 %v1638
    %v2564 = vunpack.c.l.b16 %v1639
    %v2565 = vunpack.c.h.b16 %v1639
    %v2566 = vunpack.c.l.b16 %v1640
    %v2567 = vunpack.c.h.b16 %v1640
    %v2568 = vunpack.c.l.b16 %v1641
    %v2569 = vunpack.c.h.b16 %v1641
    %v2570 = vunpack.c.l.b16 %v1642
    %v2571 = vunpack.c.h.b16 %v1642
    %v2572 = vunpack.c.l.b16 %v1643
    %v2573 = vunpack.c.h.b16 %v1643
    %v2574 = vunpack.c.l.b16 %v1644
    %v2575 = vunpack.c.h.b16 %v1644
    %v2576 = vunpack.c.l.b16 %v1645
    %v2577 = vunpack.c.h.b16 %v1645
    %v2578 = vunpack.c.l.b16 %v1646
    %v2579 = vunpack.c.h.b16 %v1646
    %v2580 = vunpack.c.l.b16 %v1647
    %v2581 = vunpack.c.h.b16 %v1647
    %v2582 = vunpack.c.l.b16 %v1648
    %v2583 = vunpack.c.h.b16 %v1648
    %v2584 = vunpack.c.l.b16 %v1649
    %v2585 = vunpack.c.h.b16 %v1649
    %v2586 = vunpack.c.l.b16 %v1650
    %v2587 = vunpack.c.h.b16 %v1650
    %v2588 = vunpack.c.l.b16 %v1651
    %v2589 = vunpack.c.h.b16 %v1651
    %v2590 = vunpack.c.l.b16 %v1652
    %v2591 = vunpack.c.h.b16 %v1652
    %v2592 = vunpack.c.l.b16 %v1653
    %v2593 = vunpack.c.h.b16 %v1653
    %v2594 = vunpack.c.l.b16 %v1654
    %v2595 = vunpack.c.h.b16 %v1654
    %v2596 = vunpack.c.l.b16 %v1655
    %v2597 = vunpack.c.h.b16 %v1655
    %v2598 = vunpack.c.l.b16 %v1656
    %v2599 = vunpack.c.h.b16 %v1656
    %v2600 = vunpack.c.l.b16 %v1657
    %v2601 = vunpack.c.h.b16 %v1657
    %v2602 = vunpack.c.l.b16 %v1658
    %v2603 = vunpack.c.h.b16 %v1658
    %v2604 = vunpack.c.l.b16 %v1659
    %v2605 = vunpack.c.h.b16 %v1659
    %v2606 = vunpack.c.l.b16 %v1660
    %v2607 = vunpack.c.h.b16 %v1660
    %v2608 = vunpack.c.l.b16 %v1661
    %v2609 = vunpack.c.h.b16 %v1661
    %v2610 = vunpack.c.l.b16 %v1662
    %v2611 = vunpack.c.h.b16 %v1662
    %v2612 = vunpack.c.l.b16 %v1663
    %v2613 = vunpack.c.h.b16 %v1663
    %v2614 = vunpack.c.l.b16 %v1664
    %v2615 = vunpack.c.h.b16 %v1664
    %v2616 = vunpack.c.l.b16 %v1665
    %v2617 = vunpack.c.h.b16 %v1665
    %v2618 = vunpack.c.l.b16 %v1666
    %v2619 = vunpack.c.h.b16 %v1666
    %v2620 = vunpack.c.l.b16 %v1667
    %v2621 = vunpack.c.h.b16 %v1667
    %v2622 = vunpack.c.l.b16 %v1668
    %v2623 = vunpack.c.h.b16 %v1668
    %v2624 = vunpack.c.l.b16 %v1669
    %v2625 = vunpack.c.h.b16 %v1669
    %v2626 = vunpack.c.l.b16 %v1670
    %v2627 = vunpack.c.h.b16 %v1670
    %v2628 = vunpack.c.l.b16 %v1671
    %v2629 = vunpack.c.h.b16 %v1671
    %v2630 = vunpack.c.l.b16 %v1672
    %v2631 = vunpack.c.h.b16 %v1672
    %v2632 = vunpack.c.l.b16 %v1673
    %v2633 = vunpack.c.h.b16 %v1673
    %v2634 = vunpack.c.l.b16 %v1674
    %v2635 = vunpack.c.h.b16 %v1674
    %v2636 = vunpack.c.l.b16 %v1675
    %v2637 = vunpack.c.h.b16 %v1675
    %v2638 = vunpack.c.l.b16 %v1676
    %v2639 = vunpack.c.h.b16 %v1676
    %v2640 = vunpack.c.l.b16 %v1677
    %v2641 = vunpack.c.h.b16 %v1677
    %v2642 = vunpack.c.l.b16 %v1678
    %v2643 = vunpack.c.h.b16 %v1678
    %v2644 = vunpack.c.l.b16 %v1679
    %v2645 = vunpack.c.h.b16 %v1679
    %v2646 = vunpack.c.l.b16 %v1680
    %v2647 = vunpack.c.h.b16 %v1680
    %v2648 = vunpack.c.l.b16 %v1681
    %v2649 = vunpack.c.h.b16 %v1681
    %v2650 = vunpack.c.l.b16 %v1682
    %v2651 = vunpack.c.h.b16 %v1682
    %v2652 = vunpack.c.l.b16 %v1683
    %v2653 = vunpack.c.h.b16 %v1683
    %v2654 = vunpack.c.l.b16 %v1684
    %v2655 = vunpack.c.h.b16 %v1684
    %v2656 = vunpack.c.l.b16 %v1685
    %v2657 = vunpack.c.h.b16 %v1685
    %v2658 = vunpack.c.l.b16 %v1686
    %v2659 = vunpack.c.h.b16 %v1686
    %v2660 = vunpack.c.l.b16 %v1687
    %v2661 = vunpack.c.h.b16 %v1687
    %v2662 = vunpack.c.l.b16 %v1688
    %v2663 = vunpack.c.h.b16 %v1688
    %v2664 = vunpack.c.l.b16 %v1689
    %v2665 = vunpack.c.h.b16 %v1689
    %v2666 = vunpack.c.l.b16 %v1690
    %v2667 = vunpack.c.h.b16 %v1690
    %v2668 = vunpack.c.l.b16 %v1691
    %v2669 = vunpack.c.h.b16 %v1691
    %v2670 = vunpack.c.l.b16 %v1692
    %v2671 = vunpack.c.h.b16 %v1692
    %v2672 = vunpack.c.l.b16 %v1693
    %v2673 = vunpack.c.h.b16 %v1693
    %v2674 = vunpack.c.l.b16 %v1694
    %v2675 = vunpack.c.h.b16 %v1694
    %v2676 = vunpack.c.l.b16 %v1695
    %v2677 = vunpack.c.h.b16 %v1695
    %v2678 = vunpack.c.l.b16 %v1696
    %v2679 = vunpack.c.h.b16 %v1696
    %v2680 = vunpack.c.l.b16 %v1697
    %v2681 = vunpack.c.h.b16 %v1697
    %v2682 = vunpack.c.l.b16 %v1698
    %v2683 = vunpack.c.h.b16 %v1698
    %v2684 = vunpack.c.l.b16 %v1699
    %v2685 = vunpack.c.h.b16 %v1699
    %v2686 = vunpack.c.l.b16 %v1700
    %v2687 = vunpack.c.h.b16 %v1700
    %v2688 = vunpack.c.l.b16 %v1701
    %v2689 = vunpack.c.h.b16 %v1701
    %v2690 = vunpack.c.l.b16 %v1702
    %v2691 = vunpack.c.h.b16 %v1702
    %v2692 = vunpack.c.l.b16 %v1703
    %v2693 = vunpack.c.h.b16 %v1703
    %v2694 = vunpack.c.l.b16 %v1704
    %v2695 = vunpack.c.h.b16 %v1704
    %v2696 = vunpack.c.l.b16 %v1705
    %v2697 = vunpack.c.h.b16 %v1705
    %v2698 = vunpack.c.l.b16 %v1706
    %v2699 = vunpack.c.h.b16 %v1706
    %v2700 = vunpack.c.l.b16 %v1707
    %v2701 = vunpack.c.h.b16 %v1707
    %v2702 = vunpack.c.l.b16 %v1708
    %v2703 = vunpack.c.h.b16 %v1708
    %v2704 = vunpack.c.l.b16 %v1709
    %v2705 = vunpack.c.h.b16 %v1709
    %v2706 = vunpack.c.l.b16 %v1710
    %v2707 = vunpack.c.h.b16 %v1710
    %v2708 = vunpack.c.l.b16 %v1711
    %v2709 = vunpack.c.h.b16 %v1711
    %v2710 = vunpack.c.l.b16 %v1712
    %v2711 = vunpack.c.h.b16 %v1712
    %v2712 = vunpack.c.l.b16 %v1713
    %v2713 = vunpack.c.h.b16 %v1713
    %v2714 = vunpack.c.l.b16 %v1714
    %v2715 = vunpack.c.h.b16 %v1714
    %v2716 = vunpack.c.l.b16 %v1715
    %v2717 = vunpack.c.h.b16 %v1715
    %v2718 = vunpack.c.l.b16 %v1716
    %v2719 = vunpack.c.h.b16 %v1716
    %v2720 = vunpack.c.l.b16 %v1717
    %v2721 = vunpack.c.h.b16 %v1717
    %v2722 = vunpack.c.l.b16 %v1718
    %v2723 = vunpack.c.h.b16 %v1718
    %v2724 = vunpack.c.l.b16 %v1719
    %v2725 = vunpack.c.h.b16 %v1719
    %v2726 = vunpack.c.l.b16 %v1720
    %v2727 = vunpack.c.h.b16 %v1720
    %v2728 = vunpack.c.l.b16 %v1721
    %v2729 = vunpack.c.h.b16 %v1721
    %v2730 = vunpack.c.l.b16 %v1722
    %v2731 = vunpack.c.h.b16 %v1722
    %v2732 = vunpack.c.l.b16 %v1723
    %v2733 = vunpack.c.h.b16 %v1723
    %v2734 = vunpack.c.l.b16 %v1724
    %v2735 = vunpack.c.h.b16 %v1724
    %v2736 = vunpack.c.l.b16 %v1725
    %v2737 = vunpack.c.h.b16 %v1725
    %v2738 = vunpack.c.l.b16 %v1726
    %v2739 = vunpack.c.h.b16 %v1726
    %v2740 = vunpack.c.l.b16 %v1727
    %v2741 = vunpack.c.h.b16 %v1727
    %v2742 = vunpack.c.l.b16 %v1728
    %v2743 = vunpack.c.h.b16 %v1728
    %v2744 = vunpack.c.l.b16 %v1729
    %v2745 = vunpack.c.h.b16 %v1729
    %v2746 = vunpack.c.l.b16 %v1730
    %v2747 = vunpack.c.h.b16 %v1730
    %v2748 = vunpack.c.l.b16 %v1731
    %v2749 = vunpack.c.h.b16 %v1731
    %v2750 = vunpack.c.l.b16 %v1732
    %v2751 = vunpack.c.h.b16 %v1732
    %v2752 = vunpack.c.l.b16 %v1733
    %v2753 = vunpack.c.h.b16 %v1733
    %v2754 = vunpack.c.l.b16 %v1734
    %v2755 = vunpack.c.h.b16 %v1734
    %v2756 = vunpack.c.l.b16 %v1735
    %v2757 = vunpack.c.h.b16 %v1735
    %v2758 = vunpack.c.l.b16 %v1736
    %v2759 = vunpack.c.h.b16 %v1736
    %v2760 = vunpack.c.l.b16 %v1737
    %v2761 = vunpack.c.h.b16 %v1737
    %v2762 = vunpack.c.l.b16 %v1738
    %v2763 = vunpack.c.h.b16 %v1738
    %v2764 = vunpack.c.l.b16 %v1739
    %v2765 = vunpack.c.h.b16 %v1739
    %v2766 = vunpack.c.l.b16 %v1740
    %v2767 = vunpack.c.h.b16 %v1740
    %v2768 = vunpack.c.l.b16 %v1741
    %v2769 = vunpack.c.h.b16 %v1741
    %v2770 = vunpack.c.l.b16 %v1742
    %v2771 = vunpack.c.h.b16 %v1742
    %v2772 = vunpack.c.l.b16 %v1743
    %v2773 = vunpack.c.h.b16 %v1743
    %v2774 = vunpack.c.l.b16 %v1744
    %v2775 = vunpack.c.h.b16 %v1744
    %v2776 = vunpack.c.l.b16 %v1745
    %v2777 = vunpack.c.h.b16 %v1745
    %v2778 = vunpack.c.l.b16 %v1746
    %v2779 = vunpack.c.h.b16 %v1746
    %v2780 = vunpack.c.l.b16 %v1747
    %v2781 = vunpack.c.h.b16 %v1747
    %v2782 = vunpack.c.l.b16 %v1748
    %v2783 = vunpack.c.h.b16 %v1748
    %v2784 = vunpack.c.l.b16 %v1749
    %v2785 = vunpack.c.h.b16 %v1749
    %v2786 = vunpack.c.l.b16 %v1750
    %v2787 = vunpack.c.h.b16 %v1750
    %v2788 = vunpack.c.l.b16 %v1751
    %v2789 = vunpack.c.h.b16 %v1751
    %v2790 = vunpack.c.l.b16 %v1752
    %v2791 = vunpack.c.h.b16 %v1752
    %v2792 = vunpack.c.l.b16 %v1753
    %v2793 = vunpack.c.h.b16 %v1753
    %v2794 = vunpack.c.l.b16 %v1754
    %v2795 = vunpack.c.h.b16 %v1754
    %v2796 = vunpack.c.l.b16 %v1755
    %v2797 = vunpack.c.h.b16 %v1755
    %v2798 = vunpack.c.l.b16 %v1756
    %v2799 = vunpack.c.h.b16 %v1756
    %v2800 = vunpack.c.l.b16 %v1757
    %v2801 = vunpack.c.h.b16 %v1757
    %v2802 = vunpack.c.l.b16 %v1758
    %v2803 = vunpack.c.h.b16 %v1758
    %v2804 = vunpack.c.l.b16 %v1759
    %v2805 = vunpack.c.h.b16 %v1759
    %v2806 = vunpack.c.l.b16 %v1760
    %v2807 = vunpack.c.h.b16 %v1760
    %v2808 = vunpack.c.l.b16 %v1761
    %v2809 = vunpack.c.h.b16 %v1761
    %v2810 = vunpack.c.l.b16 %v1762
    %v2811 = vunpack.c.h.b16 %v1762
    %v2812 = vunpack.c.l.b16 %v1763
    %v2813 = vunpack.c.h.b16 %v1763
    %v2814 = vunpack.c.l.b16 %v1764
    %v2815 = vunpack.c.h.b16 %v1764
    %v2816 = vunpack.c.l.b16 %v1765
    %v2817 = vunpack.c.h.b16 %v1765
    %v2818 = vunpack.c.l.b16 %v1766
    %v2819 = vunpack.c.h.b16 %v1766
    %v2820 = vunpack.c.l.b16 %v1767
    %v2821 = vunpack.c.h.b16 %v1767
    %v2822 = vunpack.c.l.b16 %v1768
    %v2823 = vunpack.c.h.b16 %v1768
    %v2824 = vunpack.c.l.b16 %v1769
    %v2825 = vunpack.c.h.b16 %v1769
    %v2826 = vunpack.c.l.b16 %v1770
    %v2827 = vunpack.c.h.b16 %v1770
    %v2828 = vunpack.c.l.b16 %v1771
    %v2829 = vunpack.c.h.b16 %v1771
    %v2830 = vunpack.c.l.b16 %v1772
    %v2831 = vunpack.c.h.b16 %v1772
    %v2832 = vunpack.c.l.b16 %v1773
    %v2833 = vunpack.c.h.b16 %v1773
    %v2834 = vunpack.c.l.b16 %v1774
    %v2835 = vunpack.c.h.b16 %v1774
    %v2836 = vunpack.c.l.b16 %v1775
    %v2837 = vunpack.c.h.b16 %v1775
    %v2838 = vunpack.c.l.b16 %v1776
    %v2839 = vunpack.c.h.b16 %v1776
    %v2840 = vunpack.c.l.b16 %v1777
    %v2841 = vunpack.c.h.b16 %v1777
    %v2842 = vunpack.c.l.b16 %v1778
    %v2843 = vunpack.c.h.b16 %v1778
    %v2844 = vunpack.c.l.b16 %v1779
    %v2845 = vunpack.c.h.b16 %v1779
    %v2846 = vunpack.c.l.b16 %v1780
    %v2847 = vunpack.c.h.b16 %v1780
    %v2848 = vunpack.c.l.b16 %v1781
    %v2849 = vunpack.c.h.b16 %v1781
    %v2850 = vunpack.c.l.b16 %v1782
    %v2851 = vunpack.c.h.b16 %v1782
    %v2852 = vunpack.c.l.b16 %v1783
    %v2853 = vunpack.c.h.b16 %v1783
    %v2854 = vunpack.c.l.b16 %v1784
    %v2855 = vunpack.c.h.b16 %v1784
    %v2856 = vunpack.c.l.b16 %v1785
    %v2857 = vunpack.c.h.b16 %v1785
    %v2858 = vunpack.c.l.b16 %v1786
    %v2859 = vunpack.c.h.b16 %v1786
    %v2860 = vunpack.c.l.b16 %v1787
    %v2861 = vunpack.c.h.b16 %v1787
    %v2862 = vunpack.c.l.b16 %v1788
    %v2863 = vunpack.c.h.b16 %v1788
    %v2864 = vunpack.c.l.b16 %v1789
    %v2865 = vunpack.c.h.b16 %v1789
    %v2866 = vunpack.c.l.b16 %v1790
    %v2867 = vunpack.c.h.b16 %v1790
    %v2868 = vunpack.c.l.b16 %v1791
    %v2869 = vunpack.c.h.b16 %v1791
    %v2870 = vunpack.c.l.b16 %v1792
    %v2871 = vunpack.c.h.b16 %v1792
    %v2872 = vunpack.c.l.b16 %v1793
    %v2873 = vunpack.c.h.b16 %v1793
    %v2874 = vunpack.c.l.b16 %v1794
    %v2875 = vunpack.c.h.b16 %v1794
    %v2876 = vunpack.c.l.b16 %v1795
    %v2877 = vunpack.c.h.b16 %v1795
    %v2878 = vunpack.c.l.b16 %v1796
    %v2879 = vunpack.c.h.b16 %v1796
    %v2880 = vunpack.c.l.b16 %v1797
    %v2881 = vunpack.c.h.b16 %v1797
    %v2882 = vunpack.c.l.b16 %v1798
    %v2883 = vunpack.c.h.b16 %v1798
    %v2884 = vunpack.c.l.b16 %v1799
    %v2885 = vunpack.c.h.b16 %v1799
    %v2886 = vunpack.c.l.b16 %v1800
    %v2887 = vunpack.c.h.b16 %v1800
    %v2888 = vunpack.c.l.b16 %v1801
    %v2889 = vunpack.c.h.b16 %v1801
    %v2890 = vunpack.c.l.b16 %v1802
    %v2891 = vunpack.c.h.b16 %v1802
    %v2892 = vunpack.c.l.b16 %v1803
    %v2893 = vunpack.c.h.b16 %v1803
    %v2894 = vunpack.c.l.b16 %v1804
    %v2895 = vunpack.c.h.b16 %v1804
    %v2896 = vunpack.c.l.b16 %v1805
    %v2897 = vunpack.c.h.b16 %v1805
    %v2898 = vunpack.c.l.b16 %v1806
    %v2899 = vunpack.c.h.b16 %v1806
    %v2900 = vunpack.c.l.b16 %v1807
    %v2901 = vunpack.c.h.b16 %v1807
    %v2902 = vunpack.c.l.b16 %v1808
    %v2903 = vunpack.c.h.b16 %v1808
    %v2904 = vunpack.c.l.b16 %v1809
    %v2905 = vunpack.c.h.b16 %v1809
    %v2906 = vunpack.c.l.b16 %v1810
    %v2907 = vunpack.c.h.b16 %v1810
    %v2908 = vunpack.c.l.b16 %v1811
    %v2909 = vunpack.c.h.b16 %v1811
    %v2910 = vunpack.c.l.b16 %v1812
    %v2911 = vunpack.c.h.b16 %v1812
    %v2912 = vunpack.c.l.b16 %v1813
    %v2913 = vunpack.c.h.b16 %v1813
    %v2914 = vunpack.c.l.b16 %v1814
    %v2915 = vunpack.c.h.b16 %v1814
    %v2916 = vunpack.c.l.b16 %v1815
    %v2917 = vunpack.c.h.b16 %v1815
    %v2918 = vunpack.c.l.b16 %v1816
    %v2919 = vunpack.c.h.b16 %v1816
    %v2920 = vunpack.c.l.b16 %v1817
    %v2921 = vunpack.c.h.b16 %v1817
    %v2922 = vunpack.c.l.b16 %v1818
    %v2923 = vunpack.c.h.b16 %v1818
    %v2924 = vunpack.c.l.b16 %v1819
    %v2925 = vunpack.c.h.b16 %v1819
    %v2926 = vunpack.c.l.b16 %v1820
    %v2927 = vunpack.c.h.b16 %v1820
    %v2928 = vunpack.c.l.b16 %v1821
    %v2929 = vunpack.c.h.b16 %v1821
    %v2930 = vunpack.c.l.b16 %v1822
    %v2931 = vunpack.c.h.b16 %v1822
    %v2932 = vunpack.c.l.b16 %v1823
    %v2933 = vunpack.c.h.b16 %v1823
    %v2934 = vunpack.c.l.b16 %v1824
    %v2935 = vunpack.c.h.b16 %v1824
    %v2936 = vunpack.c.l.b16 %v1825
    %v2937 = vunpack.c.h.b16 %v1825
    %v2938 = vunpack.c.l.b16 %v1826
    %v2939 = vunpack.c.h.b16 %v1826
    %v2940 = vunpack.c.l.b16 %v1827
    %v2941 = vunpack.c.h.b16 %v1827
    %v2942 = vunpack.c.l.b16 %v1828
    %v2943 = vunpack.c.h.b16 %v1828
    %v2944 = vunpack.c.l.b16 %v1829
    %v2945 = vunpack.c.h.b16 %v1829
    %v2946 = vunpack.c.l.b16 %v1830
    %v2947 = vunpack.c.h.b16 %v1830
    %v2948 = vunpack.c.l.b16 %v1831
    %v2949 = vunpack.c.h.b16 %v1831
    %v2950 = vunpack.c.l.b16 %v1832
    %v2951 = vunpack.c.h.b16 %v1832
    %v2952 = vunpack.c.l.b16 %v1833
    %v2953 = vunpack.c.h.b16 %v1833
    %v2954 = vunpack.c.l.b16 %v1834
    %v2955 = vunpack.c.h.b16 %v1834
    %v2956 = vunpack.c.l.b16 %v1835
    %v2957 = vunpack.c.h.b16 %v1835
    %v2958 = vunpack.c.l.b16 %v1836
    %v2959 = vunpack.c.h.b16 %v1836
    %v2960 = vunpack.c.l.b16 %v1837
    %v2961 = vunpack.c.h.b16 %v1837
    %v2962 = vunpack.c.l.b16 %v1838
    %v2963 = vunpack.c.h.b16 %v1838
    %v2964 = vunpack.c.l.b16 %v1839
    %v2965 = vunpack.c.h.b16 %v1839
    %v2966 = vunpack.c.l.b16 %v1840
    %v2967 = vunpack.c.h.b16 %v1840
    %v2968 = vunpack.c.l.b16 %v1841
    %v2969 = vunpack.c.h.b16 %v1841
    %v2970 = vunpack.c.l.b16 %v1842
    %v2971 = vunpack.c.h.b16 %v1842
    %v2972 = vunpack.c.l.b16 %v1843
    %v2973 = vunpack.c.h.b16 %v1843
    %v2974 = vunpack.c.l.b16 %v1844
    %v2975 = vunpack.c.h.b16 %v1844
    %v2976 = vunpack.c.l.b16 %v1845
    %v2977 = vunpack.c.h.b16 %v1845
    %v2978 = vunpack.c.l.b16 %v1846
    %v2979 = vunpack.c.h.b16 %v1846
    %v2980 = vunpack.c.l.b16 %v1847
    %v2981 = vunpack.c.h.b16 %v1847
    %v2982 = vunpack.c.l.b16 %v1848
    %v2983 = vunpack.c.h.b16 %v1848
    %v2984 = vunpack.c.l.b16 %v1849
    %v2985 = vunpack.c.h.b16 %v1849
    %v2986 = vunpack.c.l.b16 %v1850
    %v2987 = vunpack.c.h.b16 %v1850
    %v2988 = vunpack.c.l.b16 %v1851
    %v2989 = vunpack.c.h.b16 %v1851
    %v2990 = vunpack.c.l.b16 %v1852
    %v2991 = vunpack.c.h.b16 %v1852
    %v2992 = vunpack.c.l.b16 %v1853
    %v2993 = vunpack.c.h.b16 %v1853
    %v2994 = vunpack.c.l.b16 %v1854
    %v2995 = vunpack.c.h.b16 %v1854
    %v2996 = vunpack.c.l.b16 %v1855
    %v2997 = vunpack.c.h.b16 %v1855
    %v2998 = vunpack.c.l.b16 %v1856
    %v2999 = vunpack.c.h.b16 %v1856
    %v3000 = vunpack.c.l.b16 %v1857
    %v3001 = vunpack.c.h.b16 %v1857
    %v3002 = vunpack.c.l.b16 %v1858
    %v3003 = vunpack.c.h.b16 %v1858
    %v3004 = vunpack.c.l.b16 %v1859
    %v3005 = vunpack.c.h.b16 %v1859
    %v3006 = vunpack.c.l.b16 %v1860
    %v3007 = vunpack.c.h.b16 %v1860
    %v3008 = vunpack.c.l.b16 %v1861
    %v3009 = vunpack.c.h.b16 %v1861
    %v3010 = vunpack.c.l.b16 %v1862
    %v3011 = vunpack.c.h.b16 %v1862
    %v3012 = vunpack.c.l.b16 %v1863
    %v3013 = vunpack.c.h.b16 %v1863
    %v3014 = vunpack.c.l.b16 %v1864
    %v3015 = vunpack.c.h.b16 %v1864
    %v3016 = vunpack.c.l.b16 %v1865
    %v3017 = vunpack.c.h.b16 %v1865
    %v3018 = vunpack.c.l.b16 %v1866
    %v3019 = vunpack.c.h.b16 %v1866
    %v3020 = vunpack.c.l.b16 %v1867
    %v3021 = vunpack.c.h.b16 %v1867
    %v3022 = vunpack.c.l.b16 %v1868
    %v3023 = vunpack.c.h.b16 %v1868
    %v3024 = vunpack.c.l.b16 %v1869
    %v3025 = vunpack.c.h.b16 %v1869
    %v3026 = vunpack.c.l.b16 %v1870
    %v3027 = vunpack.c.h.b16 %v1870
    %v3028 = vunpack.c.l.b16 %v1871
    %v3029 = vunpack.c.h.b16 %v1871
    %v3030 = vunpack.c.l.b16 %v1872
    %v3031 = vunpack.c.h.b16 %v1872
    %v3032 = vunpack.c.l.b16 %v1873
    %v3033 = vunpack.c.h.b16 %v1873
    %v3034 = vunpack.c.l.b16 %v1874
    %v3035 = vunpack.c.h.b16 %v1874
    %v3036 = vunpack.c.l.b16 %v1875
    %v3037 = vunpack.c.h.b16 %v1875
    %v3038 = vunpack.c.l.b16 %v1876
    %v3039 = vunpack.c.h.b16 %v1876
    %v3040 = vunpack.c.l.b16 %v1877
    %v3041 = vunpack.c.h.b16 %v1877
    %v3042 = vunpack.c.l.b16 %v1878
    %v3043 = vunpack.c.h.b16 %v1878
    %v3044 = vunpack.c.l.b16 %v1879
    %v3045 = vunpack.c.h.b16 %v1879
    %v3046 = vunpack.c.l.b16 %v1880
    %v3047 = vunpack.c.h.b16 %v1880
    %v3048 = vunpack.c.l.b16 %v1881
    %v3049 = vunpack.c.h.b16 %v1881
    %v3050 = vunpack.c.l.b16 %v1882
    %v3051 = vunpack.c.h.b16 %v1882
    %v3052 = vunpack.c.l.b16 %v1883
    %v3053 = vunpack.c.h.b16 %v1883
    %v3054 = vunpack.c.l.b16 %v1884
    %v3055 = vunpack.c.h.b16 %v1884
    %v3056 = vunpack.c.l.b16 %v1885
    %v3057 = vunpack.c.h.b16 %v1885
    %v3058 = vunpack.c.l.b16 %v1886
    %v3059 = vunpack.c.h.b16 %v1886
    %v3060 = vunpack.c.l.b16 %v1887
    %v3061 = vunpack.c.h.b16 %v1887
    %v3062 = vunpack.c.l.b16 %v1888
    %v3063 = vunpack.c.h.b16 %v1888
    %v3064 = vpack.c.b16 %v2554, %v2552
    %v3065 = vpack.c.b16 %v2555, %v2553
    %v3066 = vpack.c.b16 %v2558, %v2556
    %v3067 = vpack.c.b16 %v2559, %v2557
    %v3068 = vpack.c.b16 %v2562, %v2560
    %v3069 = vpack.c.b16 %v2563, %v2561
    %v3070 = vpack.c.b16 %v2566, %v2564
    %v3071 = vpack.c.b16 %v2567, %v2565
    %v3072 = vpack.c.b16 %v2570, %v2568
    %v3073 = vpack.c.b16 %v2571, %v2569
    %v3074 = vpack.c.b16 %v2574, %v2572
    %v3075 = vpack.c.b16 %v2575, %v2573
    %v3076 = vpack.c.b16 %v2578, %v2576
    %v3077 = vpack.c.b16 %v2579, %v2577
    %v3078 = vpack.c.b16 %v2582, %v2580
    %v3079 = vpack.c.b16 %v2583, %v2581
    %v3080 = vpack.c.b16 %v2586, %v2584
    %v3081 = vpack.c.b16 %v2587, %v2585
    %v3082 = vpack.c.b16 %v2590, %v2588
    %v3083 = vpack.c.b16 %v2591, %v2589
    %v3084 = vpack.c.b16 %v2594, %v2592
    %v3085 = vpack.c.b16 %v2595, %v2593
    %v3086 = vpack.c.b16 %v2598, %v2596
    %v3087 = vpack.c.b16 %v2599, %v2597
    %v3088 = vpack.c.b16 %v2602, %v2600
    %v3089 = vpack.c.b16 %v2603, %v2601
    %v3090 = vpack.c.b16 %v2606, %v2604
    %v3091 = vpack.c.b16 %v2607, %v2605
    %v3092 = vpack.c.b16 %v2610, %v2608
    %v3093 = vpack.c.b16 %v2611, %v2609
    %v3094 = vpack.c.b16 %v2614, %v2612
    %v3095 = vpack.c.b16 %v2615, %v2613
    %v3096 = vpack.c.b16 %v2618, %v2616
    %v3097 = vpack.c.b16 %v2619, %v2617
    %v3098 = vpack.c.b16 %v2622, %v2620
    %v3099 = vpack.c.b16 %v2623, %v2621
    %v3100 = vpack.c.b16 %v2626, %v2624
    %v3101 = vpack.c.b16 %v2627, %v2625
    %v3102 = vpack.c.b16 %v2630, %v2628
    %v3103 = vpack.c.b16 %v2631, %v2629
    %v3104 = vpack.c.b16 %v2634, %v2632
    %v3105 = vpack.c.b16 %v2635, %v2633
    %v3106 = vpack.c.b16 %v2638, %v2636
    %v3107 = vpack.c.b16 %v2639, %v2637
    %v3108 = vpack.c.b16 %v2642, %v2640
    %v3109 = vpack.c.b16 %v2643, %v2641
    %v3110 = vpack.c.b16 %v2646, %v2644
    %v3111 = vpack.c.b16 %v2647, %v2645
    %v3112 = vpack.c.b16 %v2650, %v2648
    %v3113 = vpack.c.b16 %v2651, %v2649
    %v3114 = vpack.c.b16 %v2654, %v2652
    %v3115 = vpack.c.b16 %v2655, %v2653
    %v3116 = vpack.c.b16 %v2658, %v2656
    %v3117 = vpack.c.b16 %v2659, %v2657
    %v3118 = vpack.c.b16 %v2662, %v2660
    %v3119 = vpack.c.b16 %v2663, %v2661
    %v3120 = vpack.c.b16 %v2666, %v2664
    %v3121 = vpack.c.b16 %v2667, %v2665
    %v3122 = vpack.c.b16 %v2670, %v2668
    %v3123 = vpack.c.b16 %v2671, %v2669
    %v3124 = vpack.c.b16 %v2674, %v2672
    %v3125 = vpack.c.b16 %v2675, %v2673
    %v3126 = vpack.c.b16 %v2678, %v2676
    %v3127 = vpack.c.b16 %v2679, %v2677
    %v3128 = vpack.c.b16 %v2682, %v2680
    %v3129 = vpack.c.b16 %v2683, %v2681
    %v3130 = vpack.c.b16 %v2686, %v2684
    %v3131 = vpack.c.b16 %v2687, %v2685
    %v3132 = vpack.c.b16 %v2690, %v2688
    %v3133 = vpack.c.b16 %v2691, %v2689
    %v3134 = vpack.c.b16 %v2694, %v2692
    %v3135 = vpack.c.b16 %v2695, %v2693
    %v3136 = vpack.c.b16 %v2698, %v2696
    %v3137 = vpack.c.b16 %v2699, %v2697
    %v3138 = vpack.c.b16 %v2702, %v2700
    %v3139 = vpack.c.b16 %v2703, %v2701
    %v3140 = vpack.c.b16 %v2706, %v2704
    %v3141 = vpack.c.b16 %v2707, %v2705
    %v3142 = vpack.c.b16 %v2710, %v2708
    %v3143 = vpack.c.b16 %v2711, %v2709
    %v3144 = vpack.c.b16 %v2714, %v2712
    %v3145 = vpack.c.b16 %v2715, %v2713
    %v3146 = vpack.c.b16 %v2718, %v2716
    %v3147 = vpack.c.b16 %v2719, %v2717
    %v3148 = vpack.c.b16 %v2722, %v2720
    %v3149 = vpack.c.b16 %v2723, %v2721
    %v3150 = vpack.c.b16 %v2726, %v2724
    %v3151 = vpack.c.b16 %v2727, %v2725
    %v3152 = vpack.c.b16 %v2730, %v2728
    %v3153 = vpack.c.b16 %v2731, %v2729
    %v3154 = vpack.c.b16 %v2734, %v2732
    %v3155 = vpack.c.b16 %v2735, %v2733
    %v3156 = vpack.c.b16 %v2738, %v2736
    %v3157 = vpack.c.b16 %v2739, %v2737
    %v3158 = vpack.c.b16 %v2742, %v2740
    %v3159 = vpack.c.b16 %v2743, %v2741
    %v3160 = vpack.c.b16 %v2746, %v2744
    %v3161 = vpack.c.b16 %v2747, %v2745
    %v3162 = vpack.c.b16 %v2750, %v2748
    %v3163 = vpack.c.b16 %v2751, %v2749
    %v3164 = vpack.c.b16 %v2754, %v2752
    %v3165 = vpack.c.b16 %v2755, %v2753
    %v3166 = vpack.c.b16 %v2758, %v2756
    %v3167 = vpack.c.b16 %v2759, %v2757
    %v3168 = vpack.c.b16 %v2762, %v2760
    %v3169 = vpack.c.b16 %v2763, %v2761
    %v3170 = vpack.c.b16 %v2766, %v2764
    %v3171 = vpack.c.b16 %v2767, %v2765
    %v3172 = vpack.c.b16 %v2770, %v2768
    %v3173 = vpack.c.b16 %v2771, %v2769
    %v3174 = vpack.c.b16 %v2774, %v2772
    %v3175 = vpack.c.b16 %v2775, %v2773
    %v3176 = vpack.c.b16 %v2778, %v2776
    %v3177 = vpack.c.b16 %v2779, %v2777
    %v3178 = vpack.c.b16 %v2782, %v2780
    %v3179 = vpack.c.b16 %v2783, %v2781
    %v3180 = vpack.c.b16 %v2786, %v2784
    %v3181 = vpack.c.b16 %v2787, %v2785
    %v3182 = vpack.c.b16 %v2790, %v2788
    %v3183 = vpack.c.b16 %v2791, %v2789
    %v3184 = vpack.c.b16 %v2794, %v2792
    %v3185 = vpack.c.b16 %v2795, %v2793
    %v3186 = vpack.c.b16 %v2798, %v2796
    %v3187 = vpack.c.b16 %v2799, %v2797
    %v3188 = vpack.c.b16 %v2802, %v2800
    %v3189 = vpack.c.b16 %v2803, %v2801
    %v3190 = vpack.c.b16 %v2806, %v2804
    %v3191 = vpack.c.b16 %v2807, %v2805
    %v3192 = vpack.c.b16 %v2810, %v2808
    %v3193 = vpack.c.b16 %v2811, %v2809
    %v3194 = vpack.c.b16 %v2814, %v2812
    %v3195 = vpack.c.b16 %v2815, %v2813
    %v3196 = vpack.c.b16 %v2818, %v2816
    %v3197 = vpack.c.b16 %v2819, %v2817
    %v3198 = vpack.c.b16 %v2822, %v2820
    %v3199 = vpack.c.b16 %v2823, %v2821
    %v3200 = vpack.c.b16 %v2826, %v2824
    %v3201 = vpack.c.b16 %v2827, %v2825
    %v3202 = vpack.c.b16 %v2830, %v2828
    %v3203 = vpack.c.b16 %v2831, %v2829
    %v3204 = vpack.c.b16 %v2834, %v2832
    %v3205 = vpack.c.b16 %v2835, %v2833
    %v3206 = vpack.c.b16 %v2838, %v2836
    %v3207 = vpack.c.b16 %v2839, %v2837
    %v3208 = vpack.c.b16 %v2842, %v2840
    %v3209 = vpack.c.b16 %v2843, %v2841
    %v3210 = vpack.c.b16 %v2846, %v2844
    %v3211 = vpack.c.b16 %v2847, %v2845
    %v3212 = vpack.c.b16 %v2850, %v2848
    %v3213 = vpack.c.b16 %v2851, %v2849
    %v3214 = vpack.c.b16 %v2854, %v2852
    %v3215 = vpack.c.b16 %v2855, %v2853
    %v3216 = vpack.c.b16 %v2858, %v2856
    %v3217 = vpack.c.b16 %v2859, %v2857
    %v3218 = vpack.c.b16 %v2862, %v2860
    %v3219 = vpack.c.b16 %v2863, %v2861
    %v3220 = vpack.c.b16 %v2866, %v2864
    %v3221 = vpack.c.b16 %v2867, %v2865
    %v3222 = vpack.c.b16 %v2870, %v2868
    %v3223 = vpack.c.b16 %v2871, %v2869
    %v3224 = vpack.c.b16 %v2874, %v2872
    %v3225 = vpack.c.b16 %v2875, %v2873
    %v3226 = vpack.c.b16 %v2878, %v2876
    %v3227 = vpack.c.b16 %v2879, %v2877
    %v3228 = vpack.c.b16 %v2882, %v2880
    %v3229 = vpack.c.b16 %v2883, %v2881
    %v3230 = vpack.c.b16 %v2886, %v2884
    %v3231 = vpack.c.b16 %v2887, %v2885
    %v3232 = vpack.c.b16 %v2890, %v2888
    %v3233 = vpack.c.b16 %v2891, %v2889
    %v3234 = vpack.c.b16 %v2894, %v2892
    %v3235 = vpack.c.b16 %v2895, %v2893
    %v3236 = vpack.c.b16 %v2898, %v2896
    %v3237 = vpack.c.b16 %v2899, %v2897
    %v3238 = vpack.c.b16 %v2902, %v2900
    %v3239 = vpack.c.b16 %v2903, %v2901
    %v3240 = vpack.c.b16 %v2906, %v2904
    %v3241 = vpack.c.b16 %v2907, %v2905
    %v3242 = vpack.c.b16 %v2910, %v2908
    %v3243 = vpack.c.b16 %v2911, %v2909
    %v3244 = vpack.c.b16 %v2914, %v2912
    %v3245 = vpack.c.b16 %v2915, %v2913
    %v3246 = vpack.c.b16 %v2918, %v2916
    %v3247 = vpack.c.b16 %v2919, %v2917
    %v3248 = vpack.c.b16 %v2922, %v2920
    %v3249 = vpack.c.b16 %v2923, %v2921
    %v3250 = vpack.c.b16 %v2926, %v2924
    %v3251 = vpack.c.b16 %v2927, %v2925
    %v3252 = vpack.c.b16 %v2930, %v2928
    %v3253 = vpack.c.b16 %v2931, %v2929
    %v3254 = vpack.c.b16 %v2934, %v2932
    %v3255 = vpack.c.b16 %v2935, %v2933
    %v3256 = vpack.c.b16 %v2938, %v2936
    %v3257 = vpack.c.b16 %v2939, %v2937
    %v3258 = vpack.c.b16 %v2942, %v2940
    %v3259 = vpack.c.b16 %v2943, %v2941
    %v3260 = vpack.c.b16 %v2946, %v2944
    %v3261 = vpack.c.b16 %v2947, %v2945
    %v3262 = vpack.c.b16 %v2950, %v2948
    %v3263 = vpack.c.b16 %v2951, %v2949
    %v3264 = vpack.c.b16 %v2954, %v2952
    %v3265 = vpack.c.b16 %v2955, %v2953
    %v3266 = vpack.c.b16 %v2958, %v2956
    %v3267 = vpack.c.b16 %v2959, %v2957
    %v3268 = vpack.c.b16 %v2962, %v2960
    %v3269 = vpack.c.b16 %v2963, %v2961
    %v3270 = vpack.c.b16 %v2966, %v2964
    %v3271 = vpack.c.b16 %v2967, %v2965
    %v3272 = vpack.c.b16 %v2970, %v2968
    %v3273 = vpack.c.b16 %v2971, %v2969
    %v3274 = vpack.c.b16 %v2974, %v2972
    %v3275 = vpack.c.b16 %v2975, %v2973
    %v3276 = vpack.c.b16 %v2978, %v2976
    %v3277 = vpack.c.b16 %v2979, %v2977
    %v3278 = vpack.c.b16 %v2982, %v2980
    %v3279 = vpack.c.b16 %v2983, %v2981
    %v3280 = vpack.c.b16 %v2986, %v2984
    %v3281 = vpack.c.b16 %v2987, %v2985
    %v3282 = vpack.c.b16 %v2990, %v2988
    %v3283 = vpack.c.b16 %v2991, %v2989
    %v3284 = vpack.c.b16 %v2994, %v2992
    %v3285 = vpack.c.b16 %v2995, %v2993
    %v3286 = vpack.c.b16 %v2998, %v2996
    %v3287 = vpack.c.b16 %v2999, %v2997
    %v3288 = vpack.c.b16 %v3002, %v3000
    %v3289 = vpack.c.b16 %v3003, %v3001
    %v3290 = vpack.c.b16 %v3006, %v3004
    %v3291 = vpack.c.b16 %v3007, %v3005
    %v3292 = vpack.c.b16 %v3010, %v3008
    %v3293 = vpack.c.b16 %v3011, %v3009
    %v3294 = vpack.c.b16 %v3014, %v3012
    %v3295 = vpack.c.b16 %v3015, %v3013
    %v3296 = vpack.c.b16 %v3018, %v3016
    %v3297 = vpack.c.b16 %v3019, %v3017
    %v3298 = vpack.c.b16 %v3022, %v3020
    %v3299 = vpack.c.b16 %v3023, %v3021
    %v3300 = vpack.c.b16 %v3026, %v3024
    %v3301 = vpack.c.b16 %v3027, %v3025
    %v3302 = vpack.c.b16 %v3030, %v3028
    %v3303 = vpack.c.b16 %v3031, %v3029
    %v3304 = vpack.c.b16 %v3034, %v3032
    %v3305 = vpack.c.b16 %v3035, %v3033
    %v3306 = vpack.c.b16 %v3038, %v3036
    %v3307 = vpack.c.b16 %v3039, %v3037
    %v3308 = vpack.c.b16 %v3042, %v3040
    %v3309 = vpack.c.b16 %v3043, %v3041
    %v3310 = vpack.c.b16 %v3046, %v3044
    %v3311 = vpack.c.b16 %v3047, %v3045
    %v3312 = vpack.c.b16 %v3050, %v3048
    %v3313 = vpack.c.b16 %v3051, %v3049
    %v3314 = vpack.c.b16 %v3054, %v3052
    %v3315 = vpack.c.b16 %v3055, %v3053
    %v3316 = vpack.c.b16 %v3058, %v3056
    %v3317 = vpack.c.b16 %v3059, %v3057
    %v3318 = vpack.c.b16 %v3062, %v3060
    %v3319 = vpack.c.b16 %v3063, %v3061
    %3576 = vmatprep.subr.bf16.mxu0 %v3079
    %3577 = vmatpush1.bf16.msra.mxu0 %v3078
    %3578 = vmatprep.subr.bf16.mxu0 %v3077
    %3579 = vmatpush1.bf16.msra.mxu0 %v3076
    %3580 = vmatprep.subr.bf16.mxu0 %v3075
    %3581 = vmatpush1.bf16.msra.mxu0 %v3074
    %3582 = vmatprep.subr.bf16.mxu0 %v3073
    %3583 = vmatpush1.bf16.msra.mxu0 %v3072
    %3584 = vmatprep.subr.bf16.mxu0 %v3071
    %3585 = vmatpush1.bf16.msra.mxu0 %v3070
    %3586 = vmatprep.subr.bf16.mxu0 %v3069
    %3587 = vmatpush1.bf16.msra.mxu0 %v3068
    %3588 = vmatprep.subr.bf16.mxu0 %v3067
    %3589 = vmatpush1.bf16.msra.mxu0 %v3066
    %3590 = vmatprep.subr.bf16.mxu0 %v3065
    %3591 = vmatpush1.bf16.msra.mxu0 %v3064
    %3592 = vmatprep.subr.bf16.mxu0 %v3095
    %3593 = vmatpush2.bf16.msra.mxu0 %v3094
    %3594 = vmatprep.subr.bf16.mxu0 %v3093
    %3595 = vmatpush2.bf16.msra.mxu0 %v3092
    %3596 = vmatprep.subr.bf16.mxu0 %v3091
    %3597 = vmatpush2.bf16.msra.mxu0 %v3090
    %3598 = vmatprep.subr.bf16.mxu0 %v3089
    %3599 = vmatpush2.bf16.msra.mxu0 %v3088
    %3600 = vmatprep.subr.bf16.mxu0 %v3087
    %3601 = vmatpush2.bf16.msra.mxu0 %v3086
    %3602 = vmatprep.subr.bf16.mxu0 %v3085
    %3603 = vmatpush2.bf16.msra.mxu0 %v3084
    %3604 = vmatprep.subr.bf16.mxu0 %v3083
    %3605 = vmatpush2.bf16.msra.mxu0 %v3082
    %3606 = vmatprep.subr.bf16.mxu0 %v3081
    %3607 = vmatpush2.bf16.msra.mxu0 %v3080
    %3608 = vmatprep.mubr.bf16.mxu0 %v2265
    %3609 = vmatmul.mubr.bf16.gmra.mxu0 %v2264
    %v3610 = vpop.f32.mrf.mxu0
    %v3611 = vadd.f32 0.0, %v3610
    %v3612 = vpop.f32.mrf.mxu0
    %v3613 = vadd.f32 0.0, %v3612
    %v3614 = vpop.f32.mrf.mxu0
    %v3615 = vpop.f32.mrf.mxu0
    %3616 = vdwg.mxu0
    %3617 = vmatprep.subr.bf16.mxu0 %v3111
    %3618 = vmatpush1.bf16.msra.mxu0 %v3110
    %3619 = vmatprep.subr.bf16.mxu0 %v3109
    %3620 = vmatpush1.bf16.msra.mxu0 %v3108
    %3621 = vmatprep.subr.bf16.mxu0 %v3107
    %3622 = vmatpush1.bf16.msra.mxu0 %v3106
    %3623 = vmatprep.subr.bf16.mxu0 %v3105
    %3624 = vmatpush1.bf16.msra.mxu0 %v3104
    %3625 = vmatprep.subr.bf16.mxu0 %v3103
    %3626 = vmatpush1.bf16.msra.mxu0 %v3102
    %3627 = vmatprep.subr.bf16.mxu0 %v3101
    %3628 = vmatpush1.bf16.msra.mxu0 %v3100
    %3629 = vmatprep.subr.bf16.mxu0 %v3099
    %3630 = vmatpush1.bf16.msra.mxu0 %v3098
    %3631 = vmatprep.subr.bf16.mxu0 %v3097
    %3632 = vmatpush1.bf16.msra.mxu0 %v3096
    %3633 = vmatprep.subr.bf16.mxu0 %v3127
    %3634 = vmatpush2.bf16.msra.mxu0 %v3126
    %3635 = vmatprep.subr.bf16.mxu0 %v3125
    %3636 = vmatpush2.bf16.msra.mxu0 %v3124
    %3637 = vmatprep.subr.bf16.mxu0 %v3123
    %3638 = vmatpush2.bf16.msra.mxu0 %v3122
    %3639 = vmatprep.subr.bf16.mxu0 %v3121
    %3640 = vmatpush2.bf16.msra.mxu0 %v3120
    %3641 = vmatprep.subr.bf16.mxu0 %v3119
    %3642 = vmatpush2.bf16.msra.mxu0 %v3118
    %3643 = vmatprep.subr.bf16.mxu0 %v3117
    %3644 = vmatpush2.bf16.msra.mxu0 %v3116
    %3645 = vmatprep.subr.bf16.mxu0 %v3115
    %3646 = vmatpush2.bf16.msra.mxu0 %v3114
    %3647 = vmatprep.subr.bf16.mxu0 %v3113
    %3648 = vmatpush2.bf16.msra.mxu0 %v3112
    %3649 = vmatprep.mubr.bf16.mxu0 %v2267
    %3650 = vmatmul.mubr.bf16.gmra.mxu0 %v2266
    %v3651 = vpop.f32.mrf.mxu0
    %v3652 = vadd.f32 %v3611, %v3651
    %v3653 = vpop.f32.mrf.mxu0
    %v3654 = vadd.f32 %v3613, %v3653
    %v3655 = vpop.f32.mrf.mxu0
    %v3656 = vpop.f32.mrf.mxu0
    %3657 = vdwg.mxu0
    %3658 = vmatprep.subr.bf16.mxu0 %v3143
    %3659 = vmatpush1.bf16.msra.mxu0 %v3142
    %3660 = vmatprep.subr.bf16.mxu0 %v3141
    %3661 = vmatpush1.bf16.msra.mxu0 %v3140
    %3662 = vmatprep.subr.bf16.mxu0 %v3139
    %3663 = vmatpush1.bf16.msra.mxu0 %v3138
    %3664 = vmatprep.subr.bf16.mxu0 %v3137
    %3665 = vmatpush1.bf16.msra.mxu0 %v3136
    %3666 = vmatprep.subr.bf16.mxu0 %v3135
    %3667 = vmatpush1.bf16.msra.mxu0 %v3134
    %3668 = vmatprep.subr.bf16.mxu0 %v3133
    %3669 = vmatpush1.bf16.msra.mxu0 %v3132
    %3670 = vmatprep.subr.bf16.mxu0 %v3131
    %3671 = vmatpush1.bf16.msra.mxu0 %v3130
    %3672 = vmatprep.subr.bf16.mxu0 %v3129
    %3673 = vmatpush1.bf16.msra.mxu0 %v3128
    %3674 = vmatprep.subr.bf16.mxu0 %v3159
    %3675 = vmatpush2.bf16.msra.mxu0 %v3158
    %3676 = vmatprep.subr.bf16.mxu0 %v3157
    %3677 = vmatpush2.bf16.msra.mxu0 %v3156
    %3678 = vmatprep.subr.bf16.mxu0 %v3155
    %3679 = vmatpush2.bf16.msra.mxu0 %v3154
    %3680 = vmatprep.subr.bf16.mxu0 %v3153
    %3681 = vmatpush2.bf16.msra.mxu0 %v3152
    %3682 = vmatprep.subr.bf16.mxu0 %v3151
    %3683 = vmatpush2.bf16.msra.mxu0 %v3150
    %3684 = vmatprep.subr.bf16.mxu0 %v3149
    %3685 = vmatpush2.bf16.msra.mxu0 %v3148
    %3686 = vmatprep.subr.bf16.mxu0 %v3147
    %3687 = vmatpush2.bf16.msra.mxu0 %v3146
    %3688 = vmatprep.subr.bf16.mxu0 %v3145
    %3689 = vmatpush2.bf16.msra.mxu0 %v3144
    %3690 = vmatprep.mubr.bf16.mxu0 %v2269
    %3691 = vmatmul.mubr.bf16.gmra.mxu0 %v2268
    %v3692 = vpop.f32.mrf.mxu0
    %v3693 = vadd.f32 %v3652, %v3692
    %v3694 = vpop.f32.mrf.mxu0
    %v3695 = vadd.f32 %v3654, %v3694
    %v3696 = vpop.f32.mrf.mxu0
    %v3697 = vpop.f32.mrf.mxu0
    %3698 = vdwg.mxu0
    %3699 = vmatprep.subr.bf16.mxu0 %v3175
    %3700 = vmatpush1.bf16.msra.mxu0 %v3174
    %3701 = vmatprep.subr.bf16.mxu0 %v3173
    %3702 = vmatpush1.bf16.msra.mxu0 %v3172
    %3703 = vmatprep.subr.bf16.mxu0 %v3171
    %3704 = vmatpush1.bf16.msra.mxu0 %v3170
    %3705 = vmatprep.subr.bf16.mxu0 %v3169
    %3706 = vmatpush1.bf16.msra.mxu0 %v3168
    %3707 = vmatprep.subr.bf16.mxu0 %v3167
    %3708 = vmatpush1.bf16.msra.mxu0 %v3166
    %3709 = vmatprep.subr.bf16.mxu0 %v3165
    %3710 = vmatpush1.bf16.msra.mxu0 %v3164
    %3711 = vmatprep.subr.bf16.mxu0 %v3163
    %3712 = vmatpush1.bf16.msra.mxu0 %v3162
    %3713 = vmatprep.subr.bf16.mxu0 %v3161
    %3714 = vmatpush1.bf16.msra.mxu0 %v3160
    %3715 = vmatprep.subr.bf16.mxu0 %v3191
    %3716 = vmatpush2.bf16.msra.mxu0 %v3190
    %3717 = vmatprep.subr.bf16.mxu0 %v3189
    %3718 = vmatpush2.bf16.msra.mxu0 %v3188
    %3719 = vmatprep.subr.bf16.mxu0 %v3187
    %3720 = vmatpush2.bf16.msra.mxu0 %v3186
    %3721 = vmatprep.subr.bf16.mxu0 %v3185
    %3722 = vmatpush2.bf16.msra.mxu0 %v3184
    %3723 = vmatprep.subr.bf16.mxu0 %v3183
    %3724 = vmatpush2.bf16.msra.mxu0 %v3182
    %3725 = vmatprep.subr.bf16.mxu0 %v3181
    %3726 = vmatpush2.bf16.msra.mxu0 %v3180
    %3727 = vmatprep.subr.bf16.mxu0 %v3179
    %3728 = vmatpush2.bf16.msra.mxu0 %v3178
    %3729 = vmatprep.subr.bf16.mxu0 %v3177
    %3730 = vmatpush2.bf16.msra.mxu0 %v3176
    %3731 = vmatprep.mubr.bf16.mxu0 %v2271
    %3732 = vmatmul.mubr.bf16.gmra.mxu0 %v2270
    %v3733 = vpop.f32.mrf.mxu0
    %v3734 = vadd.f32 %v3693, %v3733
    %v3735 = vpop.f32.mrf.mxu0
    %v3736 = vadd.f32 %v3695, %v3735
    %v3737 = vpop.f32.mrf.mxu0
    %v3738 = vpop.f32.mrf.mxu0
    %3739 = vdwg.mxu0
    %3740 = vmatprep.subr.bf16.mxu0 %v3207
    %3741 = vmatpush1.bf16.msra.mxu0 %v3206
    %3742 = vmatprep.subr.bf16.mxu0 %v3205
    %3743 = vmatpush1.bf16.msra.mxu0 %v3204
    %3744 = vmatprep.subr.bf16.mxu0 %v3203
    %3745 = vmatpush1.bf16.msra.mxu0 %v3202
    %3746 = vmatprep.subr.bf16.mxu0 %v3201
    %3747 = vmatpush1.bf16.msra.mxu0 %v3200
    %3748 = vmatprep.subr.bf16.mxu0 %v3199
    %3749 = vmatpush1.bf16.msra.mxu0 %v3198
    %3750 = vmatprep.subr.bf16.mxu0 %v3197
    %3751 = vmatpush1.bf16.msra.mxu0 %v3196
    %3752 = vmatprep.subr.bf16.mxu0 %v3195
    %3753 = vmatpush1.bf16.msra.mxu0 %v3194
    %3754 = vmatprep.subr.bf16.mxu0 %v3193
    %3755 = vmatpush1.bf16.msra.mxu0 %v3192
    %3756 = vmatprep.subr.bf16.mxu0 %v3223
    %3757 = vmatpush2.bf16.msra.mxu0 %v3222
    %3758 = vmatprep.subr.bf16.mxu0 %v3221
    %3759 = vmatpush2.bf16.msra.mxu0 %v3220
    %3760 = vmatprep.subr.bf16.mxu0 %v3219
    %3761 = vmatpush2.bf16.msra.mxu0 %v3218
    %3762 = vmatprep.subr.bf16.mxu0 %v3217
    %3763 = vmatpush2.bf16.msra.mxu0 %v3216
    %3764 = vmatprep.subr.bf16.mxu0 %v3215
    %3765 = vmatpush2.bf16.msra.mxu0 %v3214
    %3766 = vmatprep.subr.bf16.mxu0 %v3213
    %3767 = vmatpush2.bf16.msra.mxu0 %v3212
    %3768 = vmatprep.subr.bf16.mxu0 %v3211
    %3769 = vmatpush2.bf16.msra.mxu0 %v3210
    %3770 = vmatprep.subr.bf16.mxu0 %v3209
    %3771 = vmatpush2.bf16.msra.mxu0 %v3208
    %3772 = vmatprep.mubr.bf16.mxu0 %v2273
    %3773 = vmatmul.mubr.bf16.gmra.mxu0 %v2272
    %v3774 = vpop.f32.mrf.mxu0
    %v3775 = vadd.f32 %v3734, %v3774
    %v3776 = vpop.f32.mrf.mxu0
    %v3777 = vadd.f32 %v3736, %v3776
    %v3778 = vpop.f32.mrf.mxu0
    %v3779 = vpop.f32.mrf.mxu0
    %3780 = vdwg.mxu0
    %3781 = vmatprep.subr.bf16.mxu0 %v3239
    %3782 = vmatpush1.bf16.msra.mxu0 %v3238
    %3783 = vmatprep.subr.bf16.mxu0 %v3237
    %3784 = vmatpush1.bf16.msra.mxu0 %v3236
    %3785 = vmatprep.subr.bf16.mxu0 %v3235
    %3786 = vmatpush1.bf16.msra.mxu0 %v3234
    %3787 = vmatprep.subr.bf16.mxu0 %v3233
    %3788 = vmatpush1.bf16.msra.mxu0 %v3232
    %3789 = vmatprep.subr.bf16.mxu0 %v3231
    %3790 = vmatpush1.bf16.msra.mxu0 %v3230
    %3791 = vmatprep.subr.bf16.mxu0 %v3229
    %3792 = vmatpush1.bf16.msra.mxu0 %v3228
    %3793 = vmatprep.subr.bf16.mxu0 %v3227
    %3794 = vmatpush1.bf16.msra.mxu0 %v3226
    %3795 = vmatprep.subr.bf16.mxu0 %v3225
    %3796 = vmatpush1.bf16.msra.mxu0 %v3224
    %3797 = vmatprep.subr.bf16.mxu0 %v3255
    %3798 = vmatpush2.bf16.msra.mxu0 %v3254
    %3799 = vmatprep.subr.bf16.mxu0 %v3253
    %3800 = vmatpush2.bf16.msra.mxu0 %v3252
    %3801 = vmatprep.subr.bf16.mxu0 %v3251
    %3802 = vmatpush2.bf16.msra.mxu0 %v3250
    %3803 = vmatprep.subr.bf16.mxu0 %v3249
    %3804 = vmatpush2.bf16.msra.mxu0 %v3248
    %3805 = vmatprep.subr.bf16.mxu0 %v3247
    %3806 = vmatpush2.bf16.msra.mxu0 %v3246
    %3807 = vmatprep.subr.bf16.mxu0 %v3245
    %3808 = vmatpush2.bf16.msra.mxu0 %v3244
    %3809 = vmatprep.subr.bf16.mxu0 %v3243
    %3810 = vmatpush2.bf16.msra.mxu0 %v3242
    %3811 = vmatprep.subr.bf16.mxu0 %v3241
    %3812 = vmatpush2.bf16.msra.mxu0 %v3240
    %3813 = vmatprep.mubr.bf16.mxu0 %v2275
    %3814 = vmatmul.mubr.bf16.gmra.mxu0 %v2274
    %v3815 = vpop.f32.mrf.mxu0
    %v3816 = vadd.f32 %v3775, %v3815
    %v3817 = vpop.f32.mrf.mxu0
    %v3818 = vadd.f32 %v3777, %v3817
    %v3819 = vpop.f32.mrf.mxu0
    %v3820 = vpop.f32.mrf.mxu0
    %3821 = vdwg.mxu0
    %3822 = vmatprep.subr.bf16.mxu0 %v3271
    %3823 = vmatpush1.bf16.msra.mxu0 %v3270
    %3824 = vmatprep.subr.bf16.mxu0 %v3269
    %3825 = vmatpush1.bf16.msra.mxu0 %v3268
    %3826 = vmatprep.subr.bf16.mxu0 %v3267
    %3827 = vmatpush1.bf16.msra.mxu0 %v3266
    %3828 = vmatprep.subr.bf16.mxu0 %v3265
    %3829 = vmatpush1.bf16.msra.mxu0 %v3264
    %3830 = vmatprep.subr.bf16.mxu0 %v3263
    %3831 = vmatpush1.bf16.msra.mxu0 %v3262
    %3832 = vmatprep.subr.bf16.mxu0 %v3261
    %3833 = vmatpush1.bf16.msra.mxu0 %v3260
    %3834 = vmatprep.subr.bf16.mxu0 %v3259
    %3835 = vmatpush1.bf16.msra.mxu0 %v3258
    %3836 = vmatprep.subr.bf16.mxu0 %v3257
    %3837 = vmatpush1.bf16.msra.mxu0 %v3256
    %3838 = vmatprep.subr.bf16.mxu0 %v3287
    %3839 = vmatpush2.bf16.msra.mxu0 %v3286
    %3840 = vmatprep.subr.bf16.mxu0 %v3285
    %3841 = vmatpush2.bf16.msra.mxu0 %v3284
    %3842 = vmatprep.subr.bf16.mxu0 %v3283
    %3843 = vmatpush2.bf16.msra.mxu0 %v3282
    %3844 = vmatprep.subr.bf16.mxu0 %v3281
    %3845 = vmatpush2.bf16.msra.mxu0 %v3280
    %3846 = vmatprep.subr.bf16.mxu0 %v3279
    %3847 = vmatpush2.bf16.msra.mxu0 %v3278
    %3848 = vmatprep.subr.bf16.mxu0 %v3277
    %3849 = vmatpush2.bf16.msra.mxu0 %v3276
    %3850 = vmatprep.subr.bf16.mxu0 %v3275
    %3851 = vmatpush2.bf16.msra.mxu0 %v3274
    %3852 = vmatprep.subr.bf16.mxu0 %v3273
    %3853 = vmatpush2.bf16.msra.mxu0 %v3272
    %3854 = vmatprep.mubr.bf16.mxu0 %v2277
    %3855 = vmatmul.mubr.bf16.gmra.mxu0 %v2276
    %v3856 = vpop.f32.mrf.mxu0
    %v3857 = vadd.f32 %v3816, %v3856
    %v3858 = vpop.f32.mrf.mxu0
    %v3859 = vadd.f32 %v3818, %v3858
    %v3860 = vpop.f32.mrf.mxu0
    %v3861 = vpop.f32.mrf.mxu0
    %3862 = vdwg.mxu0
    %3863 = vmatprep.subr.bf16.mxu0 %v3303
    %3864 = vmatpush1.bf16.msra.mxu0 %v3302
    %3865 = vmatprep.subr.bf16.mxu0 %v3301
    %3866 = vmatpush1.bf16.msra.mxu0 %v3300
    %3867 = vmatprep.subr.bf16.mxu0 %v3299
    %3868 = vmatpush1.bf16.msra.mxu0 %v3298
    %3869 = vmatprep.subr.bf16.mxu0 %v3297
    %3870 = vmatpush1.bf16.msra.mxu0 %v3296
    %3871 = vmatprep.subr.bf16.mxu0 %v3295
    %3872 = vmatpush1.bf16.msra.mxu0 %v3294
    %3873 = vmatprep.subr.bf16.mxu0 %v3293
    %3874 = vmatpush1.bf16.msra.mxu0 %v3292
    %3875 = vmatprep.subr.bf16.mxu0 %v3291
    %3876 = vmatpush1.bf16.msra.mxu0 %v3290
    %3877 = vmatprep.subr.bf16.mxu0 %v3289
    %3878 = vmatpush1.bf16.msra.mxu0 %v3288
    %3879 = vmatprep.subr.bf16.mxu0 %v3319
    %3880 = vmatpush2.bf16.msra.mxu0 %v3318
    %3881 = vmatprep.subr.bf16.mxu0 %v3317
    %3882 = vmatpush2.bf16.msra.mxu0 %v3316
    %3883 = vmatprep.subr.bf16.mxu0 %v3315
    %3884 = vmatpush2.bf16.msra.mxu0 %v3314
    %3885 = vmatprep.subr.bf16.mxu0 %v3313
    %3886 = vmatpush2.bf16.msra.mxu0 %v3312
    %3887 = vmatprep.subr.bf16.mxu0 %v3311
    %3888 = vmatpush2.bf16.msra.mxu0 %v3310
    %3889 = vmatprep.subr.bf16.mxu0 %v3309
    %3890 = vmatpush2.bf16.msra.mxu0 %v3308
    %3891 = vmatprep.subr.bf16.mxu0 %v3307
    %3892 = vmatpush2.bf16.msra.mxu0 %v3306
    %3893 = vmatprep.subr.bf16.mxu0 %v3305
    %3894 = vmatpush2.bf16.msra.mxu0 %v3304
    %3895 = vmatprep.mubr.bf16.mxu0 %v2279
    %3896 = vmatmul.mubr.bf16.gmra.mxu0 %v2278
    %v3897 = vpop.f32.mrf.mxu0
    %v3898 = vadd.f32 %v3857, %v3897
    %v3899 = vpop.f32.mrf.mxu0
    %v3900 = vadd.f32 %v3859, %v3899
    %v3901 = vpop.f32.mrf.mxu0
    %v3902 = vpop.f32.mrf.mxu0
    %3903 = vdwg.mxu0
    %v3904 = vld [vmem:[#allocation7] sm:$0xff]
    %v3905 = vld [vmem:[#allocation7 + $0x8] sm:$0xff]
    %v3906 = vld [vmem:[#allocation7 + $0x10] sm:$0xff]
    %v3907 = vld [vmem:[#allocation7 + $0x18] sm:$0xff]
    %v3908 = vld [vmem:[#allocation7 + $0x20] sm:$0xff]
    %v3909 = vld [vmem:[#allocation7 + $0x28] sm:$0xff]
    %v3910 = vld [vmem:[#allocation7 + $0x30] sm:$0xff]
    %v3911 = vld [vmem:[#allocation7 + $0x38] sm:$0xff]
    %v3912 = vld [vmem:[#allocation7 + $0x40] sm:$0xff]
    %v3913 = vld [vmem:[#allocation7 + $0x48] sm:$0xff]
    %v3914 = vld [vmem:[#allocation7 + $0x50] sm:$0xff]
    %v3915 = vld [vmem:[#allocation7 + $0x58] sm:$0xff]
    %v3916 = vld [vmem:[#allocation7 + $0x60] sm:$0xff]
    %v3917 = vld [vmem:[#allocation7 + $0x68] sm:$0xff]
    %v3918 = vld [vmem:[#allocation7 + $0x70] sm:$0xff]
    %v3919 = vld [vmem:[#allocation7 + $0x78] sm:$0xff]
    %v3920 = vld [vmem:[#allocation7 + $0x80] sm:$0xff]
    %v3921 = vld [vmem:[#allocation7 + $0x88] sm:$0xff]
    %v3922 = vld [vmem:[#allocation7 + $0x90] sm:$0xff]
    %v3923 = vld [vmem:[#allocation7 + $0x98] sm:$0xff]
    %v3924 = vld [vmem:[#allocation7 + $0xa0] sm:$0xff]
    %v3925 = vld [vmem:[#allocation7 + $0xa8] sm:$0xff]
    %v3926 = vld [vmem:[#allocation7 + $0xb0] sm:$0xff]
    %v3927 = vld [vmem:[#allocation7 + $0xb8] sm:$0xff]
    %v3928 = vld [vmem:[#allocation7 + $0xc0] sm:$0xff]
    %v3929 = vld [vmem:[#allocation7 + $0xc8] sm:$0xff]
    %v3930 = vld [vmem:[#allocation7 + $0xd0] sm:$0xff]
    %v3931 = vld [vmem:[#allocation7 + $0xd8] sm:$0xff]
    %v3932 = vld [vmem:[#allocation7 + $0xe0] sm:$0xff]
    %v3933 = vld [vmem:[#allocation7 + $0xe8] sm:$0xff]
    %v3934 = vld [vmem:[#allocation7 + $0xf0] sm:$0xff]
    %v3935 = vld [vmem:[#allocation7 + $0xf8] sm:$0xff]
    %v3936 = vld [vmem:[#allocation7 + $0x100] sm:$0xff]
    %v3937 = vld [vmem:[#allocation7 + $0x108] sm:$0xff]
    %v3938 = vld [vmem:[#allocation7 + $0x110] sm:$0xff]
    %v3939 = vld [vmem:[#allocation7 + $0x118] sm:$0xff]
    %v3940 = vld [vmem:[#allocation7 + $0x120] sm:$0xff]
    %v3941 = vld [vmem:[#allocation7 + $0x128] sm:$0xff]
    %v3942 = vld [vmem:[#allocation7 + $0x130] sm:$0xff]
    %v3943 = vld [vmem:[#allocation7 + $0x138] sm:$0xff]
    %v3944 = vld [vmem:[#allocation7 + $0x140] sm:$0xff]
    %v3945 = vld [vmem:[#allocation7 + $0x148] sm:$0xff]
    %v3946 = vld [vmem:[#allocation7 + $0x150] sm:$0xff]
    %v3947 = vld [vmem:[#allocation7 + $0x158] sm:$0xff]
    %v3948 = vld [vmem:[#allocation7 + $0x160] sm:$0xff]
    %v3949 = vld [vmem:[#allocation7 + $0x168] sm:$0xff]
    %v3950 = vld [vmem:[#allocation7 + $0x170] sm:$0xff]
    %v3951 = vld [vmem:[#allocation7 + $0x178] sm:$0xff]
    %v3952 = vld [vmem:[#allocation7 + $0x180] sm:$0xff]
    %v3953 = vld [vmem:[#allocation7 + $0x188] sm:$0xff]
    %v3954 = vld [vmem:[#allocation7 + $0x190] sm:$0xff]
    %v3955 = vld [vmem:[#allocation7 + $0x198] sm:$0xff]
    %v3956 = vld [vmem:[#allocation7 + $0x1a0] sm:$0xff]
    %v3957 = vld [vmem:[#allocation7 + $0x1a8] sm:$0xff]
    %v3958 = vld [vmem:[#allocation7 + $0x1b0] sm:$0xff]
    %v3959 = vld [vmem:[#allocation7 + $0x1b8] sm:$0xff]
    %v3960 = vld [vmem:[#allocation7 + $0x1c0] sm:$0xff]
    %v3961 = vld [vmem:[#allocation7 + $0x1c8] sm:$0xff]
    %v3962 = vld [vmem:[#allocation7 + $0x1d0] sm:$0xff]
    %v3963 = vld [vmem:[#allocation7 + $0x1d8] sm:$0xff]
    %v3964 = vld [vmem:[#allocation7 + $0x1e0] sm:$0xff]
    %v3965 = vld [vmem:[#allocation7 + $0x1e8] sm:$0xff]
    %v3966 = vld [vmem:[#allocation7 + $0x1f0] sm:$0xff]
    %v3967 = vld [vmem:[#allocation7 + $0x1f8] sm:$0xff]
    %v3968 = vld [vmem:[#allocation7 + $0x200] sm:$0xff]
    %v3969 = vld [vmem:[#allocation7 + $0x208] sm:$0xff]
    %v3970 = vld [vmem:[#allocation7 + $0x210] sm:$0xff]
    %v3971 = vld [vmem:[#allocation7 + $0x218] sm:$0xff]
    %v3972 = vld [vmem:[#allocation7 + $0x220] sm:$0xff]
    %v3973 = vld [vmem:[#allocation7 + $0x228] sm:$0xff]
    %v3974 = vld [vmem:[#allocation7 + $0x230] sm:$0xff]
    %v3975 = vld [vmem:[#allocation7 + $0x238] sm:$0xff]
    %v3976 = vld [vmem:[#allocation7 + $0x240] sm:$0xff]
    %v3977 = vld [vmem:[#allocation7 + $0x248] sm:$0xff]
    %v3978 = vld [vmem:[#allocation7 + $0x250] sm:$0xff]
    %v3979 = vld [vmem:[#allocation7 + $0x258] sm:$0xff]
    %v3980 = vld [vmem:[#allocation7 + $0x260] sm:$0xff]
    %v3981 = vld [vmem:[#allocation7 + $0x268] sm:$0xff]
    %v3982 = vld [vmem:[#allocation7 + $0x270] sm:$0xff]
    %v3983 = vld [vmem:[#allocation7 + $0x278] sm:$0xff]
    %v3984 = vld [vmem:[#allocation7 + $0x280] sm:$0xff]
    %v3985 = vld [vmem:[#allocation7 + $0x288] sm:$0xff]
    %v3986 = vld [vmem:[#allocation7 + $0x290] sm:$0xff]
    %v3987 = vld [vmem:[#allocation7 + $0x298] sm:$0xff]
    %v3988 = vld [vmem:[#allocation7 + $0x2a0] sm:$0xff]
    %v3989 = vld [vmem:[#allocation7 + $0x2a8] sm:$0xff]
    %v3990 = vld [vmem:[#allocation7 + $0x2b0] sm:$0xff]
    %v3991 = vld [vmem:[#allocation7 + $0x2b8] sm:$0xff]
    %v3992 = vld [vmem:[#allocation7 + $0x2c0] sm:$0xff]
    %v3993 = vld [vmem:[#allocation7 + $0x2c8] sm:$0xff]
    %v3994 = vld [vmem:[#allocation7 + $0x2d0] sm:$0xff]
    %v3995 = vld [vmem:[#allocation7 + $0x2d8] sm:$0xff]
    %v3996 = vld [vmem:[#allocation7 + $0x2e0] sm:$0xff]
    %v3997 = vld [vmem:[#allocation7 + $0x2e8] sm:$0xff]
    %v3998 = vld [vmem:[#allocation7 + $0x2f0] sm:$0xff]
    %v3999 = vld [vmem:[#allocation7 + $0x2f8] sm:$0xff]
    %v4000 = vld [vmem:[#allocation7 + $0x300] sm:$0xff]
    %v4001 = vld [vmem:[#allocation7 + $0x308] sm:$0xff]
    %v4002 = vld [vmem:[#allocation7 + $0x310] sm:$0xff]
    %v4003 = vld [vmem:[#allocation7 + $0x318] sm:$0xff]
    %v4004 = vld [vmem:[#allocation7 + $0x320] sm:$0xff]
    %v4005 = vld [vmem:[#allocation7 + $0x328] sm:$0xff]
    %v4006 = vld [vmem:[#allocation7 + $0x330] sm:$0xff]
    %v4007 = vld [vmem:[#allocation7 + $0x338] sm:$0xff]
    %v4008 = vld [vmem:[#allocation7 + $0x340] sm:$0xff]
    %v4009 = vld [vmem:[#allocation7 + $0x348] sm:$0xff]
    %v4010 = vld [vmem:[#allocation7 + $0x350] sm:$0xff]
    %v4011 = vld [vmem:[#allocation7 + $0x358] sm:$0xff]
    %v4012 = vld [vmem:[#allocation7 + $0x360] sm:$0xff]
    %v4013 = vld [vmem:[#allocation7 + $0x368] sm:$0xff]
    %v4014 = vld [vmem:[#allocation7 + $0x370] sm:$0xff]
    %v4015 = vld [vmem:[#allocation7 + $0x378] sm:$0xff]
    %v4016 = vld [vmem:[#allocation7 + $0x380] sm:$0xff]
    %v4017 = vld [vmem:[#allocation7 + $0x388] sm:$0xff]
    %v4018 = vld [vmem:[#allocation7 + $0x390] sm:$0xff]
    %v4019 = vld [vmem:[#allocation7 + $0x398] sm:$0xff]
    %v4020 = vld [vmem:[#allocation7 + $0x3a0] sm:$0xff]
    %v4021 = vld [vmem:[#allocation7 + $0x3a8] sm:$0xff]
    %v4022 = vld [vmem:[#allocation7 + $0x3b0] sm:$0xff]
    %v4023 = vld [vmem:[#allocation7 + $0x3b8] sm:$0xff]
    %v4024 = vld [vmem:[#allocation7 + $0x3c0] sm:$0xff]
    %v4025 = vld [vmem:[#allocation7 + $0x3c8] sm:$0xff]
    %v4026 = vld [vmem:[#allocation7 + $0x3d0] sm:$0xff]
    %v4027 = vld [vmem:[#allocation7 + $0x3d8] sm:$0xff]
    %v4028 = vld [vmem:[#allocation7 + $0x3e0] sm:$0xff]
    %v4029 = vld [vmem:[#allocation7 + $0x3e8] sm:$0xff]
    %v4030 = vld [vmem:[#allocation7 + $0x3f0] sm:$0xff]
    %v4031 = vld [vmem:[#allocation7 + $0x3f8] sm:$0xff]
    %v4032 = vld [vmem:[#allocation7 + $0x400] sm:$0xff]
    %v4033 = vld [vmem:[#allocation7 + $0x408] sm:$0xff]
    %v4034 = vld [vmem:[#allocation7 + $0x410] sm:$0xff]
    %v4035 = vld [vmem:[#allocation7 + $0x418] sm:$0xff]
    %v4036 = vld [vmem:[#allocation7 + $0x420] sm:$0xff]
    %v4037 = vld [vmem:[#allocation7 + $0x428] sm:$0xff]
    %v4038 = vld [vmem:[#allocation7 + $0x430] sm:$0xff]
    %v4039 = vld [vmem:[#allocation7 + $0x438] sm:$0xff]
    %v4040 = vld [vmem:[#allocation7 + $0x440] sm:$0xff]
    %v4041 = vld [vmem:[#allocation7 + $0x448] sm:$0xff]
    %v4042 = vld [vmem:[#allocation7 + $0x450] sm:$0xff]
    %v4043 = vld [vmem:[#allocation7 + $0x458] sm:$0xff]
    %v4044 = vld [vmem:[#allocation7 + $0x460] sm:$0xff]
    %v4045 = vld [vmem:[#allocation7 + $0x468] sm:$0xff]
    %v4046 = vld [vmem:[#allocation7 + $0x470] sm:$0xff]
    %v4047 = vld [vmem:[#allocation7 + $0x478] sm:$0xff]
    %v4048 = vld [vmem:[#allocation7 + $0x480] sm:$0xff]
    %v4049 = vld [vmem:[#allocation7 + $0x488] sm:$0xff]
    %v4050 = vld [vmem:[#allocation7 + $0x490] sm:$0xff]
    %v4051 = vld [vmem:[#allocation7 + $0x498] sm:$0xff]
    %v4052 = vld [vmem:[#allocation7 + $0x4a0] sm:$0xff]
    %v4053 = vld [vmem:[#allocation7 + $0x4a8] sm:$0xff]
    %v4054 = vld [vmem:[#allocation7 + $0x4b0] sm:$0xff]
    %v4055 = vld [vmem:[#allocation7 + $0x4b8] sm:$0xff]
    %v4056 = vld [vmem:[#allocation7 + $0x4c0] sm:$0xff]
    %v4057 = vld [vmem:[#allocation7 + $0x4c8] sm:$0xff]
    %v4058 = vld [vmem:[#allocation7 + $0x4d0] sm:$0xff]
    %v4059 = vld [vmem:[#allocation7 + $0x4d8] sm:$0xff]
    %v4060 = vld [vmem:[#allocation7 + $0x4e0] sm:$0xff]
    %v4061 = vld [vmem:[#allocation7 + $0x4e8] sm:$0xff]
    %v4062 = vld [vmem:[#allocation7 + $0x4f0] sm:$0xff]
    %v4063 = vld [vmem:[#allocation7 + $0x4f8] sm:$0xff]
    %v4064 = vld [vmem:[#allocation7 + $0x500] sm:$0xff]
    %v4065 = vld [vmem:[#allocation7 + $0x508] sm:$0xff]
    %v4066 = vld [vmem:[#allocation7 + $0x510] sm:$0xff]
    %v4067 = vld [vmem:[#allocation7 + $0x518] sm:$0xff]
    %v4068 = vld [vmem:[#allocation7 + $0x520] sm:$0xff]
    %v4069 = vld [vmem:[#allocation7 + $0x528] sm:$0xff]
    %v4070 = vld [vmem:[#allocation7 + $0x530] sm:$0xff]
    %v4071 = vld [vmem:[#allocation7 + $0x538] sm:$0xff]
    %v4072 = vld [vmem:[#allocation7 + $0x540] sm:$0xff]
    %v4073 = vld [vmem:[#allocation7 + $0x548] sm:$0xff]
    %v4074 = vld [vmem:[#allocation7 + $0x550] sm:$0xff]
    %v4075 = vld [vmem:[#allocation7 + $0x558] sm:$0xff]
    %v4076 = vld [vmem:[#allocation7 + $0x560] sm:$0xff]
    %v4077 = vld [vmem:[#allocation7 + $0x568] sm:$0xff]
    %v4078 = vld [vmem:[#allocation7 + $0x570] sm:$0xff]
    %v4079 = vld [vmem:[#allocation7 + $0x578] sm:$0xff]
    %v4080 = vld [vmem:[#allocation7 + $0x580] sm:$0xff]
    %v4081 = vld [vmem:[#allocation7 + $0x588] sm:$0xff]
    %v4082 = vld [vmem:[#allocation7 + $0x590] sm:$0xff]
    %v4083 = vld [vmem:[#allocation7 + $0x598] sm:$0xff]
    %v4084 = vld [vmem:[#allocation7 + $0x5a0] sm:$0xff]
    %v4085 = vld [vmem:[#allocation7 + $0x5a8] sm:$0xff]
    %v4086 = vld [vmem:[#allocation7 + $0x5b0] sm:$0xff]
    %v4087 = vld [vmem:[#allocation7 + $0x5b8] sm:$0xff]
    %v4088 = vld [vmem:[#allocation7 + $0x5c0] sm:$0xff]
    %v4089 = vld [vmem:[#allocation7 + $0x5c8] sm:$0xff]
    %v4090 = vld [vmem:[#allocation7 + $0x5d0] sm:$0xff]
    %v4091 = vld [vmem:[#allocation7 + $0x5d8] sm:$0xff]
    %v4092 = vld [vmem:[#allocation7 + $0x5e0] sm:$0xff]
    %v4093 = vld [vmem:[#allocation7 + $0x5e8] sm:$0xff]
    %v4094 = vld [vmem:[#allocation7 + $0x5f0] sm:$0xff]
    %v4095 = vld [vmem:[#allocation7 + $0x5f8] sm:$0xff]
    %v4096 = vld [vmem:[#allocation7 + $0x600] sm:$0xff]
    %v4097 = vld [vmem:[#allocation7 + $0x608] sm:$0xff]
    %v4098 = vld [vmem:[#allocation7 + $0x610] sm:$0xff]
    %v4099 = vld [vmem:[#allocation7 + $0x618] sm:$0xff]
    %v4100 = vld [vmem:[#allocation7 + $0x620] sm:$0xff]
    %v4101 = vld [vmem:[#allocation7 + $0x628] sm:$0xff]
    %v4102 = vld [vmem:[#allocation7 + $0x630] sm:$0xff]
    %v4103 = vld [vmem:[#allocation7 + $0x638] sm:$0xff]
    %v4104 = vld [vmem:[#allocation7 + $0x640] sm:$0xff]
    %v4105 = vld [vmem:[#allocation7 + $0x648] sm:$0xff]
    %v4106 = vld [vmem:[#allocation7 + $0x650] sm:$0xff]
    %v4107 = vld [vmem:[#allocation7 + $0x658] sm:$0xff]
    %v4108 = vld [vmem:[#allocation7 + $0x660] sm:$0xff]
    %v4109 = vld [vmem:[#allocation7 + $0x668] sm:$0xff]
    %v4110 = vld [vmem:[#allocation7 + $0x670] sm:$0xff]
    %v4111 = vld [vmem:[#allocation7 + $0x678] sm:$0xff]
    %v4112 = vld [vmem:[#allocation7 + $0x680] sm:$0xff]
    %v4113 = vld [vmem:[#allocation7 + $0x688] sm:$0xff]
    %v4114 = vld [vmem:[#allocation7 + $0x690] sm:$0xff]
    %v4115 = vld [vmem:[#allocation7 + $0x698] sm:$0xff]
    %v4116 = vld [vmem:[#allocation7 + $0x6a0] sm:$0xff]
    %v4117 = vld [vmem:[#allocation7 + $0x6a8] sm:$0xff]
    %v4118 = vld [vmem:[#allocation7 + $0x6b0] sm:$0xff]
    %v4119 = vld [vmem:[#allocation7 + $0x6b8] sm:$0xff]
    %v4120 = vld [vmem:[#allocation7 + $0x6c0] sm:$0xff]
    %v4121 = vld [vmem:[#allocation7 + $0x6c8] sm:$0xff]
    %v4122 = vld [vmem:[#allocation7 + $0x6d0] sm:$0xff]
    %v4123 = vld [vmem:[#allocation7 + $0x6d8] sm:$0xff]
    %v4124 = vld [vmem:[#allocation7 + $0x6e0] sm:$0xff]
    %v4125 = vld [vmem:[#allocation7 + $0x6e8] sm:$0xff]
    %v4126 = vld [vmem:[#allocation7 + $0x6f0] sm:$0xff]
    %v4127 = vld [vmem:[#allocation7 + $0x6f8] sm:$0xff]
    %v4128 = vld [vmem:[#allocation7 + $0x700] sm:$0xff]
    %v4129 = vld [vmem:[#allocation7 + $0x708] sm:$0xff]
    %v4130 = vld [vmem:[#allocation7 + $0x710] sm:$0xff]
    %v4131 = vld [vmem:[#allocation7 + $0x718] sm:$0xff]
    %v4132 = vld [vmem:[#allocation7 + $0x720] sm:$0xff]
    %v4133 = vld [vmem:[#allocation7 + $0x728] sm:$0xff]
    %v4134 = vld [vmem:[#allocation7 + $0x730] sm:$0xff]
    %v4135 = vld [vmem:[#allocation7 + $0x738] sm:$0xff]
    %v4136 = vld [vmem:[#allocation7 + $0x740] sm:$0xff]
    %v4137 = vld [vmem:[#allocation7 + $0x748] sm:$0xff]
    %v4138 = vld [vmem:[#allocation7 + $0x750] sm:$0xff]
    %v4139 = vld [vmem:[#allocation7 + $0x758] sm:$0xff]
    %v4140 = vld [vmem:[#allocation7 + $0x760] sm:$0xff]
    %v4141 = vld [vmem:[#allocation7 + $0x768] sm:$0xff]
    %v4142 = vld [vmem:[#allocation7 + $0x770] sm:$0xff]
    %v4143 = vld [vmem:[#allocation7 + $0x778] sm:$0xff]
    %v4144 = vld [vmem:[#allocation7 + $0x780] sm:$0xff]
    %v4145 = vld [vmem:[#allocation7 + $0x788] sm:$0xff]
    %v4146 = vld [vmem:[#allocation7 + $0x790] sm:$0xff]
    %v4147 = vld [vmem:[#allocation7 + $0x798] sm:$0xff]
    %v4148 = vld [vmem:[#allocation7 + $0x7a0] sm:$0xff]
    %v4149 = vld [vmem:[#allocation7 + $0x7a8] sm:$0xff]
    %v4150 = vld [vmem:[#allocation7 + $0x7b0] sm:$0xff]
    %v4151 = vld [vmem:[#allocation7 + $0x7b8] sm:$0xff]
    %v4152 = vld [vmem:[#allocation7 + $0x7c0] sm:$0xff]
    %v4153 = vld [vmem:[#allocation7 + $0x7c8] sm:$0xff]
    %v4154 = vld [vmem:[#allocation7 + $0x7d0] sm:$0xff]
    %v4155 = vld [vmem:[#allocation7 + $0x7d8] sm:$0xff]
    %v4156 = vld [vmem:[#allocation7 + $0x7e0] sm:$0xff]
    %v4157 = vld [vmem:[#allocation7 + $0x7e8] sm:$0xff]
    %v4158 = vld [vmem:[#allocation7 + $0x7f0] sm:$0xff]
    %v4159 = vld [vmem:[#allocation7 + $0x7f8] sm:$0xff]
    %v4288 = vunpack.c.l.b16 %v96
    %v4289 = vunpack.c.h.b16 %v96
    %v4290 = vunpack.c.l.b16 %v97
    %v4291 = vunpack.c.h.b16 %v97
    %v4292 = vunpack.c.l.b16 %v98
    %v4293 = vunpack.c.h.b16 %v98
    %v4294 = vunpack.c.l.b16 %v99
    %v4295 = vunpack.c.h.b16 %v99
    %v4296 = vunpack.c.l.b16 %v100
    %v4297 = vunpack.c.h.b16 %v100
    %v4298 = vunpack.c.l.b16 %v101
    %v4299 = vunpack.c.h.b16 %v101
    %v4300 = vunpack.c.l.b16 %v102
    %v4301 = vunpack.c.h.b16 %v102
    %v4302 = vunpack.c.l.b16 %v103
    %v4303 = vunpack.c.h.b16 %v103
    %v4304 = vunpack.c.l.b16 %v104
    %v4305 = vunpack.c.h.b16 %v104
    %v4306 = vunpack.c.l.b16 %v105
    %v4307 = vunpack.c.h.b16 %v105
    %v4308 = vunpack.c.l.b16 %v106
    %v4309 = vunpack.c.h.b16 %v106
    %v4310 = vunpack.c.l.b16 %v107
    %v4311 = vunpack.c.h.b16 %v107
    %v4312 = vunpack.c.l.b16 %v108
    %v4313 = vunpack.c.h.b16 %v108
    %v4314 = vunpack.c.l.b16 %v109
    %v4315 = vunpack.c.h.b16 %v109
    %v4316 = vunpack.c.l.b16 %v110
    %v4317 = vunpack.c.h.b16 %v110
    %v4318 = vunpack.c.l.b16 %v111
    %v4319 = vunpack.c.h.b16 %v111
    %v4320 = vunpack.c.l.b16 %v112
    %v4321 = vunpack.c.h.b16 %v112
    %v4322 = vunpack.c.l.b16 %v113
    %v4323 = vunpack.c.h.b16 %v113
    %v4324 = vunpack.c.l.b16 %v114
    %v4325 = vunpack.c.h.b16 %v114
    %v4326 = vunpack.c.l.b16 %v115
    %v4327 = vunpack.c.h.b16 %v115
    %v4328 = vunpack.c.l.b16 %v116
    %v4329 = vunpack.c.h.b16 %v116
    %v4330 = vunpack.c.l.b16 %v117
    %v4331 = vunpack.c.h.b16 %v117
    %v4332 = vunpack.c.l.b16 %v118
    %v4333 = vunpack.c.h.b16 %v118
    %v4334 = vunpack.c.l.b16 %v119
    %v4335 = vunpack.c.h.b16 %v119
    %v4336 = vunpack.c.l.b16 %v120
    %v4337 = vunpack.c.h.b16 %v120
    %v4338 = vunpack.c.l.b16 %v121
    %v4339 = vunpack.c.h.b16 %v121
    %v4340 = vunpack.c.l.b16 %v122
    %v4341 = vunpack.c.h.b16 %v122
    %v4342 = vunpack.c.l.b16 %v123
    %v4343 = vunpack.c.h.b16 %v123
    %v4344 = vunpack.c.l.b16 %v124
    %v4345 = vunpack.c.h.b16 %v124
    %v4346 = vunpack.c.l.b16 %v125
    %v4347 = vunpack.c.h.b16 %v125
    %v4348 = vunpack.c.l.b16 %v126
    %v4349 = vunpack.c.h.b16 %v126
    %v4350 = vunpack.c.l.b16 %v127
    %v4351 = vunpack.c.h.b16 %v127
    %v4352 = vunpack.c.l.b16 %v128
    %v4353 = vunpack.c.h.b16 %v128
    %v4354 = vunpack.c.l.b16 %v129
    %v4355 = vunpack.c.h.b16 %v129
    %v4356 = vunpack.c.l.b16 %v130
    %v4357 = vunpack.c.h.b16 %v130
    %v4358 = vunpack.c.l.b16 %v131
    %v4359 = vunpack.c.h.b16 %v131
    %v4360 = vunpack.c.l.b16 %v132
    %v4361 = vunpack.c.h.b16 %v132
    %v4362 = vunpack.c.l.b16 %v133
    %v4363 = vunpack.c.h.b16 %v133
    %v4364 = vunpack.c.l.b16 %v134
    %v4365 = vunpack.c.h.b16 %v134
    %v4366 = vunpack.c.l.b16 %v135
    %v4367 = vunpack.c.h.b16 %v135
    %v4368 = vunpack.c.l.b16 %v136
    %v4369 = vunpack.c.h.b16 %v136
    %v4370 = vunpack.c.l.b16 %v137
    %v4371 = vunpack.c.h.b16 %v137
    %v4372 = vunpack.c.l.b16 %v138
    %v4373 = vunpack.c.h.b16 %v138
    %v4374 = vunpack.c.l.b16 %v139
    %v4375 = vunpack.c.h.b16 %v139
    %v4376 = vunpack.c.l.b16 %v140
    %v4377 = vunpack.c.h.b16 %v140
    %v4378 = vunpack.c.l.b16 %v141
    %v4379 = vunpack.c.h.b16 %v141
    %v4380 = vunpack.c.l.b16 %v142
    %v4381 = vunpack.c.h.b16 %v142
    %v4382 = vunpack.c.l.b16 %v143
    %v4383 = vunpack.c.h.b16 %v143
    %v4384 = vunpack.c.l.b16 %v144
    %v4385 = vunpack.c.h.b16 %v144
    %v4386 = vunpack.c.l.b16 %v145
    %v4387 = vunpack.c.h.b16 %v145
    %v4388 = vunpack.c.l.b16 %v146
    %v4389 = vunpack.c.h.b16 %v146
    %v4390 = vunpack.c.l.b16 %v147
    %v4391 = vunpack.c.h.b16 %v147
    %v4392 = vunpack.c.l.b16 %v148
    %v4393 = vunpack.c.h.b16 %v148
    %v4394 = vunpack.c.l.b16 %v149
    %v4395 = vunpack.c.h.b16 %v149
    %v4396 = vunpack.c.l.b16 %v150
    %v4397 = vunpack.c.h.b16 %v150
    %v4398 = vunpack.c.l.b16 %v151
    %v4399 = vunpack.c.h.b16 %v151
    %v4400 = vunpack.c.l.b16 %v152
    %v4401 = vunpack.c.h.b16 %v152
    %v4402 = vunpack.c.l.b16 %v153
    %v4403 = vunpack.c.h.b16 %v153
    %v4404 = vunpack.c.l.b16 %v154
    %v4405 = vunpack.c.h.b16 %v154
    %v4406 = vunpack.c.l.b16 %v155
    %v4407 = vunpack.c.h.b16 %v155
    %v4408 = vunpack.c.l.b16 %v156
    %v4409 = vunpack.c.h.b16 %v156
    %v4410 = vunpack.c.l.b16 %v157
    %v4411 = vunpack.c.h.b16 %v157
    %v4412 = vunpack.c.l.b16 %v158
    %v4413 = vunpack.c.h.b16 %v158
    %v4414 = vunpack.c.l.b16 %v159
    %v4415 = vunpack.c.h.b16 %v159
    %v4416 = vunpack.c.l.b16 %v160
    %v4417 = vunpack.c.h.b16 %v160
    %v4418 = vunpack.c.l.b16 %v161
    %v4419 = vunpack.c.h.b16 %v161
    %v4420 = vunpack.c.l.b16 %v162
    %v4421 = vunpack.c.h.b16 %v162
    %v4422 = vunpack.c.l.b16 %v163
    %v4423 = vunpack.c.h.b16 %v163
    %v4424 = vunpack.c.l.b16 %v164
    %v4425 = vunpack.c.h.b16 %v164
    %v4426 = vunpack.c.l.b16 %v165
    %v4427 = vunpack.c.h.b16 %v165
    %v4428 = vunpack.c.l.b16 %v166
    %v4429 = vunpack.c.h.b16 %v166
    %v4430 = vunpack.c.l.b16 %v167
    %v4431 = vunpack.c.h.b16 %v167
    %v4432 = vunpack.c.l.b16 %v168
    %v4433 = vunpack.c.h.b16 %v168
    %v4434 = vunpack.c.l.b16 %v169
    %v4435 = vunpack.c.h.b16 %v169
    %v4436 = vunpack.c.l.b16 %v170
    %v4437 = vunpack.c.h.b16 %v170
    %v4438 = vunpack.c.l.b16 %v171
    %v4439 = vunpack.c.h.b16 %v171
    %v4440 = vunpack.c.l.b16 %v172
    %v4441 = vunpack.c.h.b16 %v172
    %v4442 = vunpack.c.l.b16 %v173
    %v4443 = vunpack.c.h.b16 %v173
    %v4444 = vunpack.c.l.b16 %v174
    %v4445 = vunpack.c.h.b16 %v174
    %v4446 = vunpack.c.l.b16 %v175
    %v4447 = vunpack.c.h.b16 %v175
    %v4448 = vunpack.c.l.b16 %v176
    %v4449 = vunpack.c.h.b16 %v176
    %v4450 = vunpack.c.l.b16 %v177
    %v4451 = vunpack.c.h.b16 %v177
    %v4452 = vunpack.c.l.b16 %v178
    %v4453 = vunpack.c.h.b16 %v178
    %v4454 = vunpack.c.l.b16 %v179
    %v4455 = vunpack.c.h.b16 %v179
    %v4456 = vunpack.c.l.b16 %v180
    %v4457 = vunpack.c.h.b16 %v180
    %v4458 = vunpack.c.l.b16 %v181
    %v4459 = vunpack.c.h.b16 %v181
    %v4460 = vunpack.c.l.b16 %v182
    %v4461 = vunpack.c.h.b16 %v182
    %v4462 = vunpack.c.l.b16 %v183
    %v4463 = vunpack.c.h.b16 %v183
    %v4464 = vunpack.c.l.b16 %v184
    %v4465 = vunpack.c.h.b16 %v184
    %v4466 = vunpack.c.l.b16 %v185
    %v4467 = vunpack.c.h.b16 %v185
    %v4468 = vunpack.c.l.b16 %v186
    %v4469 = vunpack.c.h.b16 %v186
    %v4470 = vunpack.c.l.b16 %v187
    %v4471 = vunpack.c.h.b16 %v187
    %v4472 = vunpack.c.l.b16 %v188
    %v4473 = vunpack.c.h.b16 %v188
    %v4474 = vunpack.c.l.b16 %v189
    %v4475 = vunpack.c.h.b16 %v189
    %v4476 = vunpack.c.l.b16 %v190
    %v4477 = vunpack.c.h.b16 %v190
    %v4478 = vunpack.c.l.b16 %v191
    %v4479 = vunpack.c.h.b16 %v191
    %v4480 = vunpack.c.l.b16 %v192
    %v4481 = vunpack.c.h.b16 %v192
    %v4482 = vunpack.c.l.b16 %v193
    %v4483 = vunpack.c.h.b16 %v193
    %v4484 = vunpack.c.l.b16 %v194
    %v4485 = vunpack.c.h.b16 %v194
    %v4486 = vunpack.c.l.b16 %v195
    %v4487 = vunpack.c.h.b16 %v195
    %v4488 = vunpack.c.l.b16 %v196
    %v4489 = vunpack.c.h.b16 %v196
    %v4490 = vunpack.c.l.b16 %v197
    %v4491 = vunpack.c.h.b16 %v197
    %v4492 = vunpack.c.l.b16 %v198
    %v4493 = vunpack.c.h.b16 %v198
    %v4494 = vunpack.c.l.b16 %v199
    %v4495 = vunpack.c.h.b16 %v199
    %v4496 = vunpack.c.l.b16 %v200
    %v4497 = vunpack.c.h.b16 %v200
    %v4498 = vunpack.c.l.b16 %v201
    %v4499 = vunpack.c.h.b16 %v201
    %v4500 = vunpack.c.l.b16 %v202
    %v4501 = vunpack.c.h.b16 %v202
    %v4502 = vunpack.c.l.b16 %v203
    %v4503 = vunpack.c.h.b16 %v203
    %v4504 = vunpack.c.l.b16 %v204
    %v4505 = vunpack.c.h.b16 %v204
    %v4506 = vunpack.c.l.b16 %v205
    %v4507 = vunpack.c.h.b16 %v205
    %v4508 = vunpack.c.l.b16 %v206
    %v4509 = vunpack.c.h.b16 %v206
    %v4510 = vunpack.c.l.b16 %v207
    %v4511 = vunpack.c.h.b16 %v207
    %v4512 = vunpack.c.l.b16 %v208
    %v4513 = vunpack.c.h.b16 %v208
    %v4514 = vunpack.c.l.b16 %v209
    %v4515 = vunpack.c.h.b16 %v209
    %v4516 = vunpack.c.l.b16 %v210
    %v4517 = vunpack.c.h.b16 %v210
    %v4518 = vunpack.c.l.b16 %v211
    %v4519 = vunpack.c.h.b16 %v211
    %v4520 = vunpack.c.l.b16 %v212
    %v4521 = vunpack.c.h.b16 %v212
    %v4522 = vunpack.c.l.b16 %v213
    %v4523 = vunpack.c.h.b16 %v213
    %v4524 = vunpack.c.l.b16 %v214
    %v4525 = vunpack.c.h.b16 %v214
    %v4526 = vunpack.c.l.b16 %v215
    %v4527 = vunpack.c.h.b16 %v215
    %v4528 = vunpack.c.l.b16 %v216
    %v4529 = vunpack.c.h.b16 %v216
    %v4530 = vunpack.c.l.b16 %v217
    %v4531 = vunpack.c.h.b16 %v217
    %v4532 = vunpack.c.l.b16 %v218
    %v4533 = vunpack.c.h.b16 %v218
    %v4534 = vunpack.c.l.b16 %v219
    %v4535 = vunpack.c.h.b16 %v219
    %v4536 = vunpack.c.l.b16 %v220
    %v4537 = vunpack.c.h.b16 %v220
    %v4538 = vunpack.c.l.b16 %v221
    %v4539 = vunpack.c.h.b16 %v221
    %v4540 = vunpack.c.l.b16 %v222
    %v4541 = vunpack.c.h.b16 %v222
    %v4542 = vunpack.c.l.b16 %v223
    %v4543 = vunpack.c.h.b16 %v223
    %v4544 = vpack.c.b16 %v4304, %v4288
    %v4545 = vpack.c.b16 %v4305, %v4289
    %v4546 = vpack.c.b16 %v4306, %v4290
    %v4547 = vpack.c.b16 %v4307, %v4291
    %v4548 = vpack.c.b16 %v4308, %v4292
    %v4549 = vpack.c.b16 %v4309, %v4293
    %v4550 = vpack.c.b16 %v4310, %v4294
    %v4551 = vpack.c.b16 %v4311, %v4295
    %v4552 = vpack.c.b16 %v4312, %v4296
    %v4553 = vpack.c.b16 %v4313, %v4297
    %v4554 = vpack.c.b16 %v4314, %v4298
    %v4555 = vpack.c.b16 %v4315, %v4299
    %v4556 = vpack.c.b16 %v4316, %v4300
    %v4557 = vpack.c.b16 %v4317, %v4301
    %v4558 = vpack.c.b16 %v4318, %v4302
    %v4559 = vpack.c.b16 %v4319, %v4303
    %v4560 = vpack.c.b16 %v4336, %v4320
    %v4561 = vpack.c.b16 %v4337, %v4321
    %v4562 = vpack.c.b16 %v4338, %v4322
    %v4563 = vpack.c.b16 %v4339, %v4323
    %v4564 = vpack.c.b16 %v4340, %v4324
    %v4565 = vpack.c.b16 %v4341, %v4325
    %v4566 = vpack.c.b16 %v4342, %v4326
    %v4567 = vpack.c.b16 %v4343, %v4327
    %v4568 = vpack.c.b16 %v4344, %v4328
    %v4569 = vpack.c.b16 %v4345, %v4329
    %v4570 = vpack.c.b16 %v4346, %v4330
    %v4571 = vpack.c.b16 %v4347, %v4331
    %v4572 = vpack.c.b16 %v4348, %v4332
    %v4573 = vpack.c.b16 %v4349, %v4333
    %v4574 = vpack.c.b16 %v4350, %v4334
    %v4575 = vpack.c.b16 %v4351, %v4335
    %v4576 = vpack.c.b16 %v4368, %v4352
    %v4577 = vpack.c.b16 %v4369, %v4353
    %v4578 = vpack.c.b16 %v4370, %v4354
    %v4579 = vpack.c.b16 %v4371, %v4355
    %v4580 = vpack.c.b16 %v4372, %v4356
    %v4581 = vpack.c.b16 %v4373, %v4357
    %v4582 = vpack.c.b16 %v4374, %v4358
    %v4583 = vpack.c.b16 %v4375, %v4359
    %v4584 = vpack.c.b16 %v4376, %v4360
    %v4585 = vpack.c.b16 %v4377, %v4361
    %v4586 = vpack.c.b16 %v4378, %v4362
    %v4587 = vpack.c.b16 %v4379, %v4363
    %v4588 = vpack.c.b16 %v4380, %v4364
    %v4589 = vpack.c.b16 %v4381, %v4365
    %v4590 = vpack.c.b16 %v4382, %v4366
    %v4591 = vpack.c.b16 %v4383, %v4367
    %v4592 = vpack.c.b16 %v4400, %v4384
    %v4593 = vpack.c.b16 %v4401, %v4385
    %v4594 = vpack.c.b16 %v4402, %v4386
    %v4595 = vpack.c.b16 %v4403, %v4387
    %v4596 = vpack.c.b16 %v4404, %v4388
    %v4597 = vpack.c.b16 %v4405, %v4389
    %v4598 = vpack.c.b16 %v4406, %v4390
    %v4599 = vpack.c.b16 %v4407, %v4391
    %v4600 = vpack.c.b16 %v4408, %v4392
    %v4601 = vpack.c.b16 %v4409, %v4393
    %v4602 = vpack.c.b16 %v4410, %v4394
    %v4603 = vpack.c.b16 %v4411, %v4395
    %v4604 = vpack.c.b16 %v4412, %v4396
    %v4605 = vpack.c.b16 %v4413, %v4397
    %v4606 = vpack.c.b16 %v4414, %v4398
    %v4607 = vpack.c.b16 %v4415, %v4399
    %v4608 = vpack.c.b16 %v4432, %v4416
    %v4609 = vpack.c.b16 %v4433, %v4417
    %v4610 = vpack.c.b16 %v4434, %v4418
    %v4611 = vpack.c.b16 %v4435, %v4419
    %v4612 = vpack.c.b16 %v4436, %v4420
    %v4613 = vpack.c.b16 %v4437, %v4421
    %v4614 = vpack.c.b16 %v4438, %v4422
    %v4615 = vpack.c.b16 %v4439, %v4423
    %v4616 = vpack.c.b16 %v4440, %v4424
    %v4617 = vpack.c.b16 %v4441, %v4425
    %v4618 = vpack.c.b16 %v4442, %v4426
    %v4619 = vpack.c.b16 %v4443, %v4427
    %v4620 = vpack.c.b16 %v4444, %v4428
    %v4621 = vpack.c.b16 %v4445, %v4429
    %v4622 = vpack.c.b16 %v4446, %v4430
    %v4623 = vpack.c.b16 %v4447, %v4431
    %v4624 = vpack.c.b16 %v4464, %v4448
    %v4625 = vpack.c.b16 %v4465, %v4449
    %v4626 = vpack.c.b16 %v4466, %v4450
    %v4627 = vpack.c.b16 %v4467, %v4451
    %v4628 = vpack.c.b16 %v4468, %v4452
    %v4629 = vpack.c.b16 %v4469, %v4453
    %v4630 = vpack.c.b16 %v4470, %v4454
    %v4631 = vpack.c.b16 %v4471, %v4455
    %v4632 = vpack.c.b16 %v4472, %v4456
    %v4633 = vpack.c.b16 %v4473, %v4457
    %v4634 = vpack.c.b16 %v4474, %v4458
    %v4635 = vpack.c.b16 %v4475, %v4459
    %v4636 = vpack.c.b16 %v4476, %v4460
    %v4637 = vpack.c.b16 %v4477, %v4461
    %v4638 = vpack.c.b16 %v4478, %v4462
    %v4639 = vpack.c.b16 %v4479, %v4463
    %v4640 = vpack.c.b16 %v4496, %v4480
    %v4641 = vpack.c.b16 %v4497, %v4481
    %v4642 = vpack.c.b16 %v4498, %v4482
    %v4643 = vpack.c.b16 %v4499, %v4483
    %v4644 = vpack.c.b16 %v4500, %v4484
    %v4645 = vpack.c.b16 %v4501, %v4485
    %v4646 = vpack.c.b16 %v4502, %v4486
    %v4647 = vpack.c.b16 %v4503, %v4487
    %v4648 = vpack.c.b16 %v4504, %v4488
    %v4649 = vpack.c.b16 %v4505, %v4489
    %v4650 = vpack.c.b16 %v4506, %v4490
    %v4651 = vpack.c.b16 %v4507, %v4491
    %v4652 = vpack.c.b16 %v4508, %v4492
    %v4653 = vpack.c.b16 %v4509, %v4493
    %v4654 = vpack.c.b16 %v4510, %v4494
    %v4655 = vpack.c.b16 %v4511, %v4495
    %v4656 = vpack.c.b16 %v4528, %v4512
    %v4657 = vpack.c.b16 %v4529, %v4513
    %v4658 = vpack.c.b16 %v4530, %v4514
    %v4659 = vpack.c.b16 %v4531, %v4515
    %v4660 = vpack.c.b16 %v4532, %v4516
    %v4661 = vpack.c.b16 %v4533, %v4517
    %v4662 = vpack.c.b16 %v4534, %v4518
    %v4663 = vpack.c.b16 %v4535, %v4519
    %v4664 = vpack.c.b16 %v4536, %v4520
    %v4665 = vpack.c.b16 %v4537, %v4521
    %v4666 = vpack.c.b16 %v4538, %v4522
    %v4667 = vpack.c.b16 %v4539, %v4523
    %v4668 = vpack.c.b16 %v4540, %v4524
    %v4669 = vpack.c.b16 %v4541, %v4525
    %v4670 = vpack.c.b16 %v4542, %v4526
    %v4671 = vpack.c.b16 %v4543, %v4527
    %v5056 = vunpack.c.l.b16 %v3904
    %v5057 = vunpack.c.h.b16 %v3904
    %v5058 = vunpack.c.l.b16 %v3905
    %v5059 = vunpack.c.h.b16 %v3905
    %v5060 = vunpack.c.l.b16 %v3906
    %v5061 = vunpack.c.h.b16 %v3906
    %v5062 = vunpack.c.l.b16 %v3907
    %v5063 = vunpack.c.h.b16 %v3907
    %v5064 = vunpack.c.l.b16 %v3908
    %v5065 = vunpack.c.h.b16 %v3908
    %v5066 = vunpack.c.l.b16 %v3909
    %v5067 = vunpack.c.h.b16 %v3909
    %v5068 = vunpack.c.l.b16 %v3910
    %v5069 = vunpack.c.h.b16 %v3910
    %v5070 = vunpack.c.l.b16 %v3911
    %v5071 = vunpack.c.h.b16 %v3911
    %v5072 = vunpack.c.l.b16 %v3912
    %v5073 = vunpack.c.h.b16 %v3912
    %v5074 = vunpack.c.l.b16 %v3913
    %v5075 = vunpack.c.h.b16 %v3913
    %v5076 = vunpack.c.l.b16 %v3914
    %v5077 = vunpack.c.h.b16 %v3914
    %v5078 = vunpack.c.l.b16 %v3915
    %v5079 = vunpack.c.h.b16 %v3915
    %v5080 = vunpack.c.l.b16 %v3916
    %v5081 = vunpack.c.h.b16 %v3916
    %v5082 = vunpack.c.l.b16 %v3917
    %v5083 = vunpack.c.h.b16 %v3917
    %v5084 = vunpack.c.l.b16 %v3918
    %v5085 = vunpack.c.h.b16 %v3918
    %v5086 = vunpack.c.l.b16 %v3919
    %v5087 = vunpack.c.h.b16 %v3919
    %v5088 = vunpack.c.l.b16 %v3920
    %v5089 = vunpack.c.h.b16 %v3920
    %v5090 = vunpack.c.l.b16 %v3921
    %v5091 = vunpack.c.h.b16 %v3921
    %v5092 = vunpack.c.l.b16 %v3922
    %v5093 = vunpack.c.h.b16 %v3922
    %v5094 = vunpack.c.l.b16 %v3923
    %v5095 = vunpack.c.h.b16 %v3923
    %v5096 = vunpack.c.l.b16 %v3924
    %v5097 = vunpack.c.h.b16 %v3924
    %v5098 = vunpack.c.l.b16 %v3925
    %v5099 = vunpack.c.h.b16 %v3925
    %v5100 = vunpack.c.l.b16 %v3926
    %v5101 = vunpack.c.h.b16 %v3926
    %v5102 = vunpack.c.l.b16 %v3927
    %v5103 = vunpack.c.h.b16 %v3927
    %v5104 = vunpack.c.l.b16 %v3928
    %v5105 = vunpack.c.h.b16 %v3928
    %v5106 = vunpack.c.l.b16 %v3929
    %v5107 = vunpack.c.h.b16 %v3929
    %v5108 = vunpack.c.l.b16 %v3930
    %v5109 = vunpack.c.h.b16 %v3930
    %v5110 = vunpack.c.l.b16 %v3931
    %v5111 = vunpack.c.h.b16 %v3931
    %v5112 = vunpack.c.l.b16 %v3932
    %v5113 = vunpack.c.h.b16 %v3932
    %v5114 = vunpack.c.l.b16 %v3933
    %v5115 = vunpack.c.h.b16 %v3933
    %v5116 = vunpack.c.l.b16 %v3934
    %v5117 = vunpack.c.h.b16 %v3934
    %v5118 = vunpack.c.l.b16 %v3935
    %v5119 = vunpack.c.h.b16 %v3935
    %v5120 = vunpack.c.l.b16 %v3936
    %v5121 = vunpack.c.h.b16 %v3936
    %v5122 = vunpack.c.l.b16 %v3937
    %v5123 = vunpack.c.h.b16 %v3937
    %v5124 = vunpack.c.l.b16 %v3938
    %v5125 = vunpack.c.h.b16 %v3938
    %v5126 = vunpack.c.l.b16 %v3939
    %v5127 = vunpack.c.h.b16 %v3939
    %v5128 = vunpack.c.l.b16 %v3940
    %v5129 = vunpack.c.h.b16 %v3940
    %v5130 = vunpack.c.l.b16 %v3941
    %v5131 = vunpack.c.h.b16 %v3941
    %v5132 = vunpack.c.l.b16 %v3942
    %v5133 = vunpack.c.h.b16 %v3942
    %v5134 = vunpack.c.l.b16 %v3943
    %v5135 = vunpack.c.h.b16 %v3943
    %v5136 = vunpack.c.l.b16 %v3944
    %v5137 = vunpack.c.h.b16 %v3944
    %v5138 = vunpack.c.l.b16 %v3945
    %v5139 = vunpack.c.h.b16 %v3945
    %v5140 = vunpack.c.l.b16 %v3946
    %v5141 = vunpack.c.h.b16 %v3946
    %v5142 = vunpack.c.l.b16 %v3947
    %v5143 = vunpack.c.h.b16 %v3947
    %v5144 = vunpack.c.l.b16 %v3948
    %v5145 = vunpack.c.h.b16 %v3948
    %v5146 = vunpack.c.l.b16 %v3949
    %v5147 = vunpack.c.h.b16 %v3949
    %v5148 = vunpack.c.l.b16 %v3950
    %v5149 = vunpack.c.h.b16 %v3950
    %v5150 = vunpack.c.l.b16 %v3951
    %v5151 = vunpack.c.h.b16 %v3951
    %v5152 = vunpack.c.l.b16 %v3952
    %v5153 = vunpack.c.h.b16 %v3952
    %v5154 = vunpack.c.l.b16 %v3953
    %v5155 = vunpack.c.h.b16 %v3953
    %v5156 = vunpack.c.l.b16 %v3954
    %v5157 = vunpack.c.h.b16 %v3954
    %v5158 = vunpack.c.l.b16 %v3955
    %v5159 = vunpack.c.h.b16 %v3955
    %v5160 = vunpack.c.l.b16 %v3956
    %v5161 = vunpack.c.h.b16 %v3956
    %v5162 = vunpack.c.l.b16 %v3957
    %v5163 = vunpack.c.h.b16 %v3957
    %v5164 = vunpack.c.l.b16 %v3958
    %v5165 = vunpack.c.h.b16 %v3958
    %v5166 = vunpack.c.l.b16 %v3959
    %v5167 = vunpack.c.h.b16 %v3959
    %v5168 = vunpack.c.l.b16 %v3960
    %v5169 = vunpack.c.h.b16 %v3960
    %v5170 = vunpack.c.l.b16 %v3961
    %v5171 = vunpack.c.h.b16 %v3961
    %v5172 = vunpack.c.l.b16 %v3962
    %v5173 = vunpack.c.h.b16 %v3962
    %v5174 = vunpack.c.l.b16 %v3963
    %v5175 = vunpack.c.h.b16 %v3963
    %v5176 = vunpack.c.l.b16 %v3964
    %v5177 = vunpack.c.h.b16 %v3964
    %v5178 = vunpack.c.l.b16 %v3965
    %v5179 = vunpack.c.h.b16 %v3965
    %v5180 = vunpack.c.l.b16 %v3966
    %v5181 = vunpack.c.h.b16 %v3966
    %v5182 = vunpack.c.l.b16 %v3967
    %v5183 = vunpack.c.h.b16 %v3967
    %v5184 = vunpack.c.l.b16 %v3968
    %v5185 = vunpack.c.h.b16 %v3968
    %v5186 = vunpack.c.l.b16 %v3969
    %v5187 = vunpack.c.h.b16 %v3969
    %v5188 = vunpack.c.l.b16 %v3970
    %v5189 = vunpack.c.h.b16 %v3970
    %v5190 = vunpack.c.l.b16 %v3971
    %v5191 = vunpack.c.h.b16 %v3971
    %v5192 = vunpack.c.l.b16 %v3972
    %v5193 = vunpack.c.h.b16 %v3972
    %v5194 = vunpack.c.l.b16 %v3973
    %v5195 = vunpack.c.h.b16 %v3973
    %v5196 = vunpack.c.l.b16 %v3974
    %v5197 = vunpack.c.h.b16 %v3974
    %v5198 = vunpack.c.l.b16 %v3975
    %v5199 = vunpack.c.h.b16 %v3975
    %v5200 = vunpack.c.l.b16 %v3976
    %v5201 = vunpack.c.h.b16 %v3976
    %v5202 = vunpack.c.l.b16 %v3977
    %v5203 = vunpack.c.h.b16 %v3977
    %v5204 = vunpack.c.l.b16 %v3978
    %v5205 = vunpack.c.h.b16 %v3978
    %v5206 = vunpack.c.l.b16 %v3979
    %v5207 = vunpack.c.h.b16 %v3979
    %v5208 = vunpack.c.l.b16 %v3980
    %v5209 = vunpack.c.h.b16 %v3980
    %v5210 = vunpack.c.l.b16 %v3981
    %v5211 = vunpack.c.h.b16 %v3981
    %v5212 = vunpack.c.l.b16 %v3982
    %v5213 = vunpack.c.h.b16 %v3982
    %v5214 = vunpack.c.l.b16 %v3983
    %v5215 = vunpack.c.h.b16 %v3983
    %v5216 = vunpack.c.l.b16 %v3984
    %v5217 = vunpack.c.h.b16 %v3984
    %v5218 = vunpack.c.l.b16 %v3985
    %v5219 = vunpack.c.h.b16 %v3985
    %v5220 = vunpack.c.l.b16 %v3986
    %v5221 = vunpack.c.h.b16 %v3986
    %v5222 = vunpack.c.l.b16 %v3987
    %v5223 = vunpack.c.h.b16 %v3987
    %v5224 = vunpack.c.l.b16 %v3988
    %v5225 = vunpack.c.h.b16 %v3988
    %v5226 = vunpack.c.l.b16 %v3989
    %v5227 = vunpack.c.h.b16 %v3989
    %v5228 = vunpack.c.l.b16 %v3990
    %v5229 = vunpack.c.h.b16 %v3990
    %v5230 = vunpack.c.l.b16 %v3991
    %v5231 = vunpack.c.h.b16 %v3991
    %v5232 = vunpack.c.l.b16 %v3992
    %v5233 = vunpack.c.h.b16 %v3992
    %v5234 = vunpack.c.l.b16 %v3993
    %v5235 = vunpack.c.h.b16 %v3993
    %v5236 = vunpack.c.l.b16 %v3994
    %v5237 = vunpack.c.h.b16 %v3994
    %v5238 = vunpack.c.l.b16 %v3995
    %v5239 = vunpack.c.h.b16 %v3995
    %v5240 = vunpack.c.l.b16 %v3996
    %v5241 = vunpack.c.h.b16 %v3996
    %v5242 = vunpack.c.l.b16 %v3997
    %v5243 = vunpack.c.h.b16 %v3997
    %v5244 = vunpack.c.l.b16 %v3998
    %v5245 = vunpack.c.h.b16 %v3998
    %v5246 = vunpack.c.l.b16 %v3999
    %v5247 = vunpack.c.h.b16 %v3999
    %v5248 = vunpack.c.l.b16 %v4000
    %v5249 = vunpack.c.h.b16 %v4000
    %v5250 = vunpack.c.l.b16 %v4001
    %v5251 = vunpack.c.h.b16 %v4001
    %v5252 = vunpack.c.l.b16 %v4002
    %v5253 = vunpack.c.h.b16 %v4002
    %v5254 = vunpack.c.l.b16 %v4003
    %v5255 = vunpack.c.h.b16 %v4003
    %v5256 = vunpack.c.l.b16 %v4004
    %v5257 = vunpack.c.h.b16 %v4004
    %v5258 = vunpack.c.l.b16 %v4005
    %v5259 = vunpack.c.h.b16 %v4005
    %v5260 = vunpack.c.l.b16 %v4006
    %v5261 = vunpack.c.h.b16 %v4006
    %v5262 = vunpack.c.l.b16 %v4007
    %v5263 = vunpack.c.h.b16 %v4007
    %v5264 = vunpack.c.l.b16 %v4008
    %v5265 = vunpack.c.h.b16 %v4008
    %v5266 = vunpack.c.l.b16 %v4009
    %v5267 = vunpack.c.h.b16 %v4009
    %v5268 = vunpack.c.l.b16 %v4010
    %v5269 = vunpack.c.h.b16 %v4010
    %v5270 = vunpack.c.l.b16 %v4011
    %v5271 = vunpack.c.h.b16 %v4011
    %v5272 = vunpack.c.l.b16 %v4012
    %v5273 = vunpack.c.h.b16 %v4012
    %v5274 = vunpack.c.l.b16 %v4013
    %v5275 = vunpack.c.h.b16 %v4013
    %v5276 = vunpack.c.l.b16 %v4014
    %v5277 = vunpack.c.h.b16 %v4014
    %v5278 = vunpack.c.l.b16 %v4015
    %v5279 = vunpack.c.h.b16 %v4015
    %v5280 = vunpack.c.l.b16 %v4016
    %v5281 = vunpack.c.h.b16 %v4016
    %v5282 = vunpack.c.l.b16 %v4017
    %v5283 = vunpack.c.h.b16 %v4017
    %v5284 = vunpack.c.l.b16 %v4018
    %v5285 = vunpack.c.h.b16 %v4018
    %v5286 = vunpack.c.l.b16 %v4019
    %v5287 = vunpack.c.h.b16 %v4019
    %v5288 = vunpack.c.l.b16 %v4020
    %v5289 = vunpack.c.h.b16 %v4020
    %v5290 = vunpack.c.l.b16 %v4021
    %v5291 = vunpack.c.h.b16 %v4021
    %v5292 = vunpack.c.l.b16 %v4022
    %v5293 = vunpack.c.h.b16 %v4022
    %v5294 = vunpack.c.l.b16 %v4023
    %v5295 = vunpack.c.h.b16 %v4023
    %v5296 = vunpack.c.l.b16 %v4024
    %v5297 = vunpack.c.h.b16 %v4024
    %v5298 = vunpack.c.l.b16 %v4025
    %v5299 = vunpack.c.h.b16 %v4025
    %v5300 = vunpack.c.l.b16 %v4026
    %v5301 = vunpack.c.h.b16 %v4026
    %v5302 = vunpack.c.l.b16 %v4027
    %v5303 = vunpack.c.h.b16 %v4027
    %v5304 = vunpack.c.l.b16 %v4028
    %v5305 = vunpack.c.h.b16 %v4028
    %v5306 = vunpack.c.l.b16 %v4029
    %v5307 = vunpack.c.h.b16 %v4029
    %v5308 = vunpack.c.l.b16 %v4030
    %v5309 = vunpack.c.h.b16 %v4030
    %v5310 = vunpack.c.l.b16 %v4031
    %v5311 = vunpack.c.h.b16 %v4031
    %v5312 = vunpack.c.l.b16 %v4032
    %v5313 = vunpack.c.h.b16 %v4032
    %v5314 = vunpack.c.l.b16 %v4033
    %v5315 = vunpack.c.h.b16 %v4033
    %v5316 = vunpack.c.l.b16 %v4034
    %v5317 = vunpack.c.h.b16 %v4034
    %v5318 = vunpack.c.l.b16 %v4035
    %v5319 = vunpack.c.h.b16 %v4035
    %v5320 = vunpack.c.l.b16 %v4036
    %v5321 = vunpack.c.h.b16 %v4036
    %v5322 = vunpack.c.l.b16 %v4037
    %v5323 = vunpack.c.h.b16 %v4037
    %v5324 = vunpack.c.l.b16 %v4038
    %v5325 = vunpack.c.h.b16 %v4038
    %v5326 = vunpack.c.l.b16 %v4039
    %v5327 = vunpack.c.h.b16 %v4039
    %v5328 = vunpack.c.l.b16 %v4040
    %v5329 = vunpack.c.h.b16 %v4040
    %v5330 = vunpack.c.l.b16 %v4041
    %v5331 = vunpack.c.h.b16 %v4041
    %v5332 = vunpack.c.l.b16 %v4042
    %v5333 = vunpack.c.h.b16 %v4042
    %v5334 = vunpack.c.l.b16 %v4043
    %v5335 = vunpack.c.h.b16 %v4043
    %v5336 = vunpack.c.l.b16 %v4044
    %v5337 = vunpack.c.h.b16 %v4044
    %v5338 = vunpack.c.l.b16 %v4045
    %v5339 = vunpack.c.h.b16 %v4045
    %v5340 = vunpack.c.l.b16 %v4046
    %v5341 = vunpack.c.h.b16 %v4046
    %v5342 = vunpack.c.l.b16 %v4047
    %v5343 = vunpack.c.h.b16 %v4047
    %v5344 = vunpack.c.l.b16 %v4048
    %v5345 = vunpack.c.h.b16 %v4048
    %v5346 = vunpack.c.l.b16 %v4049
    %v5347 = vunpack.c.h.b16 %v4049
    %v5348 = vunpack.c.l.b16 %v4050
    %v5349 = vunpack.c.h.b16 %v4050
    %v5350 = vunpack.c.l.b16 %v4051
    %v5351 = vunpack.c.h.b16 %v4051
    %v5352 = vunpack.c.l.b16 %v4052
    %v5353 = vunpack.c.h.b16 %v4052
    %v5354 = vunpack.c.l.b16 %v4053
    %v5355 = vunpack.c.h.b16 %v4053
    %v5356 = vunpack.c.l.b16 %v4054
    %v5357 = vunpack.c.h.b16 %v4054
    %v5358 = vunpack.c.l.b16 %v4055
    %v5359 = vunpack.c.h.b16 %v4055
    %v5360 = vunpack.c.l.b16 %v4056
    %v5361 = vunpack.c.h.b16 %v4056
    %v5362 = vunpack.c.l.b16 %v4057
    %v5363 = vunpack.c.h.b16 %v4057
    %v5364 = vunpack.c.l.b16 %v4058
    %v5365 = vunpack.c.h.b16 %v4058
    %v5366 = vunpack.c.l.b16 %v4059
    %v5367 = vunpack.c.h.b16 %v4059
    %v5368 = vunpack.c.l.b16 %v4060
    %v5369 = vunpack.c.h.b16 %v4060
    %v5370 = vunpack.c.l.b16 %v4061
    %v5371 = vunpack.c.h.b16 %v4061
    %v5372 = vunpack.c.l.b16 %v4062
    %v5373 = vunpack.c.h.b16 %v4062
    %v5374 = vunpack.c.l.b16 %v4063
    %v5375 = vunpack.c.h.b16 %v4063
    %v5376 = vunpack.c.l.b16 %v4064
    %v5377 = vunpack.c.h.b16 %v4064
    %v5378 = vunpack.c.l.b16 %v4065
    %v5379 = vunpack.c.h.b16 %v4065
    %v5380 = vunpack.c.l.b16 %v4066
    %v5381 = vunpack.c.h.b16 %v4066
    %v5382 = vunpack.c.l.b16 %v4067
    %v5383 = vunpack.c.h.b16 %v4067
    %v5384 = vunpack.c.l.b16 %v4068
    %v5385 = vunpack.c.h.b16 %v4068
    %v5386 = vunpack.c.l.b16 %v4069
    %v5387 = vunpack.c.h.b16 %v4069
    %v5388 = vunpack.c.l.b16 %v4070
    %v5389 = vunpack.c.h.b16 %v4070
    %v5390 = vunpack.c.l.b16 %v4071
    %v5391 = vunpack.c.h.b16 %v4071
    %v5392 = vunpack.c.l.b16 %v4072
    %v5393 = vunpack.c.h.b16 %v4072
    %v5394 = vunpack.c.l.b16 %v4073
    %v5395 = vunpack.c.h.b16 %v4073
    %v5396 = vunpack.c.l.b16 %v4074
    %v5397 = vunpack.c.h.b16 %v4074
    %v5398 = vunpack.c.l.b16 %v4075
    %v5399 = vunpack.c.h.b16 %v4075
    %v5400 = vunpack.c.l.b16 %v4076
    %v5401 = vunpack.c.h.b16 %v4076
    %v5402 = vunpack.c.l.b16 %v4077
    %v5403 = vunpack.c.h.b16 %v4077
    %v5404 = vunpack.c.l.b16 %v4078
    %v5405 = vunpack.c.h.b16 %v4078
    %v5406 = vunpack.c.l.b16 %v4079
    %v5407 = vunpack.c.h.b16 %v4079
    %v5408 = vunpack.c.l.b16 %v4080
    %v5409 = vunpack.c.h.b16 %v4080
    %v5410 = vunpack.c.l.b16 %v4081
    %v5411 = vunpack.c.h.b16 %v4081
    %v5412 = vunpack.c.l.b16 %v4082
    %v5413 = vunpack.c.h.b16 %v4082
    %v5414 = vunpack.c.l.b16 %v4083
    %v5415 = vunpack.c.h.b16 %v4083
    %v5416 = vunpack.c.l.b16 %v4084
    %v5417 = vunpack.c.h.b16 %v4084
    %v5418 = vunpack.c.l.b16 %v4085
    %v5419 = vunpack.c.h.b16 %v4085
    %v5420 = vunpack.c.l.b16 %v4086
    %v5421 = vunpack.c.h.b16 %v4086
    %v5422 = vunpack.c.l.b16 %v4087
    %v5423 = vunpack.c.h.b16 %v4087
    %v5424 = vunpack.c.l.b16 %v4088
    %v5425 = vunpack.c.h.b16 %v4088
    %v5426 = vunpack.c.l.b16 %v4089
    %v5427 = vunpack.c.h.b16 %v4089
    %v5428 = vunpack.c.l.b16 %v4090
    %v5429 = vunpack.c.h.b16 %v4090
    %v5430 = vunpack.c.l.b16 %v4091
    %v5431 = vunpack.c.h.b16 %v4091
    %v5432 = vunpack.c.l.b16 %v4092
    %v5433 = vunpack.c.h.b16 %v4092
    %v5434 = vunpack.c.l.b16 %v4093
    %v5435 = vunpack.c.h.b16 %v4093
    %v5436 = vunpack.c.l.b16 %v4094
    %v5437 = vunpack.c.h.b16 %v4094
    %v5438 = vunpack.c.l.b16 %v4095
    %v5439 = vunpack.c.h.b16 %v4095
    %v5440 = vunpack.c.l.b16 %v4096
    %v5441 = vunpack.c.h.b16 %v4096
    %v5442 = vunpack.c.l.b16 %v4097
    %v5443 = vunpack.c.h.b16 %v4097
    %v5444 = vunpack.c.l.b16 %v4098
    %v5445 = vunpack.c.h.b16 %v4098
    %v5446 = vunpack.c.l.b16 %v4099
    %v5447 = vunpack.c.h.b16 %v4099
    %v5448 = vunpack.c.l.b16 %v4100
    %v5449 = vunpack.c.h.b16 %v4100
    %v5450 = vunpack.c.l.b16 %v4101
    %v5451 = vunpack.c.h.b16 %v4101
    %v5452 = vunpack.c.l.b16 %v4102
    %v5453 = vunpack.c.h.b16 %v4102
    %v5454 = vunpack.c.l.b16 %v4103
    %v5455 = vunpack.c.h.b16 %v4103
    %v5456 = vunpack.c.l.b16 %v4104
    %v5457 = vunpack.c.h.b16 %v4104
    %v5458 = vunpack.c.l.b16 %v4105
    %v5459 = vunpack.c.h.b16 %v4105
    %v5460 = vunpack.c.l.b16 %v4106
    %v5461 = vunpack.c.h.b16 %v4106
    %v5462 = vunpack.c.l.b16 %v4107
    %v5463 = vunpack.c.h.b16 %v4107
    %v5464 = vunpack.c.l.b16 %v4108
    %v5465 = vunpack.c.h.b16 %v4108
    %v5466 = vunpack.c.l.b16 %v4109
    %v5467 = vunpack.c.h.b16 %v4109
    %v5468 = vunpack.c.l.b16 %v4110
    %v5469 = vunpack.c.h.b16 %v4110
    %v5470 = vunpack.c.l.b16 %v4111
    %v5471 = vunpack.c.h.b16 %v4111
    %v5472 = vunpack.c.l.b16 %v4112
    %v5473 = vunpack.c.h.b16 %v4112
    %v5474 = vunpack.c.l.b16 %v4113
    %v5475 = vunpack.c.h.b16 %v4113
    %v5476 = vunpack.c.l.b16 %v4114
    %v5477 = vunpack.c.h.b16 %v4114
    %v5478 = vunpack.c.l.b16 %v4115
    %v5479 = vunpack.c.h.b16 %v4115
    %v5480 = vunpack.c.l.b16 %v4116
    %v5481 = vunpack.c.h.b16 %v4116
    %v5482 = vunpack.c.l.b16 %v4117
    %v5483 = vunpack.c.h.b16 %v4117
    %v5484 = vunpack.c.l.b16 %v4118
    %v5485 = vunpack.c.h.b16 %v4118
    %v5486 = vunpack.c.l.b16 %v4119
    %v5487 = vunpack.c.h.b16 %v4119
    %v5488 = vunpack.c.l.b16 %v4120
    %v5489 = vunpack.c.h.b16 %v4120
    %v5490 = vunpack.c.l.b16 %v4121
    %v5491 = vunpack.c.h.b16 %v4121
    %v5492 = vunpack.c.l.b16 %v4122
    %v5493 = vunpack.c.h.b16 %v4122
    %v5494 = vunpack.c.l.b16 %v4123
    %v5495 = vunpack.c.h.b16 %v4123
    %v5496 = vunpack.c.l.b16 %v4124
    %v5497 = vunpack.c.h.b16 %v4124
    %v5498 = vunpack.c.l.b16 %v4125
    %v5499 = vunpack.c.h.b16 %v4125
    %v5500 = vunpack.c.l.b16 %v4126
    %v5501 = vunpack.c.h.b16 %v4126
    %v5502 = vunpack.c.l.b16 %v4127
    %v5503 = vunpack.c.h.b16 %v4127
    %v5504 = vunpack.c.l.b16 %v4128
    %v5505 = vunpack.c.h.b16 %v4128
    %v5506 = vunpack.c.l.b16 %v4129
    %v5507 = vunpack.c.h.b16 %v4129
    %v5508 = vunpack.c.l.b16 %v4130
    %v5509 = vunpack.c.h.b16 %v4130
    %v5510 = vunpack.c.l.b16 %v4131
    %v5511 = vunpack.c.h.b16 %v4131
    %v5512 = vunpack.c.l.b16 %v4132
    %v5513 = vunpack.c.h.b16 %v4132
    %v5514 = vunpack.c.l.b16 %v4133
    %v5515 = vunpack.c.h.b16 %v4133
    %v5516 = vunpack.c.l.b16 %v4134
    %v5517 = vunpack.c.h.b16 %v4134
    %v5518 = vunpack.c.l.b16 %v4135
    %v5519 = vunpack.c.h.b16 %v4135
    %v5520 = vunpack.c.l.b16 %v4136
    %v5521 = vunpack.c.h.b16 %v4136
    %v5522 = vunpack.c.l.b16 %v4137
    %v5523 = vunpack.c.h.b16 %v4137
    %v5524 = vunpack.c.l.b16 %v4138
    %v5525 = vunpack.c.h.b16 %v4138
    %v5526 = vunpack.c.l.b16 %v4139
    %v5527 = vunpack.c.h.b16 %v4139
    %v5528 = vunpack.c.l.b16 %v4140
    %v5529 = vunpack.c.h.b16 %v4140
    %v5530 = vunpack.c.l.b16 %v4141
    %v5531 = vunpack.c.h.b16 %v4141
    %v5532 = vunpack.c.l.b16 %v4142
    %v5533 = vunpack.c.h.b16 %v4142
    %v5534 = vunpack.c.l.b16 %v4143
    %v5535 = vunpack.c.h.b16 %v4143
    %v5536 = vunpack.c.l.b16 %v4144
    %v5537 = vunpack.c.h.b16 %v4144
    %v5538 = vunpack.c.l.b16 %v4145
    %v5539 = vunpack.c.h.b16 %v4145
    %v5540 = vunpack.c.l.b16 %v4146
    %v5541 = vunpack.c.h.b16 %v4146
    %v5542 = vunpack.c.l.b16 %v4147
    %v5543 = vunpack.c.h.b16 %v4147
    %v5544 = vunpack.c.l.b16 %v4148
    %v5545 = vunpack.c.h.b16 %v4148
    %v5546 = vunpack.c.l.b16 %v4149
    %v5547 = vunpack.c.h.b16 %v4149
    %v5548 = vunpack.c.l.b16 %v4150
    %v5549 = vunpack.c.h.b16 %v4150
    %v5550 = vunpack.c.l.b16 %v4151
    %v5551 = vunpack.c.h.b16 %v4151
    %v5552 = vunpack.c.l.b16 %v4152
    %v5553 = vunpack.c.h.b16 %v4152
    %v5554 = vunpack.c.l.b16 %v4153
    %v5555 = vunpack.c.h.b16 %v4153
    %v5556 = vunpack.c.l.b16 %v4154
    %v5557 = vunpack.c.h.b16 %v4154
    %v5558 = vunpack.c.l.b16 %v4155
    %v5559 = vunpack.c.h.b16 %v4155
    %v5560 = vunpack.c.l.b16 %v4156
    %v5561 = vunpack.c.h.b16 %v4156
    %v5562 = vunpack.c.l.b16 %v4157
    %v5563 = vunpack.c.h.b16 %v4157
    %v5564 = vunpack.c.l.b16 %v4158
    %v5565 = vunpack.c.h.b16 %v4158
    %v5566 = vunpack.c.l.b16 %v4159
    %v5567 = vunpack.c.h.b16 %v4159
    %v5568 = vpack.c.b16 %v5058, %v5056
    %v5569 = vpack.c.b16 %v5059, %v5057
    %v5570 = vpack.c.b16 %v5062, %v5060
    %v5571 = vpack.c.b16 %v5063, %v5061
    %v5572 = vpack.c.b16 %v5066, %v5064
    %v5573 = vpack.c.b16 %v5067, %v5065
    %v5574 = vpack.c.b16 %v5070, %v5068
    %v5575 = vpack.c.b16 %v5071, %v5069
    %v5576 = vpack.c.b16 %v5074, %v5072
    %v5577 = vpack.c.b16 %v5075, %v5073
    %v5578 = vpack.c.b16 %v5078, %v5076
    %v5579 = vpack.c.b16 %v5079, %v5077
    %v5580 = vpack.c.b16 %v5082, %v5080
    %v5581 = vpack.c.b16 %v5083, %v5081
    %v5582 = vpack.c.b16 %v5086, %v5084
    %v5583 = vpack.c.b16 %v5087, %v5085
    %v5584 = vpack.c.b16 %v5090, %v5088
    %v5585 = vpack.c.b16 %v5091, %v5089
    %v5586 = vpack.c.b16 %v5094, %v5092
    %v5587 = vpack.c.b16 %v5095, %v5093
    %v5588 = vpack.c.b16 %v5098, %v5096
    %v5589 = vpack.c.b16 %v5099, %v5097
    %v5590 = vpack.c.b16 %v5102, %v5100
    %v5591 = vpack.c.b16 %v5103, %v5101
    %v5592 = vpack.c.b16 %v5106, %v5104
    %v5593 = vpack.c.b16 %v5107, %v5105
    %v5594 = vpack.c.b16 %v5110, %v5108
    %v5595 = vpack.c.b16 %v5111, %v5109
    %v5596 = vpack.c.b16 %v5114, %v5112
    %v5597 = vpack.c.b16 %v5115, %v5113
    %v5598 = vpack.c.b16 %v5118, %v5116
    %v5599 = vpack.c.b16 %v5119, %v5117
    %v5600 = vpack.c.b16 %v5122, %v5120
    %v5601 = vpack.c.b16 %v5123, %v5121
    %v5602 = vpack.c.b16 %v5126, %v5124
    %v5603 = vpack.c.b16 %v5127, %v5125
    %v5604 = vpack.c.b16 %v5130, %v5128
    %v5605 = vpack.c.b16 %v5131, %v5129
    %v5606 = vpack.c.b16 %v5134, %v5132
    %v5607 = vpack.c.b16 %v5135, %v5133
    %v5608 = vpack.c.b16 %v5138, %v5136
    %v5609 = vpack.c.b16 %v5139, %v5137
    %v5610 = vpack.c.b16 %v5142, %v5140
    %v5611 = vpack.c.b16 %v5143, %v5141
    %v5612 = vpack.c.b16 %v5146, %v5144
    %v5613 = vpack.c.b16 %v5147, %v5145
    %v5614 = vpack.c.b16 %v5150, %v5148
    %v5615 = vpack.c.b16 %v5151, %v5149
    %v5616 = vpack.c.b16 %v5154, %v5152
    %v5617 = vpack.c.b16 %v5155, %v5153
    %v5618 = vpack.c.b16 %v5158, %v5156
    %v5619 = vpack.c.b16 %v5159, %v5157
    %v5620 = vpack.c.b16 %v5162, %v5160
    %v5621 = vpack.c.b16 %v5163, %v5161
    %v5622 = vpack.c.b16 %v5166, %v5164
    %v5623 = vpack.c.b16 %v5167, %v5165
    %v5624 = vpack.c.b16 %v5170, %v5168
    %v5625 = vpack.c.b16 %v5171, %v5169
    %v5626 = vpack.c.b16 %v5174, %v5172
    %v5627 = vpack.c.b16 %v5175, %v5173
    %v5628 = vpack.c.b16 %v5178, %v5176
    %v5629 = vpack.c.b16 %v5179, %v5177
    %v5630 = vpack.c.b16 %v5182, %v5180
    %v5631 = vpack.c.b16 %v5183, %v5181
    %v5632 = vpack.c.b16 %v5186, %v5184
    %v5633 = vpack.c.b16 %v5187, %v5185
    %v5634 = vpack.c.b16 %v5190, %v5188
    %v5635 = vpack.c.b16 %v5191, %v5189
    %v5636 = vpack.c.b16 %v5194, %v5192
    %v5637 = vpack.c.b16 %v5195, %v5193
    %v5638 = vpack.c.b16 %v5198, %v5196
    %v5639 = vpack.c.b16 %v5199, %v5197
    %v5640 = vpack.c.b16 %v5202, %v5200
    %v5641 = vpack.c.b16 %v5203, %v5201
    %v5642 = vpack.c.b16 %v5206, %v5204
    %v5643 = vpack.c.b16 %v5207, %v5205
    %v5644 = vpack.c.b16 %v5210, %v5208
    %v5645 = vpack.c.b16 %v5211, %v5209
    %v5646 = vpack.c.b16 %v5214, %v5212
    %v5647 = vpack.c.b16 %v5215, %v5213
    %v5648 = vpack.c.b16 %v5218, %v5216
    %v5649 = vpack.c.b16 %v5219, %v5217
    %v5650 = vpack.c.b16 %v5222, %v5220
    %v5651 = vpack.c.b16 %v5223, %v5221
    %v5652 = vpack.c.b16 %v5226, %v5224
    %v5653 = vpack.c.b16 %v5227, %v5225
    %v5654 = vpack.c.b16 %v5230, %v5228
    %v5655 = vpack.c.b16 %v5231, %v5229
    %v5656 = vpack.c.b16 %v5234, %v5232
    %v5657 = vpack.c.b16 %v5235, %v5233
    %v5658 = vpack.c.b16 %v5238, %v5236
    %v5659 = vpack.c.b16 %v5239, %v5237
    %v5660 = vpack.c.b16 %v5242, %v5240
    %v5661 = vpack.c.b16 %v5243, %v5241
    %v5662 = vpack.c.b16 %v5246, %v5244
    %v5663 = vpack.c.b16 %v5247, %v5245
    %v5664 = vpack.c.b16 %v5250, %v5248
    %v5665 = vpack.c.b16 %v5251, %v5249
    %v5666 = vpack.c.b16 %v5254, %v5252
    %v5667 = vpack.c.b16 %v5255, %v5253
    %v5668 = vpack.c.b16 %v5258, %v5256
    %v5669 = vpack.c.b16 %v5259, %v5257
    %v5670 = vpack.c.b16 %v5262, %v5260
    %v5671 = vpack.c.b16 %v5263, %v5261
    %v5672 = vpack.c.b16 %v5266, %v5264
    %v5673 = vpack.c.b16 %v5267, %v5265
    %v5674 = vpack.c.b16 %v5270, %v5268
    %v5675 = vpack.c.b16 %v5271, %v5269
    %v5676 = vpack.c.b16 %v5274, %v5272
    %v5677 = vpack.c.b16 %v5275, %v5273
    %v5678 = vpack.c.b16 %v5278, %v5276
    %v5679 = vpack.c.b16 %v5279, %v5277
    %v5680 = vpack.c.b16 %v5282, %v5280
    %v5681 = vpack.c.b16 %v5283, %v5281
    %v5682 = vpack.c.b16 %v5286, %v5284
    %v5683 = vpack.c.b16 %v5287, %v5285
    %v5684 = vpack.c.b16 %v5290, %v5288
    %v5685 = vpack.c.b16 %v5291, %v5289
    %v5686 = vpack.c.b16 %v5294, %v5292
    %v5687 = vpack.c.b16 %v5295, %v5293
    %v5688 = vpack.c.b16 %v5298, %v5296
    %v5689 = vpack.c.b16 %v5299, %v5297
    %v5690 = vpack.c.b16 %v5302, %v5300
    %v5691 = vpack.c.b16 %v5303, %v5301
    %v5692 = vpack.c.b16 %v5306, %v5304
    %v5693 = vpack.c.b16 %v5307, %v5305
    %v5694 = vpack.c.b16 %v5310, %v5308
    %v5695 = vpack.c.b16 %v5311, %v5309
    %v5696 = vpack.c.b16 %v5314, %v5312
    %v5697 = vpack.c.b16 %v5315, %v5313
    %v5698 = vpack.c.b16 %v5318, %v5316
    %v5699 = vpack.c.b16 %v5319, %v5317
    %v5700 = vpack.c.b16 %v5322, %v5320
    %v5701 = vpack.c.b16 %v5323, %v5321
    %v5702 = vpack.c.b16 %v5326, %v5324
    %v5703 = vpack.c.b16 %v5327, %v5325
    %v5704 = vpack.c.b16 %v5330, %v5328
    %v5705 = vpack.c.b16 %v5331, %v5329
    %v5706 = vpack.c.b16 %v5334, %v5332
    %v5707 = vpack.c.b16 %v5335, %v5333
    %v5708 = vpack.c.b16 %v5338, %v5336
    %v5709 = vpack.c.b16 %v5339, %v5337
    %v5710 = vpack.c.b16 %v5342, %v5340
    %v5711 = vpack.c.b16 %v5343, %v5341
    %v5712 = vpack.c.b16 %v5346, %v5344
    %v5713 = vpack.c.b16 %v5347, %v5345
    %v5714 = vpack.c.b16 %v5350, %v5348
    %v5715 = vpack.c.b16 %v5351, %v5349
    %v5716 = vpack.c.b16 %v5354, %v5352
    %v5717 = vpack.c.b16 %v5355, %v5353
    %v5718 = vpack.c.b16 %v5358, %v5356
    %v5719 = vpack.c.b16 %v5359, %v5357
    %v5720 = vpack.c.b16 %v5362, %v5360
    %v5721 = vpack.c.b16 %v5363, %v5361
    %v5722 = vpack.c.b16 %v5366, %v5364
    %v5723 = vpack.c.b16 %v5367, %v5365
    %v5724 = vpack.c.b16 %v5370, %v5368
    %v5725 = vpack.c.b16 %v5371, %v5369
    %v5726 = vpack.c.b16 %v5374, %v5372
    %v5727 = vpack.c.b16 %v5375, %v5373
    %v5728 = vpack.c.b16 %v5378, %v5376
    %v5729 = vpack.c.b16 %v5379, %v5377
    %v5730 = vpack.c.b16 %v5382, %v5380
    %v5731 = vpack.c.b16 %v5383, %v5381
    %v5732 = vpack.c.b16 %v5386, %v5384
    %v5733 = vpack.c.b16 %v5387, %v5385
    %v5734 = vpack.c.b16 %v5390, %v5388
    %v5735 = vpack.c.b16 %v5391, %v5389
    %v5736 = vpack.c.b16 %v5394, %v5392
    %v5737 = vpack.c.b16 %v5395, %v5393
    %v5738 = vpack.c.b16 %v5398, %v5396
    %v5739 = vpack.c.b16 %v5399, %v5397
    %v5740 = vpack.c.b16 %v5402, %v5400
    %v5741 = vpack.c.b16 %v5403, %v5401
    %v5742 = vpack.c.b16 %v5406, %v5404
    %v5743 = vpack.c.b16 %v5407, %v5405
    %v5744 = vpack.c.b16 %v5410, %v5408
    %v5745 = vpack.c.b16 %v5411, %v5409
    %v5746 = vpack.c.b16 %v5414, %v5412
    %v5747 = vpack.c.b16 %v5415, %v5413
    %v5748 = vpack.c.b16 %v5418, %v5416
    %v5749 = vpack.c.b16 %v5419, %v5417
    %v5750 = vpack.c.b16 %v5422, %v5420
    %v5751 = vpack.c.b16 %v5423, %v5421
    %v5752 = vpack.c.b16 %v5426, %v5424
    %v5753 = vpack.c.b16 %v5427, %v5425
    %v5754 = vpack.c.b16 %v5430, %v5428
    %v5755 = vpack.c.b16 %v5431, %v5429
    %v5756 = vpack.c.b16 %v5434, %v5432
    %v5757 = vpack.c.b16 %v5435, %v5433
    %v5758 = vpack.c.b16 %v5438, %v5436
    %v5759 = vpack.c.b16 %v5439, %v5437
    %v5760 = vpack.c.b16 %v5442, %v5440
    %v5761 = vpack.c.b16 %v5443, %v5441
    %v5762 = vpack.c.b16 %v5446, %v5444
    %v5763 = vpack.c.b16 %v5447, %v5445
    %v5764 = vpack.c.b16 %v5450, %v5448
    %v5765 = vpack.c.b16 %v5451, %v5449
    %v5766 = vpack.c.b16 %v5454, %v5452
    %v5767 = vpack.c.b16 %v5455, %v5453
    %v5768 = vpack.c.b16 %v5458, %v5456
    %v5769 = vpack.c.b16 %v5459, %v5457
    %v5770 = vpack.c.b16 %v5462, %v5460
    %v5771 = vpack.c.b16 %v5463, %v5461
    %v5772 = vpack.c.b16 %v5466, %v5464
    %v5773 = vpack.c.b16 %v5467, %v5465
    %v5774 = vpack.c.b16 %v5470, %v5468
    %v5775 = vpack.c.b16 %v5471, %v5469
    %v5776 = vpack.c.b16 %v5474, %v5472
    %v5777 = vpack.c.b16 %v5475, %v5473
    %v5778 = vpack.c.b16 %v5478, %v5476
    %v5779 = vpack.c.b16 %v5479, %v5477
    %v5780 = vpack.c.b16 %v5482, %v5480
    %v5781 = vpack.c.b16 %v5483, %v5481
    %v5782 = vpack.c.b16 %v5486, %v5484
    %v5783 = vpack.c.b16 %v5487, %v5485
    %v5784 = vpack.c.b16 %v5490, %v5488
    %v5785 = vpack.c.b16 %v5491, %v5489
    %v5786 = vpack.c.b16 %v5494, %v5492
    %v5787 = vpack.c.b16 %v5495, %v5493
    %v5788 = vpack.c.b16 %v5498, %v5496
    %v5789 = vpack.c.b16 %v5499, %v5497
    %v5790 = vpack.c.b16 %v5502, %v5500
    %v5791 = vpack.c.b16 %v5503, %v5501
    %v5792 = vpack.c.b16 %v5506, %v5504
    %v5793 = vpack.c.b16 %v5507, %v5505
    %v5794 = vpack.c.b16 %v5510, %v5508
    %v5795 = vpack.c.b16 %v5511, %v5509
    %v5796 = vpack.c.b16 %v5514, %v5512
    %v5797 = vpack.c.b16 %v5515, %v5513
    %v5798 = vpack.c.b16 %v5518, %v5516
    %v5799 = vpack.c.b16 %v5519, %v5517
    %v5800 = vpack.c.b16 %v5522, %v5520
    %v5801 = vpack.c.b16 %v5523, %v5521
    %v5802 = vpack.c.b16 %v5526, %v5524
    %v5803 = vpack.c.b16 %v5527, %v5525
    %v5804 = vpack.c.b16 %v5530, %v5528
    %v5805 = vpack.c.b16 %v5531, %v5529
    %v5806 = vpack.c.b16 %v5534, %v5532
    %v5807 = vpack.c.b16 %v5535, %v5533
    %v5808 = vpack.c.b16 %v5538, %v5536
    %v5809 = vpack.c.b16 %v5539, %v5537
    %v5810 = vpack.c.b16 %v5542, %v5540
    %v5811 = vpack.c.b16 %v5543, %v5541
    %v5812 = vpack.c.b16 %v5546, %v5544
    %v5813 = vpack.c.b16 %v5547, %v5545
    %v5814 = vpack.c.b16 %v5550, %v5548
    %v5815 = vpack.c.b16 %v5551, %v5549
    %v5816 = vpack.c.b16 %v5554, %v5552
    %v5817 = vpack.c.b16 %v5555, %v5553
    %v5818 = vpack.c.b16 %v5558, %v5556
    %v5819 = vpack.c.b16 %v5559, %v5557
    %v5820 = vpack.c.b16 %v5562, %v5560
    %v5821 = vpack.c.b16 %v5563, %v5561
    %v5822 = vpack.c.b16 %v5566, %v5564
    %v5823 = vpack.c.b16 %v5567, %v5565
    %6080 = vmatprep.subr.bf16.mxu0 %v5583
    %6081 = vmatpush1.bf16.msra.mxu0 %v5582
    %6082 = vmatprep.subr.bf16.mxu0 %v5581
    %6083 = vmatpush1.bf16.msra.mxu0 %v5580
    %6084 = vmatprep.subr.bf16.mxu0 %v5579
    %6085 = vmatpush1.bf16.msra.mxu0 %v5578
    %6086 = vmatprep.subr.bf16.mxu0 %v5577
    %6087 = vmatpush1.bf16.msra.mxu0 %v5576
    %6088 = vmatprep.subr.bf16.mxu0 %v5575
    %6089 = vmatpush1.bf16.msra.mxu0 %v5574
    %6090 = vmatprep.subr.bf16.mxu0 %v5573
    %6091 = vmatpush1.bf16.msra.mxu0 %v5572
    %6092 = vmatprep.subr.bf16.mxu0 %v5571
    %6093 = vmatpush1.bf16.msra.mxu0 %v5570
    %6094 = vmatprep.subr.bf16.mxu0 %v5569
    %6095 = vmatpush1.bf16.msra.mxu0 %v5568
    %6096 = vmatprep.subr.bf16.mxu0 %v5599
    %6097 = vmatpush2.bf16.msra.mxu0 %v5598
    %6098 = vmatprep.subr.bf16.mxu0 %v5597
    %6099 = vmatpush2.bf16.msra.mxu0 %v5596
    %6100 = vmatprep.subr.bf16.mxu0 %v5595
    %6101 = vmatpush2.bf16.msra.mxu0 %v5594
    %6102 = vmatprep.subr.bf16.mxu0 %v5593
    %6103 = vmatpush2.bf16.msra.mxu0 %v5592
    %6104 = vmatprep.subr.bf16.mxu0 %v5591
    %6105 = vmatpush2.bf16.msra.mxu0 %v5590
    %6106 = vmatprep.subr.bf16.mxu0 %v5589
    %6107 = vmatpush2.bf16.msra.mxu0 %v5588
    %6108 = vmatprep.subr.bf16.mxu0 %v5587
    %6109 = vmatpush2.bf16.msra.mxu0 %v5586
    %6110 = vmatprep.subr.bf16.mxu0 %v5585
    %6111 = vmatpush2.bf16.msra.mxu0 %v5584
    %6112 = vmatprep.mubr.bf16.mxu0 %v4545
    %6113 = vmatmul.mubr.bf16.gmra.mxu0 %v4544
    %v6114 = vpop.f32.mrf.mxu0
    %v6115 = vadd.f32 0.0, %v6114
    %v6116 = vpop.f32.mrf.mxu0
    %v6117 = vadd.f32 0.0, %v6116
    %v6118 = vpop.f32.mrf.mxu0
    %v6119 = vadd.f32 0.0, %v6118
    %v6120 = vpop.f32.mrf.mxu0
    %v6121 = vadd.f32 0.0, %v6120
    %6122 = vmatprep.mubr.bf16.mxu0 %v4561
    %6123 = vmatmul.mubr.bf16.gmra.mxu0 %v4560
    %v6124 = vpop.f32.mrf.mxu0
    %v6125 = vadd.f32 0.0, %v6124
    %v6126 = vpop.f32.mrf.mxu0
    %v6127 = vadd.f32 0.0, %v6126
    %v6128 = vpop.f32.mrf.mxu0
    %v6129 = vadd.f32 0.0, %v6128
    %v6130 = vpop.f32.mrf.mxu0
    %v6131 = vadd.f32 0.0, %v6130
    %6132 = vmatprep.mubr.bf16.mxu0 %v4577
    %6133 = vmatmul.mubr.bf16.gmra.mxu0 %v4576
    %v6134 = vpop.f32.mrf.mxu0
    %v6135 = vadd.f32 0.0, %v6134
    %v6136 = vpop.f32.mrf.mxu0
    %v6137 = vadd.f32 0.0, %v6136
    %v6138 = vpop.f32.mrf.mxu0
    %v6139 = vadd.f32 0.0, %v6138
    %v6140 = vpop.f32.mrf.mxu0
    %v6141 = vadd.f32 0.0, %v6140
    %6142 = vmatprep.mubr.bf16.mxu0 %v4593
    %6143 = vmatmul.mubr.bf16.gmra.mxu0 %v4592
    %v6144 = vpop.f32.mrf.mxu0
    %v6145 = vadd.f32 0.0, %v6144
    %v6146 = vpop.f32.mrf.mxu0
    %v6147 = vadd.f32 0.0, %v6146
    %v6148 = vpop.f32.mrf.mxu0
    %v6149 = vadd.f32 0.0, %v6148
    %v6150 = vpop.f32.mrf.mxu0
    %v6151 = vadd.f32 0.0, %v6150
    %6152 = vmatprep.mubr.bf16.mxu0 %v4609
    %6153 = vmatmul.mubr.bf16.gmra.mxu0 %v4608
    %v6154 = vpop.f32.mrf.mxu0
    %v6155 = vadd.f32 0.0, %v6154
    %v6156 = vpop.f32.mrf.mxu0
    %v6157 = vadd.f32 0.0, %v6156
    %v6158 = vpop.f32.mrf.mxu0
    %v6159 = vadd.f32 0.0, %v6158
    %v6160 = vpop.f32.mrf.mxu0
    %v6161 = vadd.f32 0.0, %v6160
    %6162 = vmatprep.mubr.bf16.mxu0 %v4625
    %6163 = vmatmul.mubr.bf16.gmra.mxu0 %v4624
    %v6164 = vpop.f32.mrf.mxu0
    %v6165 = vadd.f32 0.0, %v6164
    %v6166 = vpop.f32.mrf.mxu0
    %v6167 = vadd.f32 0.0, %v6166
    %v6168 = vpop.f32.mrf.mxu0
    %v6169 = vadd.f32 0.0, %v6168
    %v6170 = vpop.f32.mrf.mxu0
    %v6171 = vadd.f32 0.0, %v6170
    %6172 = vmatprep.mubr.bf16.mxu0 %v4641
    %6173 = vmatmul.mubr.bf16.gmra.mxu0 %v4640
    %v6174 = vpop.f32.mrf.mxu0
    %v6175 = vadd.f32 0.0, %v6174
    %v6176 = vpop.f32.mrf.mxu0
    %v6177 = vadd.f32 0.0, %v6176
    %v6178 = vpop.f32.mrf.mxu0
    %v6179 = vadd.f32 0.0, %v6178
    %v6180 = vpop.f32.mrf.mxu0
    %v6181 = vadd.f32 0.0, %v6180
    %6182 = vmatprep.mubr.bf16.mxu0 %v4657
    %6183 = vmatmul.mubr.bf16.gmra.mxu0 %v4656
    %v6184 = vpop.f32.mrf.mxu0
    %v6185 = vadd.f32 0.0, %v6184
    %v6186 = vpop.f32.mrf.mxu0
    %v6187 = vadd.f32 0.0, %v6186
    %v6188 = vpop.f32.mrf.mxu0
    %v6189 = vadd.f32 0.0, %v6188
    %v6190 = vpop.f32.mrf.mxu0
    %v6191 = vadd.f32 0.0, %v6190
    %6192 = vdwg.mxu0
    %6193 = vmatprep.subr.bf16.mxu0 %v5615
    %6194 = vmatpush1.bf16.msra.mxu0 %v5614
    %6195 = vmatprep.subr.bf16.mxu0 %v5613
    %6196 = vmatpush1.bf16.msra.mxu0 %v5612
    %6197 = vmatprep.subr.bf16.mxu0 %v5611
    %6198 = vmatpush1.bf16.msra.mxu0 %v5610
    %6199 = vmatprep.subr.bf16.mxu0 %v5609
    %6200 = vmatpush1.bf16.msra.mxu0 %v5608
    %6201 = vmatprep.subr.bf16.mxu0 %v5607
    %6202 = vmatpush1.bf16.msra.mxu0 %v5606
    %6203 = vmatprep.subr.bf16.mxu0 %v5605
    %6204 = vmatpush1.bf16.msra.mxu0 %v5604
    %6205 = vmatprep.subr.bf16.mxu0 %v5603
    %6206 = vmatpush1.bf16.msra.mxu0 %v5602
    %6207 = vmatprep.subr.bf16.mxu0 %v5601
    %6208 = vmatpush1.bf16.msra.mxu0 %v5600
    %6209 = vmatprep.subr.bf16.mxu0 %v5631
    %6210 = vmatpush2.bf16.msra.mxu0 %v5630
    %6211 = vmatprep.subr.bf16.mxu0 %v5629
    %6212 = vmatpush2.bf16.msra.mxu0 %v5628
    %6213 = vmatprep.subr.bf16.mxu0 %v5627
    %6214 = vmatpush2.bf16.msra.mxu0 %v5626
    %6215 = vmatprep.subr.bf16.mxu0 %v5625
    %6216 = vmatpush2.bf16.msra.mxu0 %v5624
    %6217 = vmatprep.subr.bf16.mxu0 %v5623
    %6218 = vmatpush2.bf16.msra.mxu0 %v5622
    %6219 = vmatprep.subr.bf16.mxu0 %v5621
    %6220 = vmatpush2.bf16.msra.mxu0 %v5620
    %6221 = vmatprep.subr.bf16.mxu0 %v5619
    %6222 = vmatpush2.bf16.msra.mxu0 %v5618
    %6223 = vmatprep.subr.bf16.mxu0 %v5617
    %6224 = vmatpush2.bf16.msra.mxu0 %v5616
    %6225 = vmatprep.mubr.bf16.mxu0 %v4547
    %6226 = vmatmul.mubr.bf16.gmra.mxu0 %v4546
    %v6227 = vpop.f32.mrf.mxu0
    %v6228 = vadd.f32 %v6115, %v6227
    %v6229 = vpop.f32.mrf.mxu0
    %v6230 = vadd.f32 %v6117, %v6229
    %v6231 = vpop.f32.mrf.mxu0
    %v6232 = vadd.f32 %v6119, %v6231
    %v6233 = vpop.f32.mrf.mxu0
    %v6234 = vadd.f32 %v6121, %v6233
    %6235 = vmatprep.mubr.bf16.mxu0 %v4563
    %6236 = vmatmul.mubr.bf16.gmra.mxu0 %v4562
    %v6237 = vpop.f32.mrf.mxu0
    %v6238 = vadd.f32 %v6125, %v6237
    %v6239 = vpop.f32.mrf.mxu0
    %v6240 = vadd.f32 %v6127, %v6239
    %v6241 = vpop.f32.mrf.mxu0
    %v6242 = vadd.f32 %v6129, %v6241
    %v6243 = vpop.f32.mrf.mxu0
    %v6244 = vadd.f32 %v6131, %v6243
    %6245 = vmatprep.mubr.bf16.mxu0 %v4579
    %6246 = vmatmul.mubr.bf16.gmra.mxu0 %v4578
    %v6247 = vpop.f32.mrf.mxu0
    %v6248 = vadd.f32 %v6135, %v6247
    %v6249 = vpop.f32.mrf.mxu0
    %v6250 = vadd.f32 %v6137, %v6249
    %v6251 = vpop.f32.mrf.mxu0
    %v6252 = vadd.f32 %v6139, %v6251
    %v6253 = vpop.f32.mrf.mxu0
    %v6254 = vadd.f32 %v6141, %v6253
    %6255 = vmatprep.mubr.bf16.mxu0 %v4595
    %6256 = vmatmul.mubr.bf16.gmra.mxu0 %v4594
    %v6257 = vpop.f32.mrf.mxu0
    %v6258 = vadd.f32 %v6145, %v6257
    %v6259 = vpop.f32.mrf.mxu0
    %v6260 = vadd.f32 %v6147, %v6259
    %v6261 = vpop.f32.mrf.mxu0
    %v6262 = vadd.f32 %v6149, %v6261
    %v6263 = vpop.f32.mrf.mxu0
    %v6264 = vadd.f32 %v6151, %v6263
    %6265 = vmatprep.mubr.bf16.mxu0 %v4611
    %6266 = vmatmul.mubr.bf16.gmra.mxu0 %v4610
    %v6267 = vpop.f32.mrf.mxu0
    %v6268 = vadd.f32 %v6155, %v6267
    %v6269 = vpop.f32.mrf.mxu0
    %v6270 = vadd.f32 %v6157, %v6269
    %v6271 = vpop.f32.mrf.mxu0
    %v6272 = vadd.f32 %v6159, %v6271
    %v6273 = vpop.f32.mrf.mxu0
    %v6274 = vadd.f32 %v6161, %v6273
    %6275 = vmatprep.mubr.bf16.mxu0 %v4627
    %6276 = vmatmul.mubr.bf16.gmra.mxu0 %v4626
    %v6277 = vpop.f32.mrf.mxu0
    %v6278 = vadd.f32 %v6165, %v6277
    %v6279 = vpop.f32.mrf.mxu0
    %v6280 = vadd.f32 %v6167, %v6279
    %v6281 = vpop.f32.mrf.mxu0
    %v6282 = vadd.f32 %v6169, %v6281
    %v6283 = vpop.f32.mrf.mxu0
    %v6284 = vadd.f32 %v6171, %v6283
    %6285 = vmatprep.mubr.bf16.mxu0 %v4643
    %6286 = vmatmul.mubr.bf16.gmra.mxu0 %v4642
    %v6287 = vpop.f32.mrf.mxu0
    %v6288 = vadd.f32 %v6175, %v6287
    %v6289 = vpop.f32.mrf.mxu0
    %v6290 = vadd.f32 %v6177, %v6289
    %v6291 = vpop.f32.mrf.mxu0
    %v6292 = vadd.f32 %v6179, %v6291
    %v6293 = vpop.f32.mrf.mxu0
    %v6294 = vadd.f32 %v6181, %v6293
    %6295 = vmatprep.mubr.bf16.mxu0 %v4659
    %6296 = vmatmul.mubr.bf16.gmra.mxu0 %v4658
    %v6297 = vpop.f32.mrf.mxu0
    %v6298 = vadd.f32 %v6185, %v6297
    %v6299 = vpop.f32.mrf.mxu0
    %v6300 = vadd.f32 %v6187, %v6299
    %v6301 = vpop.f32.mrf.mxu0
    %v6302 = vadd.f32 %v6189, %v6301
    %v6303 = vpop.f32.mrf.mxu0
    %v6304 = vadd.f32 %v6191, %v6303
    %6305 = vdwg.mxu0
    %6306 = vmatprep.subr.bf16.mxu0 %v5647
    %6307 = vmatpush1.bf16.msra.mxu0 %v5646
    %6308 = vmatprep.subr.bf16.mxu0 %v5645
    %6309 = vmatpush1.bf16.msra.mxu0 %v5644
    %6310 = vmatprep.subr.bf16.mxu0 %v5643
    %6311 = vmatpush1.bf16.msra.mxu0 %v5642
    %6312 = vmatprep.subr.bf16.mxu0 %v5641
    %6313 = vmatpush1.bf16.msra.mxu0 %v5640
    %6314 = vmatprep.subr.bf16.mxu0 %v5639
    %6315 = vmatpush1.bf16.msra.mxu0 %v5638
    %6316 = vmatprep.subr.bf16.mxu0 %v5637
    %6317 = vmatpush1.bf16.msra.mxu0 %v5636
    %6318 = vmatprep.subr.bf16.mxu0 %v5635
    %6319 = vmatpush1.bf16.msra.mxu0 %v5634
    %6320 = vmatprep.subr.bf16.mxu0 %v5633
    %6321 = vmatpush1.bf16.msra.mxu0 %v5632
    %6322 = vmatprep.subr.bf16.mxu0 %v5663
    %6323 = vmatpush2.bf16.msra.mxu0 %v5662
    %6324 = vmatprep.subr.bf16.mxu0 %v5661
    %6325 = vmatpush2.bf16.msra.mxu0 %v5660
    %6326 = vmatprep.subr.bf16.mxu0 %v5659
    %6327 = vmatpush2.bf16.msra.mxu0 %v5658
    %6328 = vmatprep.subr.bf16.mxu0 %v5657
    %6329 = vmatpush2.bf16.msra.mxu0 %v5656
    %6330 = vmatprep.subr.bf16.mxu0 %v5655
    %6331 = vmatpush2.bf16.msra.mxu0 %v5654
    %6332 = vmatprep.subr.bf16.mxu0 %v5653
    %6333 = vmatpush2.bf16.msra.mxu0 %v5652
    %6334 = vmatprep.subr.bf16.mxu0 %v5651
    %6335 = vmatpush2.bf16.msra.mxu0 %v5650
    %6336 = vmatprep.subr.bf16.mxu0 %v5649
    %6337 = vmatpush2.bf16.msra.mxu0 %v5648
    %6338 = vmatprep.mubr.bf16.mxu0 %v4549
    %6339 = vmatmul.mubr.bf16.gmra.mxu0 %v4548
    %v6340 = vpop.f32.mrf.mxu0
    %v6341 = vadd.f32 %v6228, %v6340
    %v6342 = vpop.f32.mrf.mxu0
    %v6343 = vadd.f32 %v6230, %v6342
    %v6344 = vpop.f32.mrf.mxu0
    %v6345 = vadd.f32 %v6232, %v6344
    %v6346 = vpop.f32.mrf.mxu0
    %v6347 = vadd.f32 %v6234, %v6346
    %6348 = vmatprep.mubr.bf16.mxu0 %v4565
    %6349 = vmatmul.mubr.bf16.gmra.mxu0 %v4564
    %v6350 = vpop.f32.mrf.mxu0
    %v6351 = vadd.f32 %v6238, %v6350
    %v6352 = vpop.f32.mrf.mxu0
    %v6353 = vadd.f32 %v6240, %v6352
    %v6354 = vpop.f32.mrf.mxu0
    %v6355 = vadd.f32 %v6242, %v6354
    %v6356 = vpop.f32.mrf.mxu0
    %v6357 = vadd.f32 %v6244, %v6356
    %6358 = vmatprep.mubr.bf16.mxu0 %v4581
    %6359 = vmatmul.mubr.bf16.gmra.mxu0 %v4580
    %v6360 = vpop.f32.mrf.mxu0
    %v6361 = vadd.f32 %v6248, %v6360
    %v6362 = vpop.f32.mrf.mxu0
    %v6363 = vadd.f32 %v6250, %v6362
    %v6364 = vpop.f32.mrf.mxu0
    %v6365 = vadd.f32 %v6252, %v6364
    %v6366 = vpop.f32.mrf.mxu0
    %v6367 = vadd.f32 %v6254, %v6366
    %6368 = vmatprep.mubr.bf16.mxu0 %v4597
    %6369 = vmatmul.mubr.bf16.gmra.mxu0 %v4596
    %v6370 = vpop.f32.mrf.mxu0
    %v6371 = vadd.f32 %v6258, %v6370
    %v6372 = vpop.f32.mrf.mxu0
    %v6373 = vadd.f32 %v6260, %v6372
    %v6374 = vpop.f32.mrf.mxu0
    %v6375 = vadd.f32 %v6262, %v6374
    %v6376 = vpop.f32.mrf.mxu0
    %v6377 = vadd.f32 %v6264, %v6376
    %6378 = vmatprep.mubr.bf16.mxu0 %v4613
    %6379 = vmatmul.mubr.bf16.gmra.mxu0 %v4612
    %v6380 = vpop.f32.mrf.mxu0
    %v6381 = vadd.f32 %v6268, %v6380
    %v6382 = vpop.f32.mrf.mxu0
    %v6383 = vadd.f32 %v6270, %v6382
    %v6384 = vpop.f32.mrf.mxu0
    %v6385 = vadd.f32 %v6272, %v6384
    %v6386 = vpop.f32.mrf.mxu0
    %v6387 = vadd.f32 %v6274, %v6386
    %6388 = vmatprep.mubr.bf16.mxu0 %v4629
    %6389 = vmatmul.mubr.bf16.gmra.mxu0 %v4628
    %v6390 = vpop.f32.mrf.mxu0
    %v6391 = vadd.f32 %v6278, %v6390
    %v6392 = vpop.f32.mrf.mxu0
    %v6393 = vadd.f32 %v6280, %v6392
    %v6394 = vpop.f32.mrf.mxu0
    %v6395 = vadd.f32 %v6282, %v6394
    %v6396 = vpop.f32.mrf.mxu0
    %v6397 = vadd.f32 %v6284, %v6396
    %6398 = vmatprep.mubr.bf16.mxu0 %v4645
    %6399 = vmatmul.mubr.bf16.gmra.mxu0 %v4644
    %v6400 = vpop.f32.mrf.mxu0
    %v6401 = vadd.f32 %v6288, %v6400
    %v6402 = vpop.f32.mrf.mxu0
    %v6403 = vadd.f32 %v6290, %v6402
    %v6404 = vpop.f32.mrf.mxu0
    %v6405 = vadd.f32 %v6292, %v6404
    %v6406 = vpop.f32.mrf.mxu0
    %v6407 = vadd.f32 %v6294, %v6406
    %6408 = vmatprep.mubr.bf16.mxu0 %v4661
    %6409 = vmatmul.mubr.bf16.gmra.mxu0 %v4660
    %v6410 = vpop.f32.mrf.mxu0
    %v6411 = vadd.f32 %v6298, %v6410
    %v6412 = vpop.f32.mrf.mxu0
    %v6413 = vadd.f32 %v6300, %v6412
    %v6414 = vpop.f32.mrf.mxu0
    %v6415 = vadd.f32 %v6302, %v6414
    %v6416 = vpop.f32.mrf.mxu0
    %v6417 = vadd.f32 %v6304, %v6416
    %6418 = vdwg.mxu0
    %6419 = vmatprep.subr.bf16.mxu0 %v5679
    %6420 = vmatpush1.bf16.msra.mxu0 %v5678
    %6421 = vmatprep.subr.bf16.mxu0 %v5677
    %6422 = vmatpush1.bf16.msra.mxu0 %v5676
    %6423 = vmatprep.subr.bf16.mxu0 %v5675
    %6424 = vmatpush1.bf16.msra.mxu0 %v5674
    %6425 = vmatprep.subr.bf16.mxu0 %v5673
    %6426 = vmatpush1.bf16.msra.mxu0 %v5672
    %6427 = vmatprep.subr.bf16.mxu0 %v5671
    %6428 = vmatpush1.bf16.msra.mxu0 %v5670
    %6429 = vmatprep.subr.bf16.mxu0 %v5669
    %6430 = vmatpush1.bf16.msra.mxu0 %v5668
    %6431 = vmatprep.subr.bf16.mxu0 %v5667
    %6432 = vmatpush1.bf16.msra.mxu0 %v5666
    %6433 = vmatprep.subr.bf16.mxu0 %v5665
    %6434 = vmatpush1.bf16.msra.mxu0 %v5664
    %6435 = vmatprep.subr.bf16.mxu0 %v5695
    %6436 = vmatpush2.bf16.msra.mxu0 %v5694
    %6437 = vmatprep.subr.bf16.mxu0 %v5693
    %6438 = vmatpush2.bf16.msra.mxu0 %v5692
    %6439 = vmatprep.subr.bf16.mxu0 %v5691
    %6440 = vmatpush2.bf16.msra.mxu0 %v5690
    %6441 = vmatprep.subr.bf16.mxu0 %v5689
    %6442 = vmatpush2.bf16.msra.mxu0 %v5688
    %6443 = vmatprep.subr.bf16.mxu0 %v5687
    %6444 = vmatpush2.bf16.msra.mxu0 %v5686
    %6445 = vmatprep.subr.bf16.mxu0 %v5685
    %6446 = vmatpush2.bf16.msra.mxu0 %v5684
    %6447 = vmatprep.subr.bf16.mxu0 %v5683
    %6448 = vmatpush2.bf16.msra.mxu0 %v5682
    %6449 = vmatprep.subr.bf16.mxu0 %v5681
    %6450 = vmatpush2.bf16.msra.mxu0 %v5680
    %6451 = vmatprep.mubr.bf16.mxu0 %v4551
    %6452 = vmatmul.mubr.bf16.gmra.mxu0 %v4550
    %v6453 = vpop.f32.mrf.mxu0
    %v6454 = vadd.f32 %v6341, %v6453
    %v6455 = vpop.f32.mrf.mxu0
    %v6456 = vadd.f32 %v6343, %v6455
    %v6457 = vpop.f32.mrf.mxu0
    %v6458 = vadd.f32 %v6345, %v6457
    %v6459 = vpop.f32.mrf.mxu0
    %v6460 = vadd.f32 %v6347, %v6459
    %6461 = vmatprep.mubr.bf16.mxu0 %v4567
    %6462 = vmatmul.mubr.bf16.gmra.mxu0 %v4566
    %v6463 = vpop.f32.mrf.mxu0
    %v6464 = vadd.f32 %v6351, %v6463
    %v6465 = vpop.f32.mrf.mxu0
    %v6466 = vadd.f32 %v6353, %v6465
    %v6467 = vpop.f32.mrf.mxu0
    %v6468 = vadd.f32 %v6355, %v6467
    %v6469 = vpop.f32.mrf.mxu0
    %v6470 = vadd.f32 %v6357, %v6469
    %6471 = vmatprep.mubr.bf16.mxu0 %v4583
    %6472 = vmatmul.mubr.bf16.gmra.mxu0 %v4582
    %v6473 = vpop.f32.mrf.mxu0
    %v6474 = vadd.f32 %v6361, %v6473
    %v6475 = vpop.f32.mrf.mxu0
    %v6476 = vadd.f32 %v6363, %v6475
    %v6477 = vpop.f32.mrf.mxu0
    %v6478 = vadd.f32 %v6365, %v6477
    %v6479 = vpop.f32.mrf.mxu0
    %v6480 = vadd.f32 %v6367, %v6479
    %6481 = vmatprep.mubr.bf16.mxu0 %v4599
    %6482 = vmatmul.mubr.bf16.gmra.mxu0 %v4598
    %v6483 = vpop.f32.mrf.mxu0
    %v6484 = vadd.f32 %v6371, %v6483
    %v6485 = vpop.f32.mrf.mxu0
    %v6486 = vadd.f32 %v6373, %v6485
    %v6487 = vpop.f32.mrf.mxu0
    %v6488 = vadd.f32 %v6375, %v6487
    %v6489 = vpop.f32.mrf.mxu0
    %v6490 = vadd.f32 %v6377, %v6489
    %6491 = vmatprep.mubr.bf16.mxu0 %v4615
    %6492 = vmatmul.mubr.bf16.gmra.mxu0 %v4614
    %v6493 = vpop.f32.mrf.mxu0
    %v6494 = vadd.f32 %v6381, %v6493
    %v6495 = vpop.f32.mrf.mxu0
    %v6496 = vadd.f32 %v6383, %v6495
    %v6497 = vpop.f32.mrf.mxu0
    %v6498 = vadd.f32 %v6385, %v6497
    %v6499 = vpop.f32.mrf.mxu0
    %v6500 = vadd.f32 %v6387, %v6499
    %6501 = vmatprep.mubr.bf16.mxu0 %v4631
    %6502 = vmatmul.mubr.bf16.gmra.mxu0 %v4630
    %v6503 = vpop.f32.mrf.mxu0
    %v6504 = vadd.f32 %v6391, %v6503
    %v6505 = vpop.f32.mrf.mxu0
    %v6506 = vadd.f32 %v6393, %v6505
    %v6507 = vpop.f32.mrf.mxu0
    %v6508 = vadd.f32 %v6395, %v6507
    %v6509 = vpop.f32.mrf.mxu0
    %v6510 = vadd.f32 %v6397, %v6509
    %6511 = vmatprep.mubr.bf16.mxu0 %v4647
    %6512 = vmatmul.mubr.bf16.gmra.mxu0 %v4646
    %v6513 = vpop.f32.mrf.mxu0
    %v6514 = vadd.f32 %v6401, %v6513
    %v6515 = vpop.f32.mrf.mxu0
    %v6516 = vadd.f32 %v6403, %v6515
    %v6517 = vpop.f32.mrf.mxu0
    %v6518 = vadd.f32 %v6405, %v6517
    %v6519 = vpop.f32.mrf.mxu0
    %v6520 = vadd.f32 %v6407, %v6519
    %6521 = vmatprep.mubr.bf16.mxu0 %v4663
    %6522 = vmatmul.mubr.bf16.gmra.mxu0 %v4662
    %v6523 = vpop.f32.mrf.mxu0
    %v6524 = vadd.f32 %v6411, %v6523
    %v6525 = vpop.f32.mrf.mxu0
    %v6526 = vadd.f32 %v6413, %v6525
    %v6527 = vpop.f32.mrf.mxu0
    %v6528 = vadd.f32 %v6415, %v6527
    %v6529 = vpop.f32.mrf.mxu0
    %v6530 = vadd.f32 %v6417, %v6529
    %6531 = vdwg.mxu0
    %6532 = vmatprep.subr.bf16.mxu0 %v5711
    %6533 = vmatpush1.bf16.msra.mxu0 %v5710
    %6534 = vmatprep.subr.bf16.mxu0 %v5709
    %6535 = vmatpush1.bf16.msra.mxu0 %v5708
    %6536 = vmatprep.subr.bf16.mxu0 %v5707
    %6537 = vmatpush1.bf16.msra.mxu0 %v5706
    %6538 = vmatprep.subr.bf16.mxu0 %v5705
    %6539 = vmatpush1.bf16.msra.mxu0 %v5704
    %6540 = vmatprep.subr.bf16.mxu0 %v5703
    %6541 = vmatpush1.bf16.msra.mxu0 %v5702
    %6542 = vmatprep.subr.bf16.mxu0 %v5701
    %6543 = vmatpush1.bf16.msra.mxu0 %v5700
    %6544 = vmatprep.subr.bf16.mxu0 %v5699
    %6545 = vmatpush1.bf16.msra.mxu0 %v5698
    %6546 = vmatprep.subr.bf16.mxu0 %v5697
    %6547 = vmatpush1.bf16.msra.mxu0 %v5696
    %6548 = vmatprep.subr.bf16.mxu0 %v5727
    %6549 = vmatpush2.bf16.msra.mxu0 %v5726
    %6550 = vmatprep.subr.bf16.mxu0 %v5725
    %6551 = vmatpush2.bf16.msra.mxu0 %v5724
    %6552 = vmatprep.subr.bf16.mxu0 %v5723
    %6553 = vmatpush2.bf16.msra.mxu0 %v5722
    %6554 = vmatprep.subr.bf16.mxu0 %v5721
    %6555 = vmatpush2.bf16.msra.mxu0 %v5720
    %6556 = vmatprep.subr.bf16.mxu0 %v5719
    %6557 = vmatpush2.bf16.msra.mxu0 %v5718
    %6558 = vmatprep.subr.bf16.mxu0 %v5717
    %6559 = vmatpush2.bf16.msra.mxu0 %v5716
    %6560 = vmatprep.subr.bf16.mxu0 %v5715
    %6561 = vmatpush2.bf16.msra.mxu0 %v5714
    %6562 = vmatprep.subr.bf16.mxu0 %v5713
    %6563 = vmatpush2.bf16.msra.mxu0 %v5712
    %6564 = vmatprep.mubr.bf16.mxu0 %v4553
    %6565 = vmatmul.mubr.bf16.gmra.mxu0 %v4552
    %v6566 = vpop.f32.mrf.mxu0
    %v6567 = vadd.f32 %v6454, %v6566
    %v6568 = vpop.f32.mrf.mxu0
    %v6569 = vadd.f32 %v6456, %v6568
    %v6570 = vpop.f32.mrf.mxu0
    %v6571 = vadd.f32 %v6458, %v6570
    %v6572 = vpop.f32.mrf.mxu0
    %v6573 = vadd.f32 %v6460, %v6572
    %6574 = vmatprep.mubr.bf16.mxu0 %v4569
    %6575 = vmatmul.mubr.bf16.gmra.mxu0 %v4568
    %v6576 = vpop.f32.mrf.mxu0
    %v6577 = vadd.f32 %v6464, %v6576
    %v6578 = vpop.f32.mrf.mxu0
    %v6579 = vadd.f32 %v6466, %v6578
    %v6580 = vpop.f32.mrf.mxu0
    %v6581 = vadd.f32 %v6468, %v6580
    %v6582 = vpop.f32.mrf.mxu0
    %v6583 = vadd.f32 %v6470, %v6582
    %6584 = vmatprep.mubr.bf16.mxu0 %v4585
    %6585 = vmatmul.mubr.bf16.gmra.mxu0 %v4584
    %v6586 = vpop.f32.mrf.mxu0
    %v6587 = vadd.f32 %v6474, %v6586
    %v6588 = vpop.f32.mrf.mxu0
    %v6589 = vadd.f32 %v6476, %v6588
    %v6590 = vpop.f32.mrf.mxu0
    %v6591 = vadd.f32 %v6478, %v6590
    %v6592 = vpop.f32.mrf.mxu0
    %v6593 = vadd.f32 %v6480, %v6592
    %6594 = vmatprep.mubr.bf16.mxu0 %v4601
    %6595 = vmatmul.mubr.bf16.gmra.mxu0 %v4600
    %v6596 = vpop.f32.mrf.mxu0
    %v6597 = vadd.f32 %v6484, %v6596
    %v6598 = vpop.f32.mrf.mxu0
    %v6599 = vadd.f32 %v6486, %v6598
    %v6600 = vpop.f32.mrf.mxu0
    %v6601 = vadd.f32 %v6488, %v6600
    %v6602 = vpop.f32.mrf.mxu0
    %v6603 = vadd.f32 %v6490, %v6602
    %6604 = vmatprep.mubr.bf16.mxu0 %v4617
    %6605 = vmatmul.mubr.bf16.gmra.mxu0 %v4616
    %v6606 = vpop.f32.mrf.mxu0
    %v6607 = vadd.f32 %v6494, %v6606
    %v6608 = vpop.f32.mrf.mxu0
    %v6609 = vadd.f32 %v6496, %v6608
    %v6610 = vpop.f32.mrf.mxu0
    %v6611 = vadd.f32 %v6498, %v6610
    %v6612 = vpop.f32.mrf.mxu0
    %v6613 = vadd.f32 %v6500, %v6612
    %6614 = vmatprep.mubr.bf16.mxu0 %v4633
    %6615 = vmatmul.mubr.bf16.gmra.mxu0 %v4632
    %v6616 = vpop.f32.mrf.mxu0
    %v6617 = vadd.f32 %v6504, %v6616
    %v6618 = vpop.f32.mrf.mxu0
    %v6619 = vadd.f32 %v6506, %v6618
    %v6620 = vpop.f32.mrf.mxu0
    %v6621 = vadd.f32 %v6508, %v6620
    %v6622 = vpop.f32.mrf.mxu0
    %v6623 = vadd.f32 %v6510, %v6622
    %6624 = vmatprep.mubr.bf16.mxu0 %v4649
    %6625 = vmatmul.mubr.bf16.gmra.mxu0 %v4648
    %v6626 = vpop.f32.mrf.mxu0
    %v6627 = vadd.f32 %v6514, %v6626
    %v6628 = vpop.f32.mrf.mxu0
    %v6629 = vadd.f32 %v6516, %v6628
    %v6630 = vpop.f32.mrf.mxu0
    %v6631 = vadd.f32 %v6518, %v6630
    %v6632 = vpop.f32.mrf.mxu0
    %v6633 = vadd.f32 %v6520, %v6632
    %6634 = vmatprep.mubr.bf16.mxu0 %v4665
    %6635 = vmatmul.mubr.bf16.gmra.mxu0 %v4664
    %v6636 = vpop.f32.mrf.mxu0
    %v6637 = vadd.f32 %v6524, %v6636
    %v6638 = vpop.f32.mrf.mxu0
    %v6639 = vadd.f32 %v6526, %v6638
    %v6640 = vpop.f32.mrf.mxu0
    %v6641 = vadd.f32 %v6528, %v6640
    %v6642 = vpop.f32.mrf.mxu0
    %v6643 = vadd.f32 %v6530, %v6642
    %6644 = vdwg.mxu0
    %6645 = vmatprep.subr.bf16.mxu0 %v5743
    %6646 = vmatpush1.bf16.msra.mxu0 %v5742
    %6647 = vmatprep.subr.bf16.mxu0 %v5741
    %6648 = vmatpush1.bf16.msra.mxu0 %v5740
    %6649 = vmatprep.subr.bf16.mxu0 %v5739
    %6650 = vmatpush1.bf16.msra.mxu0 %v5738
    %6651 = vmatprep.subr.bf16.mxu0 %v5737
    %6652 = vmatpush1.bf16.msra.mxu0 %v5736
    %6653 = vmatprep.subr.bf16.mxu0 %v5735
    %6654 = vmatpush1.bf16.msra.mxu0 %v5734
    %6655 = vmatprep.subr.bf16.mxu0 %v5733
    %6656 = vmatpush1.bf16.msra.mxu0 %v5732
    %6657 = vmatprep.subr.bf16.mxu0 %v5731
    %6658 = vmatpush1.bf16.msra.mxu0 %v5730
    %6659 = vmatprep.subr.bf16.mxu0 %v5729
    %6660 = vmatpush1.bf16.msra.mxu0 %v5728
    %6661 = vmatprep.subr.bf16.mxu0 %v5759
    %6662 = vmatpush2.bf16.msra.mxu0 %v5758
    %6663 = vmatprep.subr.bf16.mxu0 %v5757
    %6664 = vmatpush2.bf16.msra.mxu0 %v5756
    %6665 = vmatprep.subr.bf16.mxu0 %v5755
    %6666 = vmatpush2.bf16.msra.mxu0 %v5754
    %6667 = vmatprep.subr.bf16.mxu0 %v5753
    %6668 = vmatpush2.bf16.msra.mxu0 %v5752
    %6669 = vmatprep.subr.bf16.mxu0 %v5751
    %6670 = vmatpush2.bf16.msra.mxu0 %v5750
    %6671 = vmatprep.subr.bf16.mxu0 %v5749
    %6672 = vmatpush2.bf16.msra.mxu0 %v5748
    %6673 = vmatprep.subr.bf16.mxu0 %v5747
    %6674 = vmatpush2.bf16.msra.mxu0 %v5746
    %6675 = vmatprep.subr.bf16.mxu0 %v5745
    %6676 = vmatpush2.bf16.msra.mxu0 %v5744
    %6677 = vmatprep.mubr.bf16.mxu0 %v4555
    %6678 = vmatmul.mubr.bf16.gmra.mxu0 %v4554
    %v6679 = vpop.f32.mrf.mxu0
    %v6680 = vadd.f32 %v6567, %v6679
    %v6681 = vpop.f32.mrf.mxu0
    %v6682 = vadd.f32 %v6569, %v6681
    %v6683 = vpop.f32.mrf.mxu0
    %v6684 = vadd.f32 %v6571, %v6683
    %v6685 = vpop.f32.mrf.mxu0
    %v6686 = vadd.f32 %v6573, %v6685
    %6687 = vmatprep.mubr.bf16.mxu0 %v4571
    %6688 = vmatmul.mubr.bf16.gmra.mxu0 %v4570
    %v6689 = vpop.f32.mrf.mxu0
    %v6690 = vadd.f32 %v6577, %v6689
    %v6691 = vpop.f32.mrf.mxu0
    %v6692 = vadd.f32 %v6579, %v6691
    %v6693 = vpop.f32.mrf.mxu0
    %v6694 = vadd.f32 %v6581, %v6693
    %v6695 = vpop.f32.mrf.mxu0
    %v6696 = vadd.f32 %v6583, %v6695
    %6697 = vmatprep.mubr.bf16.mxu0 %v4587
    %6698 = vmatmul.mubr.bf16.gmra.mxu0 %v4586
    %v6699 = vpop.f32.mrf.mxu0
    %v6700 = vadd.f32 %v6587, %v6699
    %v6701 = vpop.f32.mrf.mxu0
    %v6702 = vadd.f32 %v6589, %v6701
    %v6703 = vpop.f32.mrf.mxu0
    %v6704 = vadd.f32 %v6591, %v6703
    %v6705 = vpop.f32.mrf.mxu0
    %v6706 = vadd.f32 %v6593, %v6705
    %6707 = vmatprep.mubr.bf16.mxu0 %v4603
    %6708 = vmatmul.mubr.bf16.gmra.mxu0 %v4602
    %v6709 = vpop.f32.mrf.mxu0
    %v6710 = vadd.f32 %v6597, %v6709
    %v6711 = vpop.f32.mrf.mxu0
    %v6712 = vadd.f32 %v6599, %v6711
    %v6713 = vpop.f32.mrf.mxu0
    %v6714 = vadd.f32 %v6601, %v6713
    %v6715 = vpop.f32.mrf.mxu0
    %v6716 = vadd.f32 %v6603, %v6715
    %6717 = vmatprep.mubr.bf16.mxu0 %v4619
    %6718 = vmatmul.mubr.bf16.gmra.mxu0 %v4618
    %v6719 = vpop.f32.mrf.mxu0
    %v6720 = vadd.f32 %v6607, %v6719
    %v6721 = vpop.f32.mrf.mxu0
    %v6722 = vadd.f32 %v6609, %v6721
    %v6723 = vpop.f32.mrf.mxu0
    %v6724 = vadd.f32 %v6611, %v6723
    %v6725 = vpop.f32.mrf.mxu0
    %v6726 = vadd.f32 %v6613, %v6725
    %6727 = vmatprep.mubr.bf16.mxu0 %v4635
    %6728 = vmatmul.mubr.bf16.gmra.mxu0 %v4634
    %v6729 = vpop.f32.mrf.mxu0
    %v6730 = vadd.f32 %v6617, %v6729
    %v6731 = vpop.f32.mrf.mxu0
    %v6732 = vadd.f32 %v6619, %v6731
    %v6733 = vpop.f32.mrf.mxu0
    %v6734 = vadd.f32 %v6621, %v6733
    %v6735 = vpop.f32.mrf.mxu0
    %v6736 = vadd.f32 %v6623, %v6735
    %6737 = vmatprep.mubr.bf16.mxu0 %v4651
    %6738 = vmatmul.mubr.bf16.gmra.mxu0 %v4650
    %v6739 = vpop.f32.mrf.mxu0
    %v6740 = vadd.f32 %v6627, %v6739
    %v6741 = vpop.f32.mrf.mxu0
    %v6742 = vadd.f32 %v6629, %v6741
    %v6743 = vpop.f32.mrf.mxu0
    %v6744 = vadd.f32 %v6631, %v6743
    %v6745 = vpop.f32.mrf.mxu0
    %v6746 = vadd.f32 %v6633, %v6745
    %6747 = vmatprep.mubr.bf16.mxu0 %v4667
    %6748 = vmatmul.mubr.bf16.gmra.mxu0 %v4666
    %v6749 = vpop.f32.mrf.mxu0
    %v6750 = vadd.f32 %v6637, %v6749
    %v6751 = vpop.f32.mrf.mxu0
    %v6752 = vadd.f32 %v6639, %v6751
    %v6753 = vpop.f32.mrf.mxu0
    %v6754 = vadd.f32 %v6641, %v6753
    %v6755 = vpop.f32.mrf.mxu0
    %v6756 = vadd.f32 %v6643, %v6755
    %6757 = vdwg.mxu0
    %6758 = vmatprep.subr.bf16.mxu0 %v5775
    %6759 = vmatpush1.bf16.msra.mxu0 %v5774
    %6760 = vmatprep.subr.bf16.mxu0 %v5773
    %6761 = vmatpush1.bf16.msra.mxu0 %v5772
    %6762 = vmatprep.subr.bf16.mxu0 %v5771
    %6763 = vmatpush1.bf16.msra.mxu0 %v5770
    %6764 = vmatprep.subr.bf16.mxu0 %v5769
    %6765 = vmatpush1.bf16.msra.mxu0 %v5768
    %6766 = vmatprep.subr.bf16.mxu0 %v5767
    %6767 = vmatpush1.bf16.msra.mxu0 %v5766
    %6768 = vmatprep.subr.bf16.mxu0 %v5765
    %6769 = vmatpush1.bf16.msra.mxu0 %v5764
    %6770 = vmatprep.subr.bf16.mxu0 %v5763
    %6771 = vmatpush1.bf16.msra.mxu0 %v5762
    %6772 = vmatprep.subr.bf16.mxu0 %v5761
    %6773 = vmatpush1.bf16.msra.mxu0 %v5760
    %6774 = vmatprep.subr.bf16.mxu0 %v5791
    %6775 = vmatpush2.bf16.msra.mxu0 %v5790
    %6776 = vmatprep.subr.bf16.mxu0 %v5789
    %6777 = vmatpush2.bf16.msra.mxu0 %v5788
    %6778 = vmatprep.subr.bf16.mxu0 %v5787
    %6779 = vmatpush2.bf16.msra.mxu0 %v5786
    %6780 = vmatprep.subr.bf16.mxu0 %v5785
    %6781 = vmatpush2.bf16.msra.mxu0 %v5784
    %6782 = vmatprep.subr.bf16.mxu0 %v5783
    %6783 = vmatpush2.bf16.msra.mxu0 %v5782
    %6784 = vmatprep.subr.bf16.mxu0 %v5781
    %6785 = vmatpush2.bf16.msra.mxu0 %v5780
    %6786 = vmatprep.subr.bf16.mxu0 %v5779
    %6787 = vmatpush2.bf16.msra.mxu0 %v5778
    %6788 = vmatprep.subr.bf16.mxu0 %v5777
    %6789 = vmatpush2.bf16.msra.mxu0 %v5776
    %6790 = vmatprep.mubr.bf16.mxu0 %v4557
    %6791 = vmatmul.mubr.bf16.gmra.mxu0 %v4556
    %v6792 = vpop.f32.mrf.mxu0
    %v6793 = vadd.f32 %v6680, %v6792
    %v6794 = vpop.f32.mrf.mxu0
    %v6795 = vadd.f32 %v6682, %v6794
    %v6796 = vpop.f32.mrf.mxu0
    %v6797 = vadd.f32 %v6684, %v6796
    %v6798 = vpop.f32.mrf.mxu0
    %v6799 = vadd.f32 %v6686, %v6798
    %6800 = vmatprep.mubr.bf16.mxu0 %v4573
    %6801 = vmatmul.mubr.bf16.gmra.mxu0 %v4572
    %v6802 = vpop.f32.mrf.mxu0
    %v6803 = vadd.f32 %v6690, %v6802
    %v6804 = vpop.f32.mrf.mxu0
    %v6805 = vadd.f32 %v6692, %v6804
    %v6806 = vpop.f32.mrf.mxu0
    %v6807 = vadd.f32 %v6694, %v6806
    %v6808 = vpop.f32.mrf.mxu0
    %v6809 = vadd.f32 %v6696, %v6808
    %6810 = vmatprep.mubr.bf16.mxu0 %v4589
    %6811 = vmatmul.mubr.bf16.gmra.mxu0 %v4588
    %v6812 = vpop.f32.mrf.mxu0
    %v6813 = vadd.f32 %v6700, %v6812
    %v6814 = vpop.f32.mrf.mxu0
    %v6815 = vadd.f32 %v6702, %v6814
    %v6816 = vpop.f32.mrf.mxu0
    %v6817 = vadd.f32 %v6704, %v6816
    %v6818 = vpop.f32.mrf.mxu0
    %v6819 = vadd.f32 %v6706, %v6818
    %6820 = vmatprep.mubr.bf16.mxu0 %v4605
    %6821 = vmatmul.mubr.bf16.gmra.mxu0 %v4604
    %v6822 = vpop.f32.mrf.mxu0
    %v6823 = vadd.f32 %v6710, %v6822
    %v6824 = vpop.f32.mrf.mxu0
    %v6825 = vadd.f32 %v6712, %v6824
    %v6826 = vpop.f32.mrf.mxu0
    %v6827 = vadd.f32 %v6714, %v6826
    %v6828 = vpop.f32.mrf.mxu0
    %v6829 = vadd.f32 %v6716, %v6828
    %6830 = vmatprep.mubr.bf16.mxu0 %v4621
    %6831 = vmatmul.mubr.bf16.gmra.mxu0 %v4620
    %v6832 = vpop.f32.mrf.mxu0
    %v6833 = vadd.f32 %v6720, %v6832
    %v6834 = vpop.f32.mrf.mxu0
    %v6835 = vadd.f32 %v6722, %v6834
    %v6836 = vpop.f32.mrf.mxu0
    %v6837 = vadd.f32 %v6724, %v6836
    %v6838 = vpop.f32.mrf.mxu0
    %v6839 = vadd.f32 %v6726, %v6838
    %6840 = vmatprep.mubr.bf16.mxu0 %v4637
    %6841 = vmatmul.mubr.bf16.gmra.mxu0 %v4636
    %v6842 = vpop.f32.mrf.mxu0
    %v6843 = vadd.f32 %v6730, %v6842
    %v6844 = vpop.f32.mrf.mxu0
    %v6845 = vadd.f32 %v6732, %v6844
    %v6846 = vpop.f32.mrf.mxu0
    %v6847 = vadd.f32 %v6734, %v6846
    %v6848 = vpop.f32.mrf.mxu0
    %v6849 = vadd.f32 %v6736, %v6848
    %6850 = vmatprep.mubr.bf16.mxu0 %v4653
    %6851 = vmatmul.mubr.bf16.gmra.mxu0 %v4652
    %v6852 = vpop.f32.mrf.mxu0
    %v6853 = vadd.f32 %v6740, %v6852
    %v6854 = vpop.f32.mrf.mxu0
    %v6855 = vadd.f32 %v6742, %v6854
    %v6856 = vpop.f32.mrf.mxu0
    %v6857 = vadd.f32 %v6744, %v6856
    %v6858 = vpop.f32.mrf.mxu0
    %v6859 = vadd.f32 %v6746, %v6858
    %6860 = vmatprep.mubr.bf16.mxu0 %v4669
    %6861 = vmatmul.mubr.bf16.gmra.mxu0 %v4668
    %v6862 = vpop.f32.mrf.mxu0
    %v6863 = vadd.f32 %v6750, %v6862
    %v6864 = vpop.f32.mrf.mxu0
    %v6865 = vadd.f32 %v6752, %v6864
    %v6866 = vpop.f32.mrf.mxu0
    %v6867 = vadd.f32 %v6754, %v6866
    %v6868 = vpop.f32.mrf.mxu0
    %v6869 = vadd.f32 %v6756, %v6868
    %6870 = vdwg.mxu0
    %6871 = vmatprep.subr.bf16.mxu0 %v5807
    %6872 = vmatpush1.bf16.msra.mxu0 %v5806
    %6873 = vmatprep.subr.bf16.mxu0 %v5805
    %6874 = vmatpush1.bf16.msra.mxu0 %v5804
    %6875 = vmatprep.subr.bf16.mxu0 %v5803
    %6876 = vmatpush1.bf16.msra.mxu0 %v5802
    %6877 = vmatprep.subr.bf16.mxu0 %v5801
    %6878 = vmatpush1.bf16.msra.mxu0 %v5800
    %6879 = vmatprep.subr.bf16.mxu0 %v5799
    %6880 = vmatpush1.bf16.msra.mxu0 %v5798
    %6881 = vmatprep.subr.bf16.mxu0 %v5797
    %6882 = vmatpush1.bf16.msra.mxu0 %v5796
    %6883 = vmatprep.subr.bf16.mxu0 %v5795
    %6884 = vmatpush1.bf16.msra.mxu0 %v5794
    %6885 = vmatprep.subr.bf16.mxu0 %v5793
    %6886 = vmatpush1.bf16.msra.mxu0 %v5792
    %6887 = vmatprep.subr.bf16.mxu0 %v5823
    %6888 = vmatpush2.bf16.msra.mxu0 %v5822
    %6889 = vmatprep.subr.bf16.mxu0 %v5821
    %6890 = vmatpush2.bf16.msra.mxu0 %v5820
    %6891 = vmatprep.subr.bf16.mxu0 %v5819
    %6892 = vmatpush2.bf16.msra.mxu0 %v5818
    %6893 = vmatprep.subr.bf16.mxu0 %v5817
    %6894 = vmatpush2.bf16.msra.mxu0 %v5816
    %6895 = vmatprep.subr.bf16.mxu0 %v5815
    %6896 = vmatpush2.bf16.msra.mxu0 %v5814
    %6897 = vmatprep.subr.bf16.mxu0 %v5813
    %6898 = vmatpush2.bf16.msra.mxu0 %v5812
    %6899 = vmatprep.subr.bf16.mxu0 %v5811
    %6900 = vmatpush2.bf16.msra.mxu0 %v5810
    %6901 = vmatprep.subr.bf16.mxu0 %v5809
    %6902 = vmatpush2.bf16.msra.mxu0 %v5808
    %6903 = vmatprep.mubr.bf16.mxu0 %v4559
    %6904 = vmatmul.mubr.bf16.gmra.mxu0 %v4558
    %v6905 = vpop.f32.mrf.mxu0
    %v6906 = vadd.f32 %v6793, %v6905
    %v6907 = vpop.f32.mrf.mxu0
    %v6908 = vadd.f32 %v6795, %v6907
    %v6909 = vpop.f32.mrf.mxu0
    %v6910 = vadd.f32 %v6797, %v6909
    %v6911 = vpop.f32.mrf.mxu0
    %v6912 = vadd.f32 %v6799, %v6911
    %6913 = vmatprep.mubr.bf16.mxu0 %v4575
    %6914 = vmatmul.mubr.bf16.gmra.mxu0 %v4574
    %v6915 = vpop.f32.mrf.mxu0
    %v6916 = vadd.f32 %v6803, %v6915
    %v6917 = vpop.f32.mrf.mxu0
    %v6918 = vadd.f32 %v6805, %v6917
    %v6919 = vpop.f32.mrf.mxu0
    %v6920 = vadd.f32 %v6807, %v6919
    %v6921 = vpop.f32.mrf.mxu0
    %v6922 = vadd.f32 %v6809, %v6921
    %6923 = vmatprep.mubr.bf16.mxu0 %v4591
    %6924 = vmatmul.mubr.bf16.gmra.mxu0 %v4590
    %v6925 = vpop.f32.mrf.mxu0
    %v6926 = vadd.f32 %v6813, %v6925
    %v6927 = vpop.f32.mrf.mxu0
    %v6928 = vadd.f32 %v6815, %v6927
    %v6929 = vpop.f32.mrf.mxu0
    %v6930 = vadd.f32 %v6817, %v6929
    %v6931 = vpop.f32.mrf.mxu0
    %v6932 = vadd.f32 %v6819, %v6931
    %6933 = vmatprep.mubr.bf16.mxu0 %v4607
    %6934 = vmatmul.mubr.bf16.gmra.mxu0 %v4606
    %v6935 = vpop.f32.mrf.mxu0
    %v6936 = vadd.f32 %v6823, %v6935
    %v6937 = vpop.f32.mrf.mxu0
    %v6938 = vadd.f32 %v6825, %v6937
    %v6939 = vpop.f32.mrf.mxu0
    %v6940 = vadd.f32 %v6827, %v6939
    %v6941 = vpop.f32.mrf.mxu0
    %v6942 = vadd.f32 %v6829, %v6941
    %6943 = vmatprep.mubr.bf16.mxu0 %v4623
    %6944 = vmatmul.mubr.bf16.gmra.mxu0 %v4622
    %v6945 = vpop.f32.mrf.mxu0
    %v6946 = vadd.f32 %v6833, %v6945
    %v6947 = vpop.f32.mrf.mxu0
    %v6948 = vadd.f32 %v6835, %v6947
    %v6949 = vpop.f32.mrf.mxu0
    %v6950 = vadd.f32 %v6837, %v6949
    %v6951 = vpop.f32.mrf.mxu0
    %v6952 = vadd.f32 %v6839, %v6951
    %6953 = vmatprep.mubr.bf16.mxu0 %v4639
    %6954 = vmatmul.mubr.bf16.gmra.mxu0 %v4638
    %v6955 = vpop.f32.mrf.mxu0
    %v6956 = vadd.f32 %v6843, %v6955
    %v6957 = vpop.f32.mrf.mxu0
    %v6958 = vadd.f32 %v6845, %v6957
    %v6959 = vpop.f32.mrf.mxu0
    %v6960 = vadd.f32 %v6847, %v6959
    %v6961 = vpop.f32.mrf.mxu0
    %v6962 = vadd.f32 %v6849, %v6961
    %6963 = vmatprep.mubr.bf16.mxu0 %v4655
    %6964 = vmatmul.mubr.bf16.gmra.mxu0 %v4654
    %v6965 = vpop.f32.mrf.mxu0
    %v6966 = vadd.f32 %v6853, %v6965
    %v6967 = vpop.f32.mrf.mxu0
    %v6968 = vadd.f32 %v6855, %v6967
    %v6969 = vpop.f32.mrf.mxu0
    %v6970 = vadd.f32 %v6857, %v6969
    %v6971 = vpop.f32.mrf.mxu0
    %v6972 = vadd.f32 %v6859, %v6971
    %6973 = vmatprep.mubr.bf16.mxu0 %v4671
    %6974 = vmatmul.mubr.bf16.gmra.mxu0 %v4670
    %v6975 = vpop.f32.mrf.mxu0
    %v6976 = vadd.f32 %v6863, %v6975
    %v6977 = vpop.f32.mrf.mxu0
    %v6978 = vadd.f32 %v6865, %v6977
    %v6979 = vpop.f32.mrf.mxu0
    %v6980 = vadd.f32 %v6867, %v6979
    %v6981 = vpop.f32.mrf.mxu0
    %v6982 = vadd.f32 %v6869, %v6981
    %6983 = vdwg.mxu0
    %v6984 = vmax.f32 %v6906, %v6910
    %v6985 = vrot.slane %v6984, 4
    %v6986 = vmax.f32 %v6984, %v6985
    %v6987 = vrot.slane %v6986, 2
    %v6988 = vmax.f32 %v6986, %v6987
    %v6989 = vrot.slane %v6988, 1
    %v6990 = vmax.f32 %v6988, %v6989
    %v6991 = vmax.f32 %v6908, %v6912
    %v6992 = vrot.slane %v6991, 4
    %v6993 = vmax.f32 %v6991, %v6992
    %v6994 = vrot.slane %v6993, 2
    %v6995 = vmax.f32 %v6993, %v6994
    %v6996 = vrot.slane %v6995, 1
    %v6997 = vmax.f32 %v6995, %v6996
    %v6998 = vmax.f32 %v6916, %v6920
    %v6999 = vrot.slane %v6998, 4
    %v7000 = vmax.f32 %v6998, %v6999
    %v7001 = vrot.slane %v7000, 2
    %v7002 = vmax.f32 %v7000, %v7001
    %v7003 = vrot.slane %v7002, 1
    %v7004 = vmax.f32 %v7002, %v7003
    %v7005 = vmax.f32 %v6918, %v6922
    %v7006 = vrot.slane %v7005, 4
    %v7007 = vmax.f32 %v7005, %v7006
    %v7008 = vrot.slane %v7007, 2
    %v7009 = vmax.f32 %v7007, %v7008
    %v7010 = vrot.slane %v7009, 1
    %v7011 = vmax.f32 %v7009, %v7010
    %v7012 = vmax.f32 %v6926, %v6930
    %v7013 = vrot.slane %v7012, 4
    %v7014 = vmax.f32 %v7012, %v7013
    %v7015 = vrot.slane %v7014, 2
    %v7016 = vmax.f32 %v7014, %v7015
    %v7017 = vrot.slane %v7016, 1
    %v7018 = vmax.f32 %v7016, %v7017
    %v7019 = vmax.f32 %v6928, %v6932
    %v7020 = vrot.slane %v7019, 4
    %v7021 = vmax.f32 %v7019, %v7020
    %v7022 = vrot.slane %v7021, 2
    %v7023 = vmax.f32 %v7021, %v7022
    %v7024 = vrot.slane %v7023, 1
    %v7025 = vmax.f32 %v7023, %v7024
    %v7026 = vmax.f32 %v6936, %v6940
    %v7027 = vrot.slane %v7026, 4
    %v7028 = vmax.f32 %v7026, %v7027
    %v7029 = vrot.slane %v7028, 2
    %v7030 = vmax.f32 %v7028, %v7029
    %v7031 = vrot.slane %v7030, 1
    %v7032 = vmax.f32 %v7030, %v7031
    %v7033 = vmax.f32 %v6938, %v6942
    %v7034 = vrot.slane %v7033, 4
    %v7035 = vmax.f32 %v7033, %v7034
    %v7036 = vrot.slane %v7035, 2
    %v7037 = vmax.f32 %v7035, %v7036
    %v7038 = vrot.slane %v7037, 1
    %v7039 = vmax.f32 %v7037, %v7038
    %v7040 = vmax.f32 %v6946, %v6950
    %v7041 = vrot.slane %v7040, 4
    %v7042 = vmax.f32 %v7040, %v7041
    %v7043 = vrot.slane %v7042, 2
    %v7044 = vmax.f32 %v7042, %v7043
    %v7045 = vrot.slane %v7044, 1
    %v7046 = vmax.f32 %v7044, %v7045
    %v7047 = vmax.f32 %v6948, %v6952
    %v7048 = vrot.slane %v7047, 4
    %v7049 = vmax.f32 %v7047, %v7048
    %v7050 = vrot.slane %v7049, 2
    %v7051 = vmax.f32 %v7049, %v7050
    %v7052 = vrot.slane %v7051, 1
    %v7053 = vmax.f32 %v7051, %v7052
    %v7054 = vmax.f32 %v6956, %v6960
    %v7055 = vrot.slane %v7054, 4
    %v7056 = vmax.f32 %v7054, %v7055
    %v7057 = vrot.slane %v7056, 2
    %v7058 = vmax.f32 %v7056, %v7057
    %v7059 = vrot.slane %v7058, 1
    %v7060 = vmax.f32 %v7058, %v7059
    %v7061 = vmax.f32 %v6958, %v6962
    %v7062 = vrot.slane %v7061, 4
    %v7063 = vmax.f32 %v7061, %v7062
    %v7064 = vrot.slane %v7063, 2
    %v7065 = vmax.f32 %v7063, %v7064
    %v7066 = vrot.slane %v7065, 1
    %v7067 = vmax.f32 %v7065, %v7066
    %v7068 = vmax.f32 %v6966, %v6970
    %v7069 = vrot.slane %v7068, 4
    %v7070 = vmax.f32 %v7068, %v7069
    %v7071 = vrot.slane %v7070, 2
    %v7072 = vmax.f32 %v7070, %v7071
    %v7073 = vrot.slane %v7072, 1
    %v7074 = vmax.f32 %v7072, %v7073
    %v7075 = vmax.f32 %v6968, %v6972
    %v7076 = vrot.slane %v7075, 4
    %v7077 = vmax.f32 %v7075, %v7076
    %v7078 = vrot.slane %v7077, 2
    %v7079 = vmax.f32 %v7077, %v7078
    %v7080 = vrot.slane %v7079, 1
    %v7081 = vmax.f32 %v7079, %v7080
    %v7082 = vmax.f32 %v6976, %v6980
    %v7083 = vrot.slane %v7082, 4
    %v7084 = vmax.f32 %v7082, %v7083
    %v7085 = vrot.slane %v7084, 2
    %v7086 = vmax.f32 %v7084, %v7085
    %v7087 = vrot.slane %v7086, 1
    %v7088 = vmax.f32 %v7086, %v7087
    %v7089 = vmax.f32 %v6978, %v6982
    %v7090 = vrot.slane %v7089, 4
    %v7091 = vmax.f32 %v7089, %v7090
    %v7092 = vrot.slane %v7091, 2
    %v7093 = vmax.f32 %v7091, %v7092
    %v7094 = vrot.slane %v7093, 1
    %v7095 = vmax.f32 %v7093, %v7094
    %v7096 = vld [vmem:[#allocation8] sm:$0xff]
    %v7097 = vld [vmem:[#allocation8 + $0x8] sm:$0xff]
    %v7098 = vld [vmem:[#allocation8 + $0x10] sm:$0xff]
    %v7099 = vld [vmem:[#allocation8 + $0x18] sm:$0xff]
    %v7100 = vld [vmem:[#allocation8 + $0x20] sm:$0xff]
    %v7101 = vld [vmem:[#allocation8 + $0x28] sm:$0xff]
    %v7102 = vld [vmem:[#allocation8 + $0x30] sm:$0xff]
    %v7103 = vld [vmem:[#allocation8 + $0x38] sm:$0xff]
    %v7104 = vld [vmem:[#allocation8 + $0x40] sm:$0xff]
    %v7105 = vld [vmem:[#allocation8 + $0x48] sm:$0xff]
    %v7106 = vld [vmem:[#allocation8 + $0x50] sm:$0xff]
    %v7107 = vld [vmem:[#allocation8 + $0x58] sm:$0xff]
    %v7108 = vld [vmem:[#allocation8 + $0x60] sm:$0xff]
    %v7109 = vld [vmem:[#allocation8 + $0x68] sm:$0xff]
    %v7110 = vld [vmem:[#allocation8 + $0x70] sm:$0xff]
    %v7111 = vld [vmem:[#allocation8 + $0x78] sm:$0xff]
    %v7112 = vld [vmem:[#allocation8 + $0x80] sm:$0xff]
    %v7113 = vld [vmem:[#allocation8 + $0x88] sm:$0xff]
    %v7114 = vld [vmem:[#allocation8 + $0x90] sm:$0xff]
    %v7115 = vld [vmem:[#allocation8 + $0x98] sm:$0xff]
    %v7116 = vld [vmem:[#allocation8 + $0xa0] sm:$0xff]
    %v7117 = vld [vmem:[#allocation8 + $0xa8] sm:$0xff]
    %v7118 = vld [vmem:[#allocation8 + $0xb0] sm:$0xff]
    %v7119 = vld [vmem:[#allocation8 + $0xb8] sm:$0xff]
    %v7120 = vld [vmem:[#allocation8 + $0xc0] sm:$0xff]
    %v7121 = vld [vmem:[#allocation8 + $0xc8] sm:$0xff]
    %v7122 = vld [vmem:[#allocation8 + $0xd0] sm:$0xff]
    %v7123 = vld [vmem:[#allocation8 + $0xd8] sm:$0xff]
    %v7124 = vld [vmem:[#allocation8 + $0xe0] sm:$0xff]
    %v7125 = vld [vmem:[#allocation8 + $0xe8] sm:$0xff]
    %v7126 = vld [vmem:[#allocation8 + $0xf0] sm:$0xff]
    %v7127 = vld [vmem:[#allocation8 + $0xf8] sm:$0xff]
    %v7128 = vld [vmem:[#allocation8 + $0x100] sm:$0xff]
    %v7129 = vld [vmem:[#allocation8 + $0x108] sm:$0xff]
    %v7130 = vld [vmem:[#allocation8 + $0x110] sm:$0xff]
    %v7131 = vld [vmem:[#allocation8 + $0x118] sm:$0xff]
    %v7132 = vld [vmem:[#allocation8 + $0x120] sm:$0xff]
    %v7133 = vld [vmem:[#allocation8 + $0x128] sm:$0xff]
    %v7134 = vld [vmem:[#allocation8 + $0x130] sm:$0xff]
    %v7135 = vld [vmem:[#allocation8 + $0x138] sm:$0xff]
    %v7136 = vld [vmem:[#allocation8 + $0x140] sm:$0xff]
    %v7137 = vld [vmem:[#allocation8 + $0x148] sm:$0xff]
    %v7138 = vld [vmem:[#allocation8 + $0x150] sm:$0xff]
    %v7139 = vld [vmem:[#allocation8 + $0x158] sm:$0xff]
    %v7140 = vld [vmem:[#allocation8 + $0x160] sm:$0xff]
    %v7141 = vld [vmem:[#allocation8 + $0x168] sm:$0xff]
    %v7142 = vld [vmem:[#allocation8 + $0x170] sm:$0xff]
    %v7143 = vld [vmem:[#allocation8 + $0x178] sm:$0xff]
    %v7144 = vld [vmem:[#allocation8 + $0x180] sm:$0xff]
    %v7145 = vld [vmem:[#allocation8 + $0x188] sm:$0xff]
    %v7146 = vld [vmem:[#allocation8 + $0x190] sm:$0xff]
    %v7147 = vld [vmem:[#allocation8 + $0x198] sm:$0xff]
    %v7148 = vld [vmem:[#allocation8 + $0x1a0] sm:$0xff]
    %v7149 = vld [vmem:[#allocation8 + $0x1a8] sm:$0xff]
    %v7150 = vld [vmem:[#allocation8 + $0x1b0] sm:$0xff]
    %v7151 = vld [vmem:[#allocation8 + $0x1b8] sm:$0xff]
    %v7152 = vld [vmem:[#allocation8 + $0x1c0] sm:$0xff]
    %v7153 = vld [vmem:[#allocation8 + $0x1c8] sm:$0xff]
    %v7154 = vld [vmem:[#allocation8 + $0x1d0] sm:$0xff]
    %v7155 = vld [vmem:[#allocation8 + $0x1d8] sm:$0xff]
    %v7156 = vld [vmem:[#allocation8 + $0x1e0] sm:$0xff]
    %v7157 = vld [vmem:[#allocation8 + $0x1e8] sm:$0xff]
    %v7158 = vld [vmem:[#allocation8 + $0x1f0] sm:$0xff]
    %v7159 = vld [vmem:[#allocation8 + $0x1f8] sm:$0xff]
    %v7160 = vld [vmem:[#allocation10] sm:$0xff]
    %v7161 = vld [vmem:[#allocation10 + $0x8] sm:$0xff]
    %v7162 = vld [vmem:[#allocation10 + $0x10] sm:$0xff]
    %v7163 = vld [vmem:[#allocation10 + $0x18] sm:$0xff]
    %v7164 = vld [vmem:[#allocation10 + $0x20] sm:$0xff]
    %v7165 = vld [vmem:[#allocation10 + $0x28] sm:$0xff]
    %v7166 = vld [vmem:[#allocation10 + $0x30] sm:$0xff]
    %v7167 = vld [vmem:[#allocation10 + $0x38] sm:$0xff]
    %v7168 = vld [vmem:[#allocation10 + $0x40] sm:$0xff]
    %v7169 = vld [vmem:[#allocation10 + $0x48] sm:$0xff]
    %v7170 = vld [vmem:[#allocation10 + $0x50] sm:$0xff]
    %v7171 = vld [vmem:[#allocation10 + $0x58] sm:$0xff]
    %v7172 = vld [vmem:[#allocation10 + $0x60] sm:$0xff]
    %v7173 = vld [vmem:[#allocation10 + $0x68] sm:$0xff]
    %v7174 = vld [vmem:[#allocation10 + $0x70] sm:$0xff]
    %v7175 = vld [vmem:[#allocation10 + $0x78] sm:$0xff]
    %v7176 = vld [vmem:[#allocation10 + $0x80] sm:$0xff]
    %v7177 = vld [vmem:[#allocation10 + $0x88] sm:$0xff]
    %v7178 = vld [vmem:[#allocation10 + $0x90] sm:$0xff]
    %v7179 = vld [vmem:[#allocation10 + $0x98] sm:$0xff]
    %v7180 = vld [vmem:[#allocation10 + $0xa0] sm:$0xff]
    %v7181 = vld [vmem:[#allocation10 + $0xa8] sm:$0xff]
    %v7182 = vld [vmem:[#allocation10 + $0xb0] sm:$0xff]
    %v7183 = vld [vmem:[#allocation10 + $0xb8] sm:$0xff]
    %v7184 = vld [vmem:[#allocation10 + $0xc0] sm:$0xff]
    %v7185 = vld [vmem:[#allocation10 + $0xc8] sm:$0xff]
    %v7186 = vld [vmem:[#allocation10 + $0xd0] sm:$0xff]
    %v7187 = vld [vmem:[#allocation10 + $0xd8] sm:$0xff]
    %v7188 = vld [vmem:[#allocation10 + $0xe0] sm:$0xff]
    %v7189 = vld [vmem:[#allocation10 + $0xe8] sm:$0xff]
    %v7190 = vld [vmem:[#allocation10 + $0xf0] sm:$0xff]
    %v7191 = vld [vmem:[#allocation10 + $0xf8] sm:$0xff]
    %v7192 = vld [vmem:[#allocation10 + $0x100] sm:$0xff]
    %v7193 = vld [vmem:[#allocation10 + $0x108] sm:$0xff]
    %v7194 = vld [vmem:[#allocation10 + $0x110] sm:$0xff]
    %v7195 = vld [vmem:[#allocation10 + $0x118] sm:$0xff]
    %v7196 = vld [vmem:[#allocation10 + $0x120] sm:$0xff]
    %v7197 = vld [vmem:[#allocation10 + $0x128] sm:$0xff]
    %v7198 = vld [vmem:[#allocation10 + $0x130] sm:$0xff]
    %v7199 = vld [vmem:[#allocation10 + $0x138] sm:$0xff]
    %v7200 = vld [vmem:[#allocation10 + $0x140] sm:$0xff]
    %v7201 = vld [vmem:[#allocation10 + $0x148] sm:$0xff]
    %v7202 = vld [vmem:[#allocation10 + $0x150] sm:$0xff]
    %v7203 = vld [vmem:[#allocation10 + $0x158] sm:$0xff]
    %v7204 = vld [vmem:[#allocation10 + $0x160] sm:$0xff]
    %v7205 = vld [vmem:[#allocation10 + $0x168] sm:$0xff]
    %v7206 = vld [vmem:[#allocation10 + $0x170] sm:$0xff]
    %v7207 = vld [vmem:[#allocation10 + $0x178] sm:$0xff]
    %v7208 = vld [vmem:[#allocation10 + $0x180] sm:$0xff]
    %v7209 = vld [vmem:[#allocation10 + $0x188] sm:$0xff]
    %v7210 = vld [vmem:[#allocation10 + $0x190] sm:$0xff]
    %v7211 = vld [vmem:[#allocation10 + $0x198] sm:$0xff]
    %v7212 = vld [vmem:[#allocation10 + $0x1a0] sm:$0xff]
    %v7213 = vld [vmem:[#allocation10 + $0x1a8] sm:$0xff]
    %v7214 = vld [vmem:[#allocation10 + $0x1b0] sm:$0xff]
    %v7215 = vld [vmem:[#allocation10 + $0x1b8] sm:$0xff]
    %v7216 = vld [vmem:[#allocation10 + $0x1c0] sm:$0xff]
    %v7217 = vld [vmem:[#allocation10 + $0x1c8] sm:$0xff]
    %v7218 = vld [vmem:[#allocation10 + $0x1d0] sm:$0xff]
    %v7219 = vld [vmem:[#allocation10 + $0x1d8] sm:$0xff]
    %v7220 = vld [vmem:[#allocation10 + $0x1e0] sm:$0xff]
    %v7221 = vld [vmem:[#allocation10 + $0x1e8] sm:$0xff]
    %v7222 = vld [vmem:[#allocation10 + $0x1f0] sm:$0xff]
    %v7223 = vld [vmem:[#allocation10 + $0x1f8] sm:$0xff]
    %v7240 = vsel %vm2145, %v7004, %v6990
    %v7241 = vsel %vm2147, %v7018, %v7240
    %v7242 = vsel %vm2149, %v7032, %v7241
    %v7243 = vsel %vm2151, %v7046, %v7242
    %v7244 = vsel %vm2153, %v7060, %v7243
    %v7245 = vsel %vm2155, %v7074, %v7244
    %v7246 = vsel %vm2157, %v7088, %v7245
    %v7247 = vsel %vm2145, %v7011, %v6997
    %v7248 = vsel %vm2147, %v7025, %v7247
    %v7249 = vsel %vm2149, %v7039, %v7248
    %v7250 = vsel %vm2151, %v7053, %v7249
    %v7251 = vsel %vm2153, %v7067, %v7250
    %v7252 = vsel %vm2155, %v7081, %v7251
    %v7253 = vsel %vm2157, %v7095, %v7252
    %7256 = vmatprep.subr.mxu0 %v7191
    %7257 = vmatpush1.msra.mxu0 %v7190
    %7258 = vmatprep.subr.mxu0 %v7189
    %7259 = vmatpush1.msra.mxu0 %v7188
    %7260 = vmatprep.subr.mxu0 %v7187
    %7261 = vmatpush1.msra.mxu0 %v7186
    %7262 = vmatprep.subr.mxu0 %v7185
    %7263 = vmatpush1.msra.mxu0 %v7184
    %7264 = vmatprep.subr.mxu0 %v7183
    %7265 = vmatpush1.msra.mxu0 %v7182
    %7266 = vmatprep.subr.mxu0 %v7181
    %7267 = vmatpush1.msra.mxu0 %v7180
    %7268 = vmatprep.subr.mxu0 %v7179
    %7269 = vmatpush1.msra.mxu0 %v7178
    %7270 = vmatprep.subr.mxu0 %v7177
    %7271 = vmatpush1.msra.mxu0 %v7176
    %7272 = vmatprep.subr.mxu0 %v7175
    %7273 = vmatpush1.msra.mxu0 %v7174
    %7274 = vmatprep.subr.mxu0 %v7173
    %7275 = vmatpush1.msra.mxu0 %v7172
    %7276 = vmatprep.subr.mxu0 %v7171
    %7277 = vmatpush1.msra.mxu0 %v7170
    %7278 = vmatprep.subr.mxu0 %v7169
    %7279 = vmatpush1.msra.mxu0 %v7168
    %7280 = vmatprep.subr.mxu0 %v7167
    %7281 = vmatpush1.msra.mxu0 %v7166
    %7282 = vmatprep.subr.mxu0 %v7165
    %7283 = vmatpush1.msra.mxu0 %v7164
    %7284 = vmatprep.subr.mxu0 %v7163
    %7285 = vmatpush1.msra.mxu0 %v7162
    %7286 = vmatprep.subr.mxu0 %v7161
    %7287 = vmatpush1.msra.mxu0 %v7160
    %7288 = vmatprep.subr.mxu0 %v7223
    %7289 = vmatpush2.msra.mxu0 %v7222
    %7290 = vmatprep.subr.mxu0 %v7221
    %7291 = vmatpush2.msra.mxu0 %v7220
    %7292 = vmatprep.subr.mxu0 %v7219
    %7293 = vmatpush2.msra.mxu0 %v7218
    %7294 = vmatprep.subr.mxu0 %v7217
    %7295 = vmatpush2.msra.mxu0 %v7216
    %7296 = vmatprep.subr.mxu0 %v7215
    %7297 = vmatpush2.msra.mxu0 %v7214
    %7298 = vmatprep.subr.mxu0 %v7213
    %7299 = vmatpush2.msra.mxu0 %v7212
    %7300 = vmatprep.subr.mxu0 %v7211
    %7301 = vmatpush2.msra.mxu0 %v7210
    %7302 = vmatprep.subr.mxu0 %v7209
    %7303 = vmatpush2.msra.mxu0 %v7208
    %7304 = vmatprep.subr.mxu0 %v7207
    %7305 = vmatpush2.msra.mxu0 %v7206
    %7306 = vmatprep.subr.mxu0 %v7205
    %7307 = vmatpush2.msra.mxu0 %v7204
    %7308 = vmatprep.subr.mxu0 %v7203
    %7309 = vmatpush2.msra.mxu0 %v7202
    %7310 = vmatprep.subr.mxu0 %v7201
    %7311 = vmatpush2.msra.mxu0 %v7200
    %7312 = vmatprep.subr.mxu0 %v7199
    %7313 = vmatpush2.msra.mxu0 %v7198
    %7314 = vmatprep.subr.mxu0 %v7197
    %7315 = vmatpush2.msra.mxu0 %v7196
    %7316 = vmatprep.subr.mxu0 %v7195
    %7317 = vmatpush2.msra.mxu0 %v7194
    %7318 = vmatprep.subr.mxu0 %v7193
    %7319 = vmatpush2.msra.mxu0 %v7192
    %7320 = vmatprep.mubr.f32.mxu0 %v7253
    %7321 = vmatmul.mubr.f32.gmra.mxu0 %v7246
    %v7322 = vpop.f32.mrf.mxu0
    %v7323 = vadd.f32 0.0, %v7322
    %v7324 = vpop.f32.mrf.mxu0
    %v7325 = vadd.f32 0.0, %v7324
    %7326 = vdwg.mxu0
    %7327 = vmatprep.subr.mxu0 %v7127
    %7328 = vmatpush1.msra.mxu0 %v7126
    %7329 = vmatprep.subr.mxu0 %v7125
    %7330 = vmatpush1.msra.mxu0 %v7124
    %7331 = vmatprep.subr.mxu0 %v7123
    %7332 = vmatpush1.msra.mxu0 %v7122
    %7333 = vmatprep.subr.mxu0 %v7121
    %7334 = vmatpush1.msra.mxu0 %v7120
    %7335 = vmatprep.subr.mxu0 %v7119
    %7336 = vmatpush1.msra.mxu0 %v7118
    %7337 = vmatprep.subr.mxu0 %v7117
    %7338 = vmatpush1.msra.mxu0 %v7116
    %7339 = vmatprep.subr.mxu0 %v7115
    %7340 = vmatpush1.msra.mxu0 %v7114
    %7341 = vmatprep.subr.mxu0 %v7113
    %7342 = vmatpush1.msra.mxu0 %v7112
    %7343 = vmatprep.subr.mxu0 %v7111
    %7344 = vmatpush1.msra.mxu0 %v7110
    %7345 = vmatprep.subr.mxu0 %v7109
    %7346 = vmatpush1.msra.mxu0 %v7108
    %7347 = vmatprep.subr.mxu0 %v7107
    %7348 = vmatpush1.msra.mxu0 %v7106
    %7349 = vmatprep.subr.mxu0 %v7105
    %7350 = vmatpush1.msra.mxu0 %v7104
    %7351 = vmatprep.subr.mxu0 %v7103
    %7352 = vmatpush1.msra.mxu0 %v7102
    %7353 = vmatprep.subr.mxu0 %v7101
    %7354 = vmatpush1.msra.mxu0 %v7100
    %7355 = vmatprep.subr.mxu0 %v7099
    %7356 = vmatpush1.msra.mxu0 %v7098
    %7357 = vmatprep.subr.mxu0 %v7097
    %7358 = vmatpush1.msra.mxu0 %v7096
    %7359 = vmatprep.subr.mxu0 %v7159
    %7360 = vmatpush2.msra.mxu0 %v7158
    %7361 = vmatprep.subr.mxu0 %v7157
    %7362 = vmatpush2.msra.mxu0 %v7156
    %7363 = vmatprep.subr.mxu0 %v7155
    %7364 = vmatpush2.msra.mxu0 %v7154
    %7365 = vmatprep.subr.mxu0 %v7153
    %7366 = vmatpush2.msra.mxu0 %v7152
    %7367 = vmatprep.subr.mxu0 %v7151
    %7368 = vmatpush2.msra.mxu0 %v7150
    %7369 = vmatprep.subr.mxu0 %v7149
    %7370 = vmatpush2.msra.mxu0 %v7148
    %7371 = vmatprep.subr.mxu0 %v7147
    %7372 = vmatpush2.msra.mxu0 %v7146
    %7373 = vmatprep.subr.mxu0 %v7145
    %7374 = vmatpush2.msra.mxu0 %v7144
    %7375 = vmatprep.subr.mxu0 %v7143
    %7376 = vmatpush2.msra.mxu0 %v7142
    %7377 = vmatprep.subr.mxu0 %v7141
    %7378 = vmatpush2.msra.mxu0 %v7140
    %7379 = vmatprep.subr.mxu0 %v7139
    %7380 = vmatpush2.msra.mxu0 %v7138
    %7381 = vmatprep.subr.mxu0 %v7137
    %7382 = vmatpush2.msra.mxu0 %v7136
    %7383 = vmatprep.subr.mxu0 %v7135
    %7384 = vmatpush2.msra.mxu0 %v7134
    %7385 = vmatprep.subr.mxu0 %v7133
    %7386 = vmatpush2.msra.mxu0 %v7132
    %7387 = vmatprep.subr.mxu0 %v7131
    %7388 = vmatpush2.msra.mxu0 %v7130
    %7389 = vmatprep.subr.mxu0 %v7129
    %7390 = vmatpush2.msra.mxu0 %v7128
    %7391 = vmatprep.mubr.f32.mxu0 %v3900
    %7392 = vmatmul.mubr.f32.gmra.mxu0 %v3898
    %v7393 = vpop.f32.mrf.mxu0
    %v7394 = vadd.f32 %v7323, %v7393
    %v7395 = vpop.f32.mrf.mxu0
    %v7396 = vadd.f32 %v7325, %v7395
    %7397 = vdwg.mxu0
    %v7398 = vld [vmem:[%s5] sm:$0x3]
    %v7400 = vlaneseq
    %v7401 = vshrl.u32 %v7400, 7
    %v7402 = vsub.s32 0, %v7401
    %v7403 = vrot.slane %v7398, %v7402
    %v7404 = vlaneseq
    %v7405 = vshrl.u32 %v7404, 7
    %v7406 = vsub.s32 1, %v7405
    %v7407 = vrot.slane %v7398, %v7406
    %v7410 = vadd.f32 %v7394, %v7403
    %v7411 = vadd.f32 %v7396, %v7407
    %7412 = vst [vmem:[#allocation11] sm:$0xff] %v3898
    %7413 = vst [vmem:[#allocation11 + $0x8] sm:$0xff] %v3900
    %7414 = vst [vmem:[#allocation12] sm:$0xff] %v7246
    %7415 = vst [vmem:[#allocation12 + $0x8] sm:$0xff] %v7253
    %7416 = vst [vmem:[#allocation14] sm:$0xff] %v7410
    %7417 = vst [vmem:[#allocation14 + $0x8] sm:$0xff] %v7411
    // Predicated region
    $region46: #{tpu_custom_call.1} parent=1 // pred_check
      _
    $region47: #{tpu_custom_call.1} parent=1 // pred_check_branch
      %7419 = sbr.rel (0) target = $region49
    $region48: #{tpu_custom_call.1} parent=1 // pred_region
      %s7421 = ssub.s32 256, 256
      %7422 = vsyncadd [#allocation4], %s7421
      %s7424 = sshll.u32 [#allocation11], 4
      %s7425 = int_to_ptr.vmem [resolvable:$true] %s7424
      %7427 = dma.vmem_to_hbm [thread:$0]  %s7425, 256, %s6, [#allocation4]
    $region49: #{tpu_custom_call.1} parent=1 // pred_fallthru
      _
    // Predicated region
    $region50: #{tpu_custom_call.1} parent=1 // pred_check
      _
    $region51: #{tpu_custom_call.1} parent=1 // pred_check_branch
      %7429 = sbr.rel (0) target = $region53
    $region52: #{tpu_custom_call.1} parent=1 // pred_region
      %s7431 = ssub.s32 256, 256
      %7432 = vsyncadd [#allocation13], %s7431
      %s7434 = sshll.u32 [#allocation12], 4
      %s7435 = int_to_ptr.vmem [resolvable:$true] %s7434
      %7437 = dma.vmem_to_hbm [thread:$0]  %s7435, 256, %s7, [#allocation13]
    $region53: #{tpu_custom_call.1} parent=1 // pred_fallthru
      _
    // Predicated region
    $region54: #{tpu_custom_call.1} parent=1 // pred_check
      _
    $region55: #{tpu_custom_call.1} parent=1 // pred_check_branch
      %7439 = sbr.rel (0) target = $region57
    $region56: #{tpu_custom_call.1} parent=1 // pred_region
      %s7441 = ssub.s32 256, 256
      %7442 = vsyncadd [#allocation13], %s7441
      %s7444 = sshll.u32 [#allocation14], 4
      %s7445 = int_to_ptr.vmem [resolvable:$true] %s7444
      %7447 = dma.vmem_to_hbm [thread:$0]  %s7445, 256, %s8, [#allocation13]
    $region57: #{tpu_custom_call.1} parent=1 // pred_fallthru
      _
    // Predicated region
    $region58: #{tpu_custom_call.1} parent=1 // pred_check
      _
    $region59: #{tpu_custom_call.1} parent=1 // pred_check_branch
      %7449 = sbr.rel (0) target = $region61
    $region60: #{tpu_custom_call.1} parent=1 // pred_region
      %7450 = dma.done [#allocation4], 256
    $region61: #{tpu_custom_call.1} parent=1 // pred_fallthru
      _
    // Predicated region
    $region62: #{tpu_custom_call.1} parent=1 // pred_check
      _
    $region63: #{tpu_custom_call.1} parent=1 // pred_check_branch
      %7452 = sbr.rel (0) target = $region65
    $region64: #{tpu_custom_call.1} parent=1 // pred_region
      %7453 = dma.done [#allocation13], 256
    $region65: #{tpu_custom_call.1} parent=1 // pred_fallthru
      _
    // Predicated region
    $region66: #{tpu_custom_call.1} parent=1 // pred_check
      _
    $region67: #{tpu_custom_call.1} parent=1 // pred_check_branch
      %7455 = sbr.rel (0) target = $region69
    $region68: #{tpu_custom_call.1} parent=1 // pred_region
      %7456 = dma.done [#allocation13], 256
    $region69: #{tpu_custom_call.1} parent=1 // pred_fallthru
      _
    %7457 = vsyncpa [#allocation3], 1
    %7458 = vsyncpa [#allocation6], 1
    %7459 = vsyncpa [#allocation9], 1
    %7460 = vsyncpa [#allocation4], 1
    %7461 = vsyncpa [#allocation13], 1

</llo_original>
